<compile_context>
chip_gen: v7x
topology: tpu7x:2x2x1
jax: 0.10.0
libtpu: 0.0.40
codegen_flags: <defaults>
</compile_context>

<pallas_src>
import jax
import jax.numpy as jnp
from jax.experimental import pallas as pl
from jax.experimental.pallas import tpu as pltpu

LANES = 128


def _round_up(n, m):
    return ((n + m - 1) // m) * m


def _leaky_relu(x, negative_slope=0.2):
    # maximum() = 2 VALU ops/elem vs where()'s compare+select (3).
    return jnp.maximum(x, negative_slope * x)


def discriminator_kernel(x_ref,
                         w1_ref, b1_ref,
                         w2_ref, b2_ref,
                         w3_ref, b3_ref,
                         w4_ref, b4_ref,
                         out_ref):
    # x_ref: (TB, DIN) bf16 activation tile.  w1..w3: bf16 (in, out); b1..b3: f32 (1, out).
    # w4_ref: bf16 (1, 256) row.  b4_ref: f32 (1, 1) scalar in SMEM.
    # out_ref: (1, TB//128, 128) f32 lane-folded sigmoid outputs.
    h = jnp.dot(x_ref[...], w1_ref[...], preferred_element_type=jnp.float32) + b1_ref[...]
    h = _leaky_relu(h)
    h = jnp.dot(h.astype(jnp.bfloat16), w2_ref[...],
                preferred_element_type=jnp.float32) + b2_ref[...]
    h = _leaky_relu(h)
    h = jnp.dot(h.astype(jnp.bfloat16), w3_ref[...],
                preferred_element_type=jnp.float32) + b3_ref[...]
    h = _leaky_relu(h)

    # Final 256 -> 1 layer as VPU multiply + XLU lane reduction (an N=1 MXU matmul
    # would use 1/256 of the MXU columns).  Fold batch rows into lanes first via a
    # leading-dim split (layout-preserving) so the result lands as a lane-dense
    # (TB//128, 128) block -> unmasked 128-lane stores, 4 B/row HBM writeback.
    tb, h3dim = h.shape
    sub = out_ref.shape[1]                                  # TB // 128
    hf = h.reshape(sub, LANES, h3dim)                       # (TB//128, 128, 256)
    w4 = w4_ref[...].astype(jnp.float32)                    # (1, 256)
    logits = jnp.sum(hf * w4[None], axis=-1) + b4_ref[0, 0]  # (TB//128, 128)
    out_ref[...] = jax.nn.sigmoid(logits)[None].astype(out_ref.dtype)


def init_discriminator_params(key, d_input_dim, num_classes):
    """Synthetic params; shapes match the PyTorch module (weights kept as (in, out))."""
    dims = [d_input_dim + num_classes, 1024, 512, 256, 1]
    keys = jax.random.split(key, 1 + 2 * (len(dims) - 1))
    params = {"label_emb": jax.random.normal(keys[0], (num_classes, num_classes),
                                             dtype=jnp.float32)}
    for li in range(len(dims) - 1):
        fan_in, fan_out = dims[li], dims[li + 1]
        kw, kb = keys[1 + 2 * li], keys[2 + 2 * li]
        scale = 1.0 / jnp.sqrt(jnp.float32(fan_in))
        w = scale * jax.random.normal(kw, (fan_in, fan_out), dtype=jnp.float32)
        b = scale * jax.random.normal(kb, (1, fan_out), dtype=jnp.float32)
        if fan_out == 1:
            # Final layer stored as a (1, 256) bf16 row (VPU reduce in-kernel),
            # its bias as a (1, 1) f32 scalar (goes to SMEM).
            params[f"w{li + 1}"] = w.T.astype(jnp.bfloat16)
            params[f"b{li + 1}"] = b
        else:
            params[f"w{li + 1}"] = w.astype(jnp.bfloat16)
            params[f"b{li + 1}"] = b
    return params


def discriminator_forward(params, x, labels, *, block_batch=512):
    # Glue: embedding lookup + concat (torch.cat([x, label_emb], dim=1)).
    # bf16 cast fused into the concat/pad copy XLA emits anyway.
    labels_emb = params["label_emb"][labels]                         # (B, C)
    xin = jnp.concatenate([x, labels_emb], axis=1).astype(jnp.bfloat16)   # (B, DIN) bf16
    B, DIN = xin.shape

    w1, b1 = params["w1"], params["b1"]
    w2, b2 = params["w2"], params["b2"]
    w3, b3 = params["w3"], params["b3"]
    w4, b4 = params["w4"], params["b4"]
    H1, H2, H3 = w1.shape[1], w2.shape[1], w3.shape[1]

    # K-alignment for layer 1: always lane-align (128); align big inputs (e.g. real
    # MNIST 794) to the 256-deep v6e/v7x MXU contraction.  Zero rows in w1 keep the
    # math exact.
    din_align = 256 if DIN > 256 else 128
    DIN_pad = _round_up(DIN, din_align)
    if DIN_pad != DIN:
        xin = jnp.pad(xin, ((0, 0), (0, DIN_pad - DIN)))
        w1 = jnp.pad(w1, ((0, DIN_pad - DIN), (0, 0)))

    # Batch tile: big enough to amortize per-grid-step overhead, clamped for small
    # batches (so B=2 pads to 128 rows, not block_batch).  TB is a multiple of 128
    # so it fills MXU rows and bf16 sublane tiles.
    B_pad128 = _round_up(max(B, 1), LANES)
    TB = min(block_batch, B_pad128)
    n_tiles = pl.cdiv(B, TB)
    B_pad = n_tiles * TB
    if B_pad != B:
        xin = jnp.pad(xin, ((0, B_pad - B), (0, 0)))
    TBd = TB // LANES

    flops = 2 * B_pad * (DIN_pad * H1 + H1 * H2 + H2 * H3 + H3)
    bytes_accessed = (
        int(xin.size) * xin.dtype.itemsize
        + sum(int(a.size) * a.dtype.itemsize for a in (w1, w2, w3, w4, b1, b2, b3, b4))
        + B_pad * 4
    )
    cost = pl.CostEstimate(flops=flops, transcendentals=B_pad,
                           bytes_accessed=bytes_accessed)

    const = lambda i: (0, 0)   # weights/biases: same block every grid step (resident)
    out_folded = pl.pallas_call(
        discriminator_kernel,
        out_shape=jax.ShapeDtypeStruct((n_tiles, TBd, LANES), jnp.float32),
        grid=(n_tiles,),
        in_specs=[
            pl.BlockSpec((TB, DIN_pad), lambda i: (i, 0)),       # x tile (pipelined)
            pl.BlockSpec((DIN_pad, H1), const),                  # w1
            pl.BlockSpec((1, H1), const),                        # b1
            pl.BlockSpec((H1, H2), const),                       # w2
            pl.BlockSpec((1, H2), const),                        # b2
            pl.BlockSpec((H2, H3), const),                       # w3
            pl.BlockSpec((1, H3), const),                        # b3
            pl.BlockSpec((1, H3), const),                        # w4 row
            pl.BlockSpec(memory_space=pltpu.MemorySpace.SMEM),   # b4 scalar
        ],
        out_specs=pl.BlockSpec((1, TBd, LANES), lambda i: (i, 0, 0)),
        compiler_params=pltpu.CompilerParams(
            dimension_semantics=("parallel",)),
        cost_estimate=cost,
    )(xin, w1, b1, w2, b2, w3, b3, w4, b4)

    # (n_tiles, TB//128, 128) row-major == batch order; unfold and drop padding.
    return out_folded.reshape(B_pad, 1)[:B]


def reference_forward(params, x, labels):
    """Pure-JAX f32 reference (same bf16 weight values, f32 activations)."""
    labels_emb = params["label_emb"][labels]
    h = jnp.concatenate([x, labels_emb], axis=1)
    for li in range(1, 4):
        h = h @ params[f"w{li}"].astype(jnp.float32) + params[f"b{li}"]
        h = jnp.where(h >= 0, h, 0.2 * h)
    logits = jnp.sum(h * params["w4"].astype(jnp.float32), axis=-1,
                     keepdims=True) + params["b4"]
    return jax.nn.sigmoid(logits)


if __name__ == "__main__":
    # MNIST-consistent small config: 10 classes; d_input_dim chosen so the
    # concatenated feature width (d_input_dim + num_classes) = 128 (lane-aligned).
    d_input_dim = 118
    num_classes = 10
    batch = 2

    key = jax.random.PRNGKey(0)
    k_params, k_x, k_lbl = jax.random.split(key, 3)

    params = init_discriminator_params(k_params, d_input_dim, num_classes)
    x = jax.random.normal(k_x, (batch, d_input_dim), dtype=jnp.float32)
    labels = jax.random.randint(k_lbl, (batch,), 0, num_classes, dtype=jnp.int32)

    out = discriminator_forward(params, x, labels)
    out = jax.block_until_ready(out)

    ref = reference_forward(params, x, labels)
    assert out.shape == (batch, 1)
    # bf16 input/activation casts inside the kernel -> loosened tolerance vs f32 reference.
    assert jnp.allclose(out, ref, atol=2e-2, rtol=2e-2)

    print("KERNEL_OK")
</pallas_src>

<mosaic_0001>
module attributes {stable_mosaic.version = 11 : i64} {
  func.func @discriminator_kernel(%arg0: i32, %arg1: memref<128x128xbf16, #tpu.memory_space<vmem>>, %arg2: memref<128x1024xbf16, #tpu.memory_space<vmem>>, %arg3: memref<1x1024xf32, #tpu.memory_space<vmem>>, %arg4: memref<1024x512xbf16, #tpu.memory_space<vmem>>, %arg5: memref<1x512xf32, #tpu.memory_space<vmem>>, %arg6: memref<512x256xbf16, #tpu.memory_space<vmem>>, %arg7: memref<1x256xf32, #tpu.memory_space<vmem>>, %arg8: memref<1x256xbf16, #tpu.memory_space<vmem>>, %arg9: memref<1x1xf32, #tpu.memory_space<smem>>, %arg10: memref<1x1x128xf32, #tpu.memory_space<vmem>>) attributes {dimension_semantics = [#tpu.dimension_semantics<parallel>], iteration_bounds = array<i64: 1>, scalar_prefetch = 0 : i64, scratch_operands = 0 : i64, tpu.core_type = #tpu.core_type<tc>, window_params = [{transform_indices = @transform_0, window_bounds = array<i64: 128, 128>}, {pipeline_mode = #tpu.pipeline_mode<synchronous>, transform_indices = @transform_1, window_bounds = array<i64: 128, 1024>}, {pipeline_mode = #tpu.pipeline_mode<synchronous>, transform_indices = @transform_2, window_bounds = array<i64: 1, 1024>}, {pipeline_mode = #tpu.pipeline_mode<synchronous>, transform_indices = @transform_3, window_bounds = array<i64: 1024, 512>}, {pipeline_mode = #tpu.pipeline_mode<synchronous>, transform_indices = @transform_4, window_bounds = array<i64: 1, 512>}, {pipeline_mode = #tpu.pipeline_mode<synchronous>, transform_indices = @transform_5, window_bounds = array<i64: 512, 256>}, {pipeline_mode = #tpu.pipeline_mode<synchronous>, transform_indices = @transform_6, window_bounds = array<i64: 1, 256>}, {pipeline_mode = #tpu.pipeline_mode<synchronous>, transform_indices = @transform_7, window_bounds = array<i64: 1, 256>}, {transform_indices = @transform_8, window_bounds = array<i64: 1, 1>}, {transform_indices = @transform_9, window_bounds = array<i64: 1, 1, 128>}]} {
    %c0 = arith.constant 0 : index
    %c0_0 = arith.constant 0 : index
    %0 = vector.load %arg1[%c0, %c0_0] : memref<128x128xbf16, #tpu.memory_space<vmem>>, vector<128x128xbf16>
    %c0_1 = arith.constant 0 : index
    %c0_2 = arith.constant 0 : index
    %1 = vector.load %arg2[%c0_1, %c0_2] : memref<128x1024xbf16, #tpu.memory_space<vmem>>, vector<128x1024xbf16>
    %cst = arith.constant dense<0.000000e+00> : vector<128x1024xf32>
    %2 = tpu.matmul %0, %1, %cst {dimension_numbers = #tpu.dot_dimension_numbers<[1], [0], [0], [1], [0, 0, 1, 1], [], []>} : vector<128x128xbf16>, vector<128x1024xbf16>, vector<128x1024xf32> -> vector<128x1024xf32>
    %c0_3 = arith.constant 0 : index
    %c0_4 = arith.constant 0 : index
    %3 = vector.load %arg3[%c0_3, %c0_4] : memref<1x1024xf32, #tpu.memory_space<vmem>>, vector<1x1024xf32>
    %4 = vector.broadcast %3 : vector<1x1024xf32> to vector<128x1024xf32>
    %5 = arith.addf %2, %4 : vector<128x1024xf32>
    %cst_5 = arith.constant 2.000000e-01 : f32
    %6 = vector.broadcast %cst_5 : f32 to vector<128x1024xf32>
    %7 = arith.mulf %6, %5 : vector<128x1024xf32>
    %8 = arith.maximumf %5, %7 : vector<128x1024xf32>
    %9 = arith.truncf %8 : vector<128x1024xf32> to vector<128x1024xbf16>
    %c0_6 = arith.constant 0 : index
    %c0_7 = arith.constant 0 : index
    %10 = vector.load %arg4[%c0_6, %c0_7] : memref<1024x512xbf16, #tpu.memory_space<vmem>>, vector<1024x512xbf16>
    %cst_8 = arith.constant dense<0.000000e+00> : vector<128x512xf32>
    %11 = tpu.matmul %9, %10, %cst_8 {dimension_numbers = #tpu.dot_dimension_numbers<[1], [0], [0], [1], [0, 0, 1, 1], [], []>} : vector<128x1024xbf16>, vector<1024x512xbf16>, vector<128x512xf32> -> vector<128x512xf32>
    %c0_9 = arith.constant 0 : index
    %c0_10 = arith.constant 0 : index
    %12 = vector.load %arg5[%c0_9, %c0_10] : memref<1x512xf32, #tpu.memory_space<vmem>>, vector<1x512xf32>
    %13 = vector.broadcast %12 : vector<1x512xf32> to vector<128x512xf32>
    %14 = arith.addf %11, %13 : vector<128x512xf32>
    %cst_11 = arith.constant 2.000000e-01 : f32
    %15 = vector.broadcast %cst_11 : f32 to vector<128x512xf32>
    %16 = arith.mulf %15, %14 : vector<128x512xf32>
    %17 = arith.maximumf %14, %16 : vector<128x512xf32>
    %18 = arith.truncf %17 : vector<128x512xf32> to vector<128x512xbf16>
    %c0_12 = arith.constant 0 : index
    %c0_13 = arith.constant 0 : index
    %19 = vector.load %arg6[%c0_12, %c0_13] : memref<512x256xbf16, #tpu.memory_space<vmem>>, vector<512x256xbf16>
    %cst_14 = arith.constant dense<0.000000e+00> : vector<128x256xf32>
    %20 = tpu.matmul %18, %19, %cst_14 {dimension_numbers = #tpu.dot_dimension_numbers<[1], [0], [0], [1], [0, 0, 1, 1], [], []>} : vector<128x512xbf16>, vector<512x256xbf16>, vector<128x256xf32> -> vector<128x256xf32>
    %c0_15 = arith.constant 0 : index
    %c0_16 = arith.constant 0 : index
    %21 = vector.load %arg7[%c0_15, %c0_16] : memref<1x256xf32, #tpu.memory_space<vmem>>, vector<1x256xf32>
    %22 = vector.broadcast %21 : vector<1x256xf32> to vector<128x256xf32>
    %23 = arith.addf %20, %22 : vector<128x256xf32>
    %cst_17 = arith.constant 2.000000e-01 : f32
    %24 = vector.broadcast %cst_17 : f32 to vector<128x256xf32>
    %25 = arith.mulf %24, %23 : vector<128x256xf32>
    %26 = arith.maximumf %23, %25 : vector<128x256xf32>
    %27 = vector.shape_cast %26 : vector<128x256xf32> to vector<1x128x256xf32>
    %c0_18 = arith.constant 0 : index
    %c0_19 = arith.constant 0 : index
    %28 = vector.load %arg8[%c0_18, %c0_19] : memref<1x256xbf16, #tpu.memory_space<vmem>>, vector<1x256xbf16>
    %29 = arith.extf %28 : vector<1x256xbf16> to vector<1x256xf32>
    %30 = vector.shape_cast %29 : vector<1x256xf32> to vector<1x1x256xf32>
    %31 = vector.broadcast %30 : vector<1x1x256xf32> to vector<1x128x256xf32>
    %32 = arith.mulf %27, %31 : vector<1x128x256xf32>
    %cst_20 = arith.constant dense<0.000000e+00> : vector<1x128xf32>
    %33 = vector.multi_reduction <add>, %32, %cst_20 [2] : vector<1x128x256xf32> to vector<1x128xf32>
    %c0_21 = arith.constant 0 : index
    %c0_22 = arith.constant 0 : index
    %34 = memref.load %arg9[%c0_21, %c0_22] : memref<1x1xf32, #tpu.memory_space<smem>>
    %35 = vector.broadcast %34 : f32 to vector<1x128xf32>
    %36 = arith.addf %33, %35 : vector<1x128xf32>
    %37 = arith.negf %36 : vector<1x128xf32>
    %38 = math.exp %37 : vector<1x128xf32>
    %cst_23 = arith.constant 1.000000e+00 : f32
    %39 = vector.broadcast %cst_23 : f32 to vector<1x128xf32>
    %40 = arith.addf %39, %38 : vector<1x128xf32>
    %41 = arith.divf %39, %40 : vector<1x128xf32>
    %42 = vector.shape_cast %41 : vector<1x128xf32> to vector<1x1x128xf32>
    %c0_24 = arith.constant 0 : index
    %c0_25 = arith.constant 0 : index
    %c0_26 = arith.constant 0 : index
    %43 = vector.load %arg10[%c0_24, %c0_25, %c0_26] : memref<1x1x128xf32, #tpu.memory_space<vmem>>, vector<1x1x128xf32>
    tpu.vector_store %arg10[%c0_24, %c0_25, %c0_26], %42 {strides = array<i32>} : memref<1x1x128xf32, #tpu.memory_space<vmem>>, vector<1x1x128xf32>,
    return
  }
  func.func @transform_0(%arg0: i32) -> (i32, i32) {
    %c0_i32 = arith.constant 0 : i32
    %c0_i32_0 = arith.constant 0 : i32
    return %arg0, %c0_i32 : i32, i32
  }
  func.func @transform_1(%arg0: i32) -> (i32, i32) {
    %c0_i32 = arith.constant 0 : i32
    %c0_i32_0 = arith.constant 0 : i32
    %c0_i32_1 = arith.constant 0 : i32
    return %c0_i32, %c0_i32_0 : i32, i32
  }
  func.func @transform_2(%arg0: i32) -> (i32, i32) {
    %c0_i32 = arith.constant 0 : i32
    %c0_i32_0 = arith.constant 0 : i32
    %c0_i32_1 = arith.constant 0 : i32
    return %c0_i32, %c0_i32_0 : i32, i32
  }
  func.func @transform_3(%arg0: i32) -> (i32, i32) {
    %c0_i32 = arith.constant 0 : i32
    %c0_i32_0 = arith.constant 0 : i32
    %c0_i32_1 = arith.constant 0 : i32
    return %c0_i32, %c0_i32_0 : i32, i32
  }
  func.func @transform_4(%arg0: i32) -> (i32, i32) {
    %c0_i32 = arith.constant 0 : i32
    %c0_i32_0 = arith.constant 0 : i32
    %c0_i32_1 = arith.constant 0 : i32
    return %c0_i32, %c0_i32_0 : i32, i32
  }
  func.func @transform_5(%arg0: i32) -> (i32, i32) {
    %c0_i32 = arith.constant 0 : i32
    %c0_i32_0 = arith.constant 0 : i32
    %c0_i32_1 = arith.constant 0 : i32
    return %c0_i32, %c0_i32_0 : i32, i32
  }
  func.func @transform_6(%arg0: i32) -> (i32, i32) {
    %c0_i32 = arith.constant 0 : i32
    %c0_i32_0 = arith.constant 0 : i32
    %c0_i32_1 = arith.constant 0 : i32
    return %c0_i32, %c0_i32_0 : i32, i32
  }
  func.func @transform_7(%arg0: i32) -> (i32, i32) {
    %c0_i32 = arith.constant 0 : i32
    %c0_i32_0 = arith.constant 0 : i32
    %c0_i32_1 = arith.constant 0 : i32
    return %c0_i32, %c0_i32_0 : i32, i32
  }
  func.func @transform_8(%arg0: i32) -> (i32, i32) {
    %c0_i32 = arith.constant 0 : i32
    %c0_i32_0 = arith.constant 0 : i32
    %c0_i32_1 = arith.constant 0 : i32
    return %c0_i32, %c0_i32_0 : i32, i32
  }
  func.func @transform_9(%arg0: i32) -> (i32, i32, i32) {
    %c0_i32 = arith.constant 0 : i32
    %c0_i32_0 = arith.constant 0 : i32
    %c0_i32_1 = arith.constant 0 : i32
    return %arg0, %c0_i32, %c0_i32_0 : i32, i32, i32
  }
}

</mosaic_0001>

<llo_original>
// kernel: tpu_custom_call.1
$region0: #{tpu_custom_call.1}
  #allocation0 [shape = 'u32[]', space=smem, size = 0x4, offset = 0x4, fixed_abs, tag = 'smem constant byte address 0x4 - core index']
  #allocation1 [shape = 'u32[144,128]{1,0:T(1,128)}', space=vmem, size = 0x12000, scoped, tag = 'internal scratch']
  #allocation2 [shape = 'f32[1,1]{1,0:T(1,128)S(6)}', space=smem, size = 0x200, scoped, tag = 'scoped memory for tpu_custom_call.1']
  %s0 = inlined_call_operand.hbm [shape: bf16[128,128], index: 0, kind: input, shape index: {}]
  %s1 = inlined_call_operand.hbm [shape: bf16[128,1024], index: 1, kind: input, shape index: {}]
  %s2 = inlined_call_operand.vmem [shape: f32[1,1024], index: 2, kind: input, shape index: {}]
  %s3 = inlined_call_operand.hbm [shape: bf16[1024,512], index: 3, kind: input, shape index: {}]
  %s4 = inlined_call_operand.vmem [shape: f32[1,512], index: 4, kind: input, shape index: {}]
  %s5 = inlined_call_operand.hbm [shape: bf16[512,256], index: 5, kind: input, shape index: {}]
  %s6 = inlined_call_operand.vmem [shape: f32[1,256], index: 6, kind: input, shape index: {}]
  %s7 = inlined_call_operand.vmem [shape: bf16[1,256], index: 7, kind: input, shape index: {}]
  %s8 = inlined_call_operand.<no memory space> [shape: f32[1,1], index: 8, kind: input, shape index: {}]
  %s9 = inlined_call_operand.hbm [shape: f32[1,1,128], index: 9, kind: output, shape index: {}]
  %s10 = sld [smem:[#allocation0]]
  $region62: #{tpu_custom_call.1} parent=0
    _
  %s12 = ssub.s32 1, %s10
  %s13 = scalar_select 0, %s12, %s10
  %14 = sst [smem:[#allocation2]] %s8
  $region1: #{tpu_custom_call.1} parent=0
    #allocation3 [shape = 'u8[32768]{0}', space=vmem, size = 0x8000, scoped, tag = 'input window, operand 0, single buffered']
    #allocation4 [shape = 's32[1]{0}', space=sflag, size = 0x4, scoped, tag = 'scoped memory for tpu_custom_call.1']
    #allocation5 [shape = 's32[1]{0}', space=sflag, size = 0x4, scoped, tag = 'scoped memory for tpu_custom_call.1']
    #allocation6 [shape = 'u8[262144]{0}', space=vmem, size = 0x40000, scoped, tag = 'input window, operand 1, single buffered']
    #allocation7 [shape = 's32[1]{0}', space=sflag, size = 0x4, scoped, tag = 'scoped memory for tpu_custom_call.1']
    #allocation8 [shape = 'u8[1048576]{0}', space=vmem, size = 0x100000, scoped, tag = 'input window, operand 3, single buffered']
    #allocation9 [shape = 'u8[262144]{0}', space=vmem, size = 0x40000, scoped, tag = 'input window, operand 5, single buffered']
    #allocation10 [shape = 's32[1]{0}', space=sflag, size = 0x4, scoped, tag = 'scoped memory for tpu_custom_call.1']
    #allocation11 [shape = 'u8[512]{0}', space=vmem, size = 0x400, scoped, tag = 'output window, operand 0, single buffered']
    %15 = vsyncpa [#allocation4], 0
    %16 = vsyncpa [#allocation7], 0
    %17 = vsyncpa [#allocation10], 0
    %18 = vsyncpa [#allocation5], 0
    // Predicated region
    $region2: #{tpu_custom_call.1} parent=1 // pred_check
      _
    $region3: #{tpu_custom_call.1} parent=1 // pred_check_branch
      %20 = sbr.rel (0) target = $region5
    $region4: #{tpu_custom_call.1} parent=1 // pred_region
      %s22 = ssub.s32 1024, 1024
      %23 = vsyncadd [#allocation4], %s22
      %s24 = sshll.u32 [#allocation3], 4
      %s25 = int_to_ptr.vmem [resolvable:$true] %s24
      %30 = dma.hbm_to_vmem [thread:$0]  %s0, 1024, %s25, [#allocation4], 64, 64, 4
    $region5: #{tpu_custom_call.1} parent=1 // pred_fallthru
      _
    // Predicated region
    $region6: #{tpu_custom_call.1} parent=1 // pred_check
      _
    $region7: #{tpu_custom_call.1} parent=1 // pred_check_branch
      %32 = sbr.rel (0) target = $region9
    $region8: #{tpu_custom_call.1} parent=1 // pred_region
      %s34 = ssub.s32 8192, 8192
      %35 = vsyncadd [#allocation7], %s34
      %s36 = sshll.u32 [#allocation6], 4
      %s37 = int_to_ptr.vmem [resolvable:$true] %s36
      %42 = dma.hbm_to_vmem [thread:$0]  %s1, 8192, %s37, [#allocation7], 512, 512, 32
    $region9: #{tpu_custom_call.1} parent=1 // pred_fallthru
      _
    // Predicated region
    $region10: #{tpu_custom_call.1} parent=1 // pred_check
      _
    $region11: #{tpu_custom_call.1} parent=1 // pred_check_branch
      %44 = sbr.rel (0) target = $region13
    $region12: #{tpu_custom_call.1} parent=1 // pred_region
      _
    $region13: #{tpu_custom_call.1} parent=1 // pred_fallthru
      _
    // Predicated region
    $region14: #{tpu_custom_call.1} parent=1 // pred_check
      _
    $region15: #{tpu_custom_call.1} parent=1 // pred_check_branch
      %46 = sbr.rel (0) target = $region17
    $region16: #{tpu_custom_call.1} parent=1 // pred_region
      %s48 = ssub.s32 32768, 32768
      %49 = vsyncadd [#allocation7], %s48
      %s50 = sshll.u32 [#allocation8], 4
      %s51 = int_to_ptr.vmem [resolvable:$true] %s50
      %56 = dma.hbm_to_vmem [thread:$0]  %s3, 32768, %s51, [#allocation7], 256, 256, 16
    $region17: #{tpu_custom_call.1} parent=1 // pred_fallthru
      _
    // Predicated region
    $region18: #{tpu_custom_call.1} parent=1 // pred_check
      _
    $region19: #{tpu_custom_call.1} parent=1 // pred_check_branch
      %58 = sbr.rel (0) target = $region21
    $region20: #{tpu_custom_call.1} parent=1 // pred_region
      _
    $region21: #{tpu_custom_call.1} parent=1 // pred_fallthru
      _
    // Predicated region
    $region22: #{tpu_custom_call.1} parent=1 // pred_check
      _
    $region23: #{tpu_custom_call.1} parent=1 // pred_check_branch
      %60 = sbr.rel (0) target = $region25
    $region24: #{tpu_custom_call.1} parent=1 // pred_region
      %s62 = ssub.s32 8192, 8192
      %63 = vsyncadd [#allocation10], %s62
      %s64 = sshll.u32 [#allocation9], 4
      %s65 = int_to_ptr.vmem [resolvable:$true] %s64
      %70 = dma.hbm_to_vmem [thread:$0]  %s5, 8192, %s65, [#allocation10], 128, 128, 8
    $region25: #{tpu_custom_call.1} parent=1 // pred_fallthru
      _
    // Predicated region
    $region26: #{tpu_custom_call.1} parent=1 // pred_check
      _
    $region27: #{tpu_custom_call.1} parent=1 // pred_check_branch
      %72 = sbr.rel (0) target = $region29
    $region28: #{tpu_custom_call.1} parent=1 // pred_region
      _
    $region29: #{tpu_custom_call.1} parent=1 // pred_fallthru
      _
    // Predicated region
    $region30: #{tpu_custom_call.1} parent=1 // pred_check
      _
    $region31: #{tpu_custom_call.1} parent=1 // pred_check_branch
      %74 = sbr.rel (0) target = $region33
    $region32: #{tpu_custom_call.1} parent=1 // pred_region
      _
    $region33: #{tpu_custom_call.1} parent=1 // pred_fallthru
      _
    // Predicated region
    $region34: #{tpu_custom_call.1} parent=1 // pred_check
      _
    $region35: #{tpu_custom_call.1} parent=1 // pred_check_branch
      %76 = sbr.rel (0) target = $region37
    $region36: #{tpu_custom_call.1} parent=1 // pred_region
      _
    $region37: #{tpu_custom_call.1} parent=1 // pred_fallthru
      _
    // Predicated region
    $region38: #{tpu_custom_call.1} parent=1 // pred_check
      _
    $region39: #{tpu_custom_call.1} parent=1 // pred_check_branch
      %78 = sbr.rel (0) target = $region41
    $region40: #{tpu_custom_call.1} parent=1 // pred_region
      %79 = dma.done [#allocation4], 1024
    $region41: #{tpu_custom_call.1} parent=1 // pred_fallthru
      _
    // Predicated region
    $region42: #{tpu_custom_call.1} parent=1 // pred_check
      _
    $region43: #{tpu_custom_call.1} parent=1 // pred_check_branch
      %81 = sbr.rel (0) target = $region45
    $region44: #{tpu_custom_call.1} parent=1 // pred_region
      %82 = dma.done [#allocation7], 8192
    $region45: #{tpu_custom_call.1} parent=1 // pred_fallthru
      _
    // Predicated region
    $region46: #{tpu_custom_call.1} parent=1 // pred_check
      _
    $region47: #{tpu_custom_call.1} parent=1 // pred_check_branch
      %84 = sbr.rel (0) target = $region49
    $region48: #{tpu_custom_call.1} parent=1 // pred_region
      %85 = dma.done [#allocation7], 32768
    $region49: #{tpu_custom_call.1} parent=1 // pred_fallthru
      _
    // Predicated region
    $region50: #{tpu_custom_call.1} parent=1 // pred_check
      _
    $region51: #{tpu_custom_call.1} parent=1 // pred_check_branch
      %87 = sbr.rel (0) target = $region53
    $region52: #{tpu_custom_call.1} parent=1 // pred_region
      %88 = dma.done [#allocation10], 8192
    $region53: #{tpu_custom_call.1} parent=1 // pred_fallthru
      _
    %v90 = vld [vmem:[#allocation3] sm:$0xf]
    %v91 = vld [vmem:[#allocation3 + $0x4] sm:$0xf]
    %v92 = vld [vmem:[#allocation3 + $0x8] sm:$0xf]
    %v93 = vld [vmem:[#allocation3 + $0xc] sm:$0xf]
    %v94 = vld [vmem:[#allocation3 + $0x10] sm:$0xf]
    %v95 = vld [vmem:[#allocation3 + $0x14] sm:$0xf]
    %v96 = vld [vmem:[#allocation3 + $0x18] sm:$0xf]
    %v97 = vld [vmem:[#allocation3 + $0x1c] sm:$0xf]
    %v98 = vld [vmem:[#allocation3 + $0x20] sm:$0xf]
    %v99 = vld [vmem:[#allocation3 + $0x24] sm:$0xf]
    %v100 = vld [vmem:[#allocation3 + $0x28] sm:$0xf]
    %v101 = vld [vmem:[#allocation3 + $0x2c] sm:$0xf]
    %v102 = vld [vmem:[#allocation3 + $0x30] sm:$0xf]
    %v103 = vld [vmem:[#allocation3 + $0x34] sm:$0xf]
    %v104 = vld [vmem:[#allocation3 + $0x38] sm:$0xf]
    %v105 = vld [vmem:[#allocation3 + $0x3c] sm:$0xf]
    %v106 = vld [vmem:[#allocation6] sm:$0xff]
    %v107 = vld [vmem:[#allocation6 + $0x8] sm:$0xff]
    %v108 = vld [vmem:[#allocation6 + $0x10] sm:$0xff]
    %v109 = vld [vmem:[#allocation6 + $0x18] sm:$0xff]
    %v110 = vld [vmem:[#allocation6 + $0x20] sm:$0xff]
    %v111 = vld [vmem:[#allocation6 + $0x28] sm:$0xff]
    %v112 = vld [vmem:[#allocation6 + $0x30] sm:$0xff]
    %v113 = vld [vmem:[#allocation6 + $0x38] sm:$0xff]
    %v114 = vld [vmem:[#allocation6 + $0x40] sm:$0xff]
    %v115 = vld [vmem:[#allocation6 + $0x48] sm:$0xff]
    %v116 = vld [vmem:[#allocation6 + $0x50] sm:$0xff]
    %v117 = vld [vmem:[#allocation6 + $0x58] sm:$0xff]
    %v118 = vld [vmem:[#allocation6 + $0x60] sm:$0xff]
    %v119 = vld [vmem:[#allocation6 + $0x68] sm:$0xff]
    %v120 = vld [vmem:[#allocation6 + $0x70] sm:$0xff]
    %v121 = vld [vmem:[#allocation6 + $0x78] sm:$0xff]
    %v122 = vld [vmem:[#allocation6 + $0x80] sm:$0xff]
    %v123 = vld [vmem:[#allocation6 + $0x88] sm:$0xff]
    %v124 = vld [vmem:[#allocation6 + $0x90] sm:$0xff]
    %v125 = vld [vmem:[#allocation6 + $0x98] sm:$0xff]
    %v126 = vld [vmem:[#allocation6 + $0xa0] sm:$0xff]
    %v127 = vld [vmem:[#allocation6 + $0xa8] sm:$0xff]
    %v128 = vld [vmem:[#allocation6 + $0xb0] sm:$0xff]
    %v129 = vld [vmem:[#allocation6 + $0xb8] sm:$0xff]
    %v130 = vld [vmem:[#allocation6 + $0xc0] sm:$0xff]
    %v131 = vld [vmem:[#allocation6 + $0xc8] sm:$0xff]
    %v132 = vld [vmem:[#allocation6 + $0xd0] sm:$0xff]
    %v133 = vld [vmem:[#allocation6 + $0xd8] sm:$0xff]
    %v134 = vld [vmem:[#allocation6 + $0xe0] sm:$0xff]
    %v135 = vld [vmem:[#allocation6 + $0xe8] sm:$0xff]
    %v136 = vld [vmem:[#allocation6 + $0xf0] sm:$0xff]
    %v137 = vld [vmem:[#allocation6 + $0xf8] sm:$0xff]
    %v138 = vld [vmem:[#allocation6 + $0x100] sm:$0xff]
    %v139 = vld [vmem:[#allocation6 + $0x108] sm:$0xff]
    %v140 = vld [vmem:[#allocation6 + $0x110] sm:$0xff]
    %v141 = vld [vmem:[#allocation6 + $0x118] sm:$0xff]
    %v142 = vld [vmem:[#allocation6 + $0x120] sm:$0xff]
    %v143 = vld [vmem:[#allocation6 + $0x128] sm:$0xff]
    %v144 = vld [vmem:[#allocation6 + $0x130] sm:$0xff]
    %v145 = vld [vmem:[#allocation6 + $0x138] sm:$0xff]
    %v146 = vld [vmem:[#allocation6 + $0x140] sm:$0xff]
    %v147 = vld [vmem:[#allocation6 + $0x148] sm:$0xff]
    %v148 = vld [vmem:[#allocation6 + $0x150] sm:$0xff]
    %v149 = vld [vmem:[#allocation6 + $0x158] sm:$0xff]
    %v150 = vld [vmem:[#allocation6 + $0x160] sm:$0xff]
    %v151 = vld [vmem:[#allocation6 + $0x168] sm:$0xff]
    %v152 = vld [vmem:[#allocation6 + $0x170] sm:$0xff]
    %v153 = vld [vmem:[#allocation6 + $0x178] sm:$0xff]
    %v154 = vld [vmem:[#allocation6 + $0x180] sm:$0xff]
    %v155 = vld [vmem:[#allocation6 + $0x188] sm:$0xff]
    %v156 = vld [vmem:[#allocation6 + $0x190] sm:$0xff]
    %v157 = vld [vmem:[#allocation6 + $0x198] sm:$0xff]
    %v158 = vld [vmem:[#allocation6 + $0x1a0] sm:$0xff]
    %v159 = vld [vmem:[#allocation6 + $0x1a8] sm:$0xff]
    %v160 = vld [vmem:[#allocation6 + $0x1b0] sm:$0xff]
    %v161 = vld [vmem:[#allocation6 + $0x1b8] sm:$0xff]
    %v162 = vld [vmem:[#allocation6 + $0x1c0] sm:$0xff]
    %v163 = vld [vmem:[#allocation6 + $0x1c8] sm:$0xff]
    %v164 = vld [vmem:[#allocation6 + $0x1d0] sm:$0xff]
    %v165 = vld [vmem:[#allocation6 + $0x1d8] sm:$0xff]
    %v166 = vld [vmem:[#allocation6 + $0x1e0] sm:$0xff]
    %v167 = vld [vmem:[#allocation6 + $0x1e8] sm:$0xff]
    %v168 = vld [vmem:[#allocation6 + $0x1f0] sm:$0xff]
    %v169 = vld [vmem:[#allocation6 + $0x1f8] sm:$0xff]
    %v170 = vld [vmem:[%s2] sm:$0xff]
    %v172 = vlaneseq
    %v173 = vshrl.u32 %v172, 7
    %v174 = vsub.s32 0, %v173
    %v175 = vrot.slane %v170, %v174
    %v176 = vlaneseq
    %v177 = vshrl.u32 %v176, 7
    %v178 = vsub.s32 1, %v177
    %v179 = vrot.slane %v170, %v178
    %v180 = vlaneseq
    %v181 = vshrl.u32 %v180, 7
    %v182 = vsub.s32 2, %v181
    %v183 = vrot.slane %v170, %v182
    %v184 = vlaneseq
    %v185 = vshrl.u32 %v184, 7
    %v186 = vsub.s32 3, %v185
    %v187 = vrot.slane %v170, %v186
    %v188 = vlaneseq
    %v189 = vshrl.u32 %v188, 7
    %v190 = vsub.s32 4, %v189
    %v191 = vrot.slane %v170, %v190
    %v192 = vlaneseq
    %v193 = vshrl.u32 %v192, 7
    %v194 = vsub.s32 5, %v193
    %v195 = vrot.slane %v170, %v194
    %v196 = vlaneseq
    %v197 = vshrl.u32 %v196, 7
    %v198 = vsub.s32 6, %v197
    %v199 = vrot.slane %v170, %v198
    %v200 = vlaneseq
    %v201 = vshrl.u32 %v200, 7
    %v202 = vsub.s32 7, %v201
    %v203 = vrot.slane %v170, %v202
    %v228 = vunpack.c.l.b16 %v90
    %v229 = vunpack.c.l.b16 %v91
    %v230 = vunpack.c.l.b16 %v92
    %v231 = vunpack.c.l.b16 %v93
    %v232 = vunpack.c.l.b16 %v94
    %v233 = vunpack.c.l.b16 %v95
    %v234 = vunpack.c.l.b16 %v96
    %v235 = vunpack.c.l.b16 %v97
    %v236 = vunpack.c.l.b16 %v98
    %v237 = vunpack.c.l.b16 %v99
    %v238 = vunpack.c.l.b16 %v100
    %v239 = vunpack.c.l.b16 %v101
    %v240 = vunpack.c.l.b16 %v102
    %v241 = vunpack.c.l.b16 %v103
    %v242 = vunpack.c.l.b16 %v104
    %v243 = vunpack.c.l.b16 %v105
    %v244 = vpack.c.b16 %v229, %v228
    %v245 = vpack.c.b16 %v231, %v230
    %v246 = vpack.c.b16 %v233, %v232
    %v247 = vpack.c.b16 %v235, %v234
    %v248 = vpack.c.b16 %v237, %v236
    %v249 = vpack.c.b16 %v239, %v238
    %v250 = vpack.c.b16 %v241, %v240
    %v251 = vpack.c.b16 %v243, %v242
    %v324 = vunpack.c.l.b16 %v106
    %v325 = vunpack.c.h.b16 %v106
    %v326 = vunpack.c.l.b16 %v107
    %v327 = vunpack.c.h.b16 %v107
    %v328 = vunpack.c.l.b16 %v108
    %v329 = vunpack.c.h.b16 %v108
    %v330 = vunpack.c.l.b16 %v109
    %v331 = vunpack.c.h.b16 %v109
    %v332 = vunpack.c.l.b16 %v110
    %v333 = vunpack.c.h.b16 %v110
    %v334 = vunpack.c.l.b16 %v111
    %v335 = vunpack.c.h.b16 %v111
    %v336 = vunpack.c.l.b16 %v112
    %v337 = vunpack.c.h.b16 %v112
    %v338 = vunpack.c.l.b16 %v113
    %v339 = vunpack.c.h.b16 %v113
    %v340 = vunpack.c.l.b16 %v114
    %v341 = vunpack.c.h.b16 %v114
    %v342 = vunpack.c.l.b16 %v115
    %v343 = vunpack.c.h.b16 %v115
    %v344 = vunpack.c.l.b16 %v116
    %v345 = vunpack.c.h.b16 %v116
    %v346 = vunpack.c.l.b16 %v117
    %v347 = vunpack.c.h.b16 %v117
    %v348 = vunpack.c.l.b16 %v118
    %v349 = vunpack.c.h.b16 %v118
    %v350 = vunpack.c.l.b16 %v119
    %v351 = vunpack.c.h.b16 %v119
    %v352 = vunpack.c.l.b16 %v120
    %v353 = vunpack.c.h.b16 %v120
    %v354 = vunpack.c.l.b16 %v121
    %v355 = vunpack.c.h.b16 %v121
    %v356 = vunpack.c.l.b16 %v122
    %v357 = vunpack.c.h.b16 %v122
    %v358 = vunpack.c.l.b16 %v123
    %v359 = vunpack.c.h.b16 %v123
    %v360 = vunpack.c.l.b16 %v124
    %v361 = vunpack.c.h.b16 %v124
    %v362 = vunpack.c.l.b16 %v125
    %v363 = vunpack.c.h.b16 %v125
    %v364 = vunpack.c.l.b16 %v126
    %v365 = vunpack.c.h.b16 %v126
    %v366 = vunpack.c.l.b16 %v127
    %v367 = vunpack.c.h.b16 %v127
    %v368 = vunpack.c.l.b16 %v128
    %v369 = vunpack.c.h.b16 %v128
    %v370 = vunpack.c.l.b16 %v129
    %v371 = vunpack.c.h.b16 %v129
    %v372 = vunpack.c.l.b16 %v130
    %v373 = vunpack.c.h.b16 %v130
    %v374 = vunpack.c.l.b16 %v131
    %v375 = vunpack.c.h.b16 %v131
    %v376 = vunpack.c.l.b16 %v132
    %v377 = vunpack.c.h.b16 %v132
    %v378 = vunpack.c.l.b16 %v133
    %v379 = vunpack.c.h.b16 %v133
    %v380 = vunpack.c.l.b16 %v134
    %v381 = vunpack.c.h.b16 %v134
    %v382 = vunpack.c.l.b16 %v135
    %v383 = vunpack.c.h.b16 %v135
    %v384 = vunpack.c.l.b16 %v136
    %v385 = vunpack.c.h.b16 %v136
    %v386 = vunpack.c.l.b16 %v137
    %v387 = vunpack.c.h.b16 %v137
    %v388 = vunpack.c.l.b16 %v138
    %v389 = vunpack.c.h.b16 %v138
    %v390 = vunpack.c.l.b16 %v139
    %v391 = vunpack.c.h.b16 %v139
    %v392 = vunpack.c.l.b16 %v140
    %v393 = vunpack.c.h.b16 %v140
    %v394 = vunpack.c.l.b16 %v141
    %v395 = vunpack.c.h.b16 %v141
    %v396 = vunpack.c.l.b16 %v142
    %v397 = vunpack.c.h.b16 %v142
    %v398 = vunpack.c.l.b16 %v143
    %v399 = vunpack.c.h.b16 %v143
    %v400 = vunpack.c.l.b16 %v144
    %v401 = vunpack.c.h.b16 %v144
    %v402 = vunpack.c.l.b16 %v145
    %v403 = vunpack.c.h.b16 %v145
    %v404 = vunpack.c.l.b16 %v146
    %v405 = vunpack.c.h.b16 %v146
    %v406 = vunpack.c.l.b16 %v147
    %v407 = vunpack.c.h.b16 %v147
    %v408 = vunpack.c.l.b16 %v148
    %v409 = vunpack.c.h.b16 %v148
    %v410 = vunpack.c.l.b16 %v149
    %v411 = vunpack.c.h.b16 %v149
    %v412 = vunpack.c.l.b16 %v150
    %v413 = vunpack.c.h.b16 %v150
    %v414 = vunpack.c.l.b16 %v151
    %v415 = vunpack.c.h.b16 %v151
    %v416 = vunpack.c.l.b16 %v152
    %v417 = vunpack.c.h.b16 %v152
    %v418 = vunpack.c.l.b16 %v153
    %v419 = vunpack.c.h.b16 %v153
    %v420 = vunpack.c.l.b16 %v154
    %v421 = vunpack.c.h.b16 %v154
    %v422 = vunpack.c.l.b16 %v155
    %v423 = vunpack.c.h.b16 %v155
    %v424 = vunpack.c.l.b16 %v156
    %v425 = vunpack.c.h.b16 %v156
    %v426 = vunpack.c.l.b16 %v157
    %v427 = vunpack.c.h.b16 %v157
    %v428 = vunpack.c.l.b16 %v158
    %v429 = vunpack.c.h.b16 %v158
    %v430 = vunpack.c.l.b16 %v159
    %v431 = vunpack.c.h.b16 %v159
    %v432 = vunpack.c.l.b16 %v160
    %v433 = vunpack.c.h.b16 %v160
    %v434 = vunpack.c.l.b16 %v161
    %v435 = vunpack.c.h.b16 %v161
    %v436 = vunpack.c.l.b16 %v162
    %v437 = vunpack.c.h.b16 %v162
    %v438 = vunpack.c.l.b16 %v163
    %v439 = vunpack.c.h.b16 %v163
    %v440 = vunpack.c.l.b16 %v164
    %v441 = vunpack.c.h.b16 %v164
    %v442 = vunpack.c.l.b16 %v165
    %v443 = vunpack.c.h.b16 %v165
    %v444 = vunpack.c.l.b16 %v166
    %v445 = vunpack.c.h.b16 %v166
    %v446 = vunpack.c.l.b16 %v167
    %v447 = vunpack.c.h.b16 %v167
    %v448 = vunpack.c.l.b16 %v168
    %v449 = vunpack.c.h.b16 %v168
    %v450 = vunpack.c.l.b16 %v169
    %v451 = vunpack.c.h.b16 %v169
    %v452 = vpack.c.b16 %v332, %v324
    %v453 = vpack.c.b16 %v333, %v325
    %v454 = vpack.c.b16 %v334, %v326
    %v455 = vpack.c.b16 %v335, %v327
    %v456 = vpack.c.b16 %v336, %v328
    %v457 = vpack.c.b16 %v337, %v329
    %v458 = vpack.c.b16 %v338, %v330
    %v459 = vpack.c.b16 %v339, %v331
    %v460 = vpack.c.b16 %v348, %v340
    %v461 = vpack.c.b16 %v349, %v341
    %v462 = vpack.c.b16 %v350, %v342
    %v463 = vpack.c.b16 %v351, %v343
    %v464 = vpack.c.b16 %v352, %v344
    %v465 = vpack.c.b16 %v353, %v345
    %v466 = vpack.c.b16 %v354, %v346
    %v467 = vpack.c.b16 %v355, %v347
    %v468 = vpack.c.b16 %v364, %v356
    %v469 = vpack.c.b16 %v365, %v357
    %v470 = vpack.c.b16 %v366, %v358
    %v471 = vpack.c.b16 %v367, %v359
    %v472 = vpack.c.b16 %v368, %v360
    %v473 = vpack.c.b16 %v369, %v361
    %v474 = vpack.c.b16 %v370, %v362
    %v475 = vpack.c.b16 %v371, %v363
    %v476 = vpack.c.b16 %v380, %v372
    %v477 = vpack.c.b16 %v381, %v373
    %v478 = vpack.c.b16 %v382, %v374
    %v479 = vpack.c.b16 %v383, %v375
    %v480 = vpack.c.b16 %v384, %v376
    %v481 = vpack.c.b16 %v385, %v377
    %v482 = vpack.c.b16 %v386, %v378
    %v483 = vpack.c.b16 %v387, %v379
    %v484 = vpack.c.b16 %v396, %v388
    %v485 = vpack.c.b16 %v397, %v389
    %v486 = vpack.c.b16 %v398, %v390
    %v487 = vpack.c.b16 %v399, %v391
    %v488 = vpack.c.b16 %v400, %v392
    %v489 = vpack.c.b16 %v401, %v393
    %v490 = vpack.c.b16 %v402, %v394
    %v491 = vpack.c.b16 %v403, %v395
    %v492 = vpack.c.b16 %v412, %v404
    %v493 = vpack.c.b16 %v413, %v405
    %v494 = vpack.c.b16 %v414, %v406
    %v495 = vpack.c.b16 %v415, %v407
    %v496 = vpack.c.b16 %v416, %v408
    %v497 = vpack.c.b16 %v417, %v409
    %v498 = vpack.c.b16 %v418, %v410
    %v499 = vpack.c.b16 %v419, %v411
    %v500 = vpack.c.b16 %v428, %v420
    %v501 = vpack.c.b16 %v429, %v421
    %v502 = vpack.c.b16 %v430, %v422
    %v503 = vpack.c.b16 %v431, %v423
    %v504 = vpack.c.b16 %v432, %v424
    %v505 = vpack.c.b16 %v433, %v425
    %v506 = vpack.c.b16 %v434, %v426
    %v507 = vpack.c.b16 %v435, %v427
    %v508 = vpack.c.b16 %v444, %v436
    %v509 = vpack.c.b16 %v445, %v437
    %v510 = vpack.c.b16 %v446, %v438
    %v511 = vpack.c.b16 %v447, %v439
    %v512 = vpack.c.b16 %v448, %v440
    %v513 = vpack.c.b16 %v449, %v441
    %v514 = vpack.c.b16 %v450, %v442
    %v515 = vpack.c.b16 %v451, %v443
    %580 = vmatprep.subr.bf16.mxu0 %v453
    %581 = vmatpush1.bf16.msra.mxu0 %v452
    %582 = vmatprep.subr.bf16.mxu0 %v461
    %583 = vmatpush1.bf16.msra.mxu0 %v460
    %584 = vmatprep.subr.bf16.mxu0 %v469
    %585 = vmatpush1.bf16.msra.mxu0 %v468
    %586 = vmatprep.subr.bf16.mxu0 %v477
    %587 = vmatpush1.bf16.msra.mxu0 %v476
    %588 = vmatprep.subr.bf16.mxu0 %v485
    %589 = vmatpush1.bf16.msra.mxu0 %v484
    %590 = vmatprep.subr.bf16.mxu0 %v493
    %591 = vmatpush1.bf16.msra.mxu0 %v492
    %592 = vmatprep.subr.bf16.mxu0 %v501
    %593 = vmatpush1.bf16.msra.mxu0 %v500
    %594 = vmatprep.subr.bf16.mxu0 %v509
    %595 = vmatpush1.bf16.msra.mxu0 %v508
    %596 = vmatprep.subr.bf16.mxu0 0
    %597 = vmatpush1.bf16.msra.mxu0 0
    %598 = vmatprep.subr.bf16.mxu0 0
    %599 = vmatpush1.bf16.msra.mxu0 0
    %600 = vmatprep.subr.bf16.mxu0 0
    %601 = vmatpush1.bf16.msra.mxu0 0
    %602 = vmatprep.subr.bf16.mxu0 0
    %603 = vmatpush1.bf16.msra.mxu0 0
    %604 = vmatprep.subr.bf16.mxu0 0
    %605 = vmatpush1.bf16.msra.mxu0 0
    %606 = vmatprep.subr.bf16.mxu0 0
    %607 = vmatpush1.bf16.msra.mxu0 0
    %608 = vmatprep.subr.bf16.mxu0 0
    %609 = vmatpush1.bf16.msra.mxu0 0
    %610 = vmatprep.subr.bf16.mxu0 0
    %611 = vmatpush1.bf16.msra.mxu0 0
    %612 = vmatprep.mubr.bf16.mxu0 0
    %613 = vmatmul.mubr.bf16.gmra.mrb[0].mxu0 %v244
    %v614 = vpop.f32.mrb[0].mxu0
    %v615 = vadd.f32 %v175, %v614
    %v616 = vpop.f32.mrb[0].mxu0
    %v617 = vadd.f32 %v179, %v616
    %v618 = vpop.f32.mrb[0].mxu0
    %v619 = vadd.f32 %v175, %v618
    %v620 = vpop.f32.mrb[0].mxu0
    %v621 = vadd.f32 %v179, %v620
    %622 = vmatprep.mubr.bf16.mxu0 0
    %623 = vmatmul.mubr.bf16.gmra.mrb[0].mxu0 %v245
    %v624 = vpop.f32.mrb[0].mxu0
    %v625 = vadd.f32 %v175, %v624
    %v626 = vpop.f32.mrb[0].mxu0
    %v627 = vadd.f32 %v179, %v626
    %v628 = vpop.f32.mrb[0].mxu0
    %v629 = vadd.f32 %v175, %v628
    %v630 = vpop.f32.mrb[0].mxu0
    %v631 = vadd.f32 %v179, %v630
    %632 = vmatprep.mubr.bf16.mxu0 0
    %633 = vmatmul.mubr.bf16.gmra.mrb[0].mxu0 %v246
    %v634 = vpop.f32.mrb[0].mxu0
    %v635 = vadd.f32 %v175, %v634
    %v636 = vpop.f32.mrb[0].mxu0
    %v637 = vadd.f32 %v179, %v636
    %v638 = vpop.f32.mrb[0].mxu0
    %v639 = vadd.f32 %v175, %v638
    %v640 = vpop.f32.mrb[0].mxu0
    %v641 = vadd.f32 %v179, %v640
    %642 = vmatprep.mubr.bf16.mxu0 0
    %643 = vmatmul.mubr.bf16.gmra.mrb[0].mxu0 %v247
    %v644 = vpop.f32.mrb[0].mxu0
    %v645 = vadd.f32 %v175, %v644
    %v646 = vpop.f32.mrb[0].mxu0
    %v647 = vadd.f32 %v179, %v646
    %v648 = vpop.f32.mrb[0].mxu0
    %v649 = vadd.f32 %v175, %v648
    %v650 = vpop.f32.mrb[0].mxu0
    %v651 = vadd.f32 %v179, %v650
    %652 = vmatprep.mubr.bf16.mxu0 0
    %653 = vmatmul.mubr.bf16.gmra.mrb[0].mxu0 %v248
    %v654 = vpop.f32.mrb[0].mxu0
    %v655 = vadd.f32 %v175, %v654
    %v656 = vpop.f32.mrb[0].mxu0
    %v657 = vadd.f32 %v179, %v656
    %v658 = vpop.f32.mrb[0].mxu0
    %v659 = vadd.f32 %v175, %v658
    %v660 = vpop.f32.mrb[0].mxu0
    %v661 = vadd.f32 %v179, %v660
    %662 = vmatprep.mubr.bf16.mxu0 0
    %663 = vmatmul.mubr.bf16.gmra.mrb[0].mxu0 %v249
    %v664 = vpop.f32.mrb[0].mxu0
    %v665 = vadd.f32 %v175, %v664
    %v666 = vpop.f32.mrb[0].mxu0
    %v667 = vadd.f32 %v179, %v666
    %v668 = vpop.f32.mrb[0].mxu0
    %v669 = vadd.f32 %v175, %v668
    %v670 = vpop.f32.mrb[0].mxu0
    %v671 = vadd.f32 %v179, %v670
    %672 = vmatprep.mubr.bf16.mxu0 0
    %673 = vmatmul.mubr.bf16.gmra.mrb[0].mxu0 %v250
    %v674 = vpop.f32.mrb[0].mxu0
    %v675 = vadd.f32 %v175, %v674
    %v676 = vpop.f32.mrb[0].mxu0
    %v677 = vadd.f32 %v179, %v676
    %v678 = vpop.f32.mrb[0].mxu0
    %v679 = vadd.f32 %v175, %v678
    %v680 = vpop.f32.mrb[0].mxu0
    %v681 = vadd.f32 %v179, %v680
    %682 = vmatprep.mubr.bf16.mxu0 0
    %683 = vmatmul.mubr.bf16.gmra.mrb[0].mxu0 %v251
    %v684 = vpop.f32.mrb[0].mxu0
    %v685 = vadd.f32 %v175, %v684
    %v686 = vpop.f32.mrb[0].mxu0
    %v687 = vadd.f32 %v179, %v686
    %v688 = vpop.f32.mrb[0].mxu0
    %v689 = vadd.f32 %v175, %v688
    %v690 = vpop.f32.mrb[0].mxu0
    %v691 = vadd.f32 %v179, %v690
    %692 = vdwg.mxu0
    %693 = vmatprep.subr.bf16.mxu0 %v455
    %694 = vmatpush1.bf16.msra.mxu0 %v454
    %695 = vmatprep.subr.bf16.mxu0 %v463
    %696 = vmatpush1.bf16.msra.mxu0 %v462
    %697 = vmatprep.subr.bf16.mxu0 %v471
    %698 = vmatpush1.bf16.msra.mxu0 %v470
    %699 = vmatprep.subr.bf16.mxu0 %v479
    %700 = vmatpush1.bf16.msra.mxu0 %v478
    %701 = vmatprep.subr.bf16.mxu0 %v487
    %702 = vmatpush1.bf16.msra.mxu0 %v486
    %703 = vmatprep.subr.bf16.mxu0 %v495
    %704 = vmatpush1.bf16.msra.mxu0 %v494
    %705 = vmatprep.subr.bf16.mxu0 %v503
    %706 = vmatpush1.bf16.msra.mxu0 %v502
    %707 = vmatprep.subr.bf16.mxu0 %v511
    %708 = vmatpush1.bf16.msra.mxu0 %v510
    %709 = vmatprep.subr.bf16.mxu0 0
    %710 = vmatpush1.bf16.msra.mxu0 0
    %711 = vmatprep.subr.bf16.mxu0 0
    %712 = vmatpush1.bf16.msra.mxu0 0
    %713 = vmatprep.subr.bf16.mxu0 0
    %714 = vmatpush1.bf16.msra.mxu0 0
    %715 = vmatprep.subr.bf16.mxu0 0
    %716 = vmatpush1.bf16.msra.mxu0 0
    %717 = vmatprep.subr.bf16.mxu0 0
    %718 = vmatpush1.bf16.msra.mxu0 0
    %719 = vmatprep.subr.bf16.mxu0 0
    %720 = vmatpush1.bf16.msra.mxu0 0
    %721 = vmatprep.subr.bf16.mxu0 0
    %722 = vmatpush1.bf16.msra.mxu0 0
    %723 = vmatprep.subr.bf16.mxu0 0
    %724 = vmatpush1.bf16.msra.mxu0 0
    %725 = vmatprep.mubr.bf16.mxu0 0
    %726 = vmatmul.mubr.bf16.gmra.mrb[0].mxu0 %v244
    %v727 = vpop.f32.mrb[0].mxu0
    %v728 = vadd.f32 %v183, %v727
    %v729 = vpop.f32.mrb[0].mxu0
    %v730 = vadd.f32 %v187, %v729
    %v731 = vpop.f32.mrb[0].mxu0
    %v732 = vadd.f32 %v183, %v731
    %v733 = vpop.f32.mrb[0].mxu0
    %v734 = vadd.f32 %v187, %v733
    %735 = vmatprep.mubr.bf16.mxu0 0
    %736 = vmatmul.mubr.bf16.gmra.mrb[0].mxu0 %v245
    %v737 = vpop.f32.mrb[0].mxu0
    %v738 = vadd.f32 %v183, %v737
    %v739 = vpop.f32.mrb[0].mxu0
    %v740 = vadd.f32 %v187, %v739
    %v741 = vpop.f32.mrb[0].mxu0
    %v742 = vadd.f32 %v183, %v741
    %v743 = vpop.f32.mrb[0].mxu0
    %v744 = vadd.f32 %v187, %v743
    %745 = vmatprep.mubr.bf16.mxu0 0
    %746 = vmatmul.mubr.bf16.gmra.mrb[0].mxu0 %v246
    %v747 = vpop.f32.mrb[0].mxu0
    %v748 = vadd.f32 %v183, %v747
    %v749 = vpop.f32.mrb[0].mxu0
    %v750 = vadd.f32 %v187, %v749
    %v751 = vpop.f32.mrb[0].mxu0
    %v752 = vadd.f32 %v183, %v751
    %v753 = vpop.f32.mrb[0].mxu0
    %v754 = vadd.f32 %v187, %v753
    %755 = vmatprep.mubr.bf16.mxu0 0
    %756 = vmatmul.mubr.bf16.gmra.mrb[0].mxu0 %v247
    %v757 = vpop.f32.mrb[0].mxu0
    %v758 = vadd.f32 %v183, %v757
    %v759 = vpop.f32.mrb[0].mxu0
    %v760 = vadd.f32 %v187, %v759
    %v761 = vpop.f32.mrb[0].mxu0
    %v762 = vadd.f32 %v183, %v761
    %v763 = vpop.f32.mrb[0].mxu0
    %v764 = vadd.f32 %v187, %v763
    %765 = vmatprep.mubr.bf16.mxu0 0
    %766 = vmatmul.mubr.bf16.gmra.mrb[0].mxu0 %v248
    %v767 = vpop.f32.mrb[0].mxu0
    %v768 = vadd.f32 %v183, %v767
    %v769 = vpop.f32.mrb[0].mxu0
    %v770 = vadd.f32 %v187, %v769
    %v771 = vpop.f32.mrb[0].mxu0
    %v772 = vadd.f32 %v183, %v771
    %v773 = vpop.f32.mrb[0].mxu0
    %v774 = vadd.f32 %v187, %v773
    %775 = vmatprep.mubr.bf16.mxu0 0
    %776 = vmatmul.mubr.bf16.gmra.mrb[0].mxu0 %v249
    %v777 = vpop.f32.mrb[0].mxu0
    %v778 = vadd.f32 %v183, %v777
    %v779 = vpop.f32.mrb[0].mxu0
    %v780 = vadd.f32 %v187, %v779
    %v781 = vpop.f32.mrb[0].mxu0
    %v782 = vadd.f32 %v183, %v781
    %v783 = vpop.f32.mrb[0].mxu0
    %v784 = vadd.f32 %v187, %v783
    %785 = vmatprep.mubr.bf16.mxu0 0
    %786 = vmatmul.mubr.bf16.gmra.mrb[0].mxu0 %v250
    %v787 = vpop.f32.mrb[0].mxu0
    %v788 = vadd.f32 %v183, %v787
    %v789 = vpop.f32.mrb[0].mxu0
    %v790 = vadd.f32 %v187, %v789
    %v791 = vpop.f32.mrb[0].mxu0
    %v792 = vadd.f32 %v183, %v791
    %v793 = vpop.f32.mrb[0].mxu0
    %v794 = vadd.f32 %v187, %v793
    %795 = vmatprep.mubr.bf16.mxu0 0
    %796 = vmatmul.mubr.bf16.gmra.mrb[0].mxu0 %v251
    %v797 = vpop.f32.mrb[0].mxu0
    %v798 = vadd.f32 %v183, %v797
    %v799 = vpop.f32.mrb[0].mxu0
    %v800 = vadd.f32 %v187, %v799
    %v801 = vpop.f32.mrb[0].mxu0
    %v802 = vadd.f32 %v183, %v801
    %v803 = vpop.f32.mrb[0].mxu0
    %v804 = vadd.f32 %v187, %v803
    %805 = vdwg.mxu0
    %806 = vmatprep.subr.bf16.mxu0 %v457
    %807 = vmatpush1.bf16.msra.mxu0 %v456
    %808 = vmatprep.subr.bf16.mxu0 %v465
    %809 = vmatpush1.bf16.msra.mxu0 %v464
    %810 = vmatprep.subr.bf16.mxu0 %v473
    %811 = vmatpush1.bf16.msra.mxu0 %v472
    %812 = vmatprep.subr.bf16.mxu0 %v481
    %813 = vmatpush1.bf16.msra.mxu0 %v480
    %814 = vmatprep.subr.bf16.mxu0 %v489
    %815 = vmatpush1.bf16.msra.mxu0 %v488
    %816 = vmatprep.subr.bf16.mxu0 %v497
    %817 = vmatpush1.bf16.msra.mxu0 %v496
    %818 = vmatprep.subr.bf16.mxu0 %v505
    %819 = vmatpush1.bf16.msra.mxu0 %v504
    %820 = vmatprep.subr.bf16.mxu0 %v513
    %821 = vmatpush1.bf16.msra.mxu0 %v512
    %822 = vmatprep.subr.bf16.mxu0 0
    %823 = vmatpush1.bf16.msra.mxu0 0
    %824 = vmatprep.subr.bf16.mxu0 0
    %825 = vmatpush1.bf16.msra.mxu0 0
    %826 = vmatprep.subr.bf16.mxu0 0
    %827 = vmatpush1.bf16.msra.mxu0 0
    %828 = vmatprep.subr.bf16.mxu0 0
    %829 = vmatpush1.bf16.msra.mxu0 0
    %830 = vmatprep.subr.bf16.mxu0 0
    %831 = vmatpush1.bf16.msra.mxu0 0
    %832 = vmatprep.subr.bf16.mxu0 0
    %833 = vmatpush1.bf16.msra.mxu0 0
    %834 = vmatprep.subr.bf16.mxu0 0
    %835 = vmatpush1.bf16.msra.mxu0 0
    %836 = vmatprep.subr.bf16.mxu0 0
    %837 = vmatpush1.bf16.msra.mxu0 0
    %838 = vmatprep.mubr.bf16.mxu0 0
    %839 = vmatmul.mubr.bf16.gmra.mrb[0].mxu0 %v244
    %v840 = vpop.f32.mrb[0].mxu0
    %v841 = vadd.f32 %v191, %v840
    %v842 = vpop.f32.mrb[0].mxu0
    %v843 = vadd.f32 %v195, %v842
    %v844 = vpop.f32.mrb[0].mxu0
    %v845 = vadd.f32 %v191, %v844
    %v846 = vpop.f32.mrb[0].mxu0
    %v847 = vadd.f32 %v195, %v846
    %848 = vmatprep.mubr.bf16.mxu0 0
    %849 = vmatmul.mubr.bf16.gmra.mrb[0].mxu0 %v245
    %v850 = vpop.f32.mrb[0].mxu0
    %v851 = vadd.f32 %v191, %v850
    %v852 = vpop.f32.mrb[0].mxu0
    %v853 = vadd.f32 %v195, %v852
    %v854 = vpop.f32.mrb[0].mxu0
    %v855 = vadd.f32 %v191, %v854
    %v856 = vpop.f32.mrb[0].mxu0
    %v857 = vadd.f32 %v195, %v856
    %858 = vmatprep.mubr.bf16.mxu0 0
    %859 = vmatmul.mubr.bf16.gmra.mrb[0].mxu0 %v246
    %v860 = vpop.f32.mrb[0].mxu0
    %v861 = vadd.f32 %v191, %v860
    %v862 = vpop.f32.mrb[0].mxu0
    %v863 = vadd.f32 %v195, %v862
    %v864 = vpop.f32.mrb[0].mxu0
    %v865 = vadd.f32 %v191, %v864
    %v866 = vpop.f32.mrb[0].mxu0
    %v867 = vadd.f32 %v195, %v866
    %868 = vmatprep.mubr.bf16.mxu0 0
    %869 = vmatmul.mubr.bf16.gmra.mrb[0].mxu0 %v247
    %v870 = vpop.f32.mrb[0].mxu0
    %v871 = vadd.f32 %v191, %v870
    %v872 = vpop.f32.mrb[0].mxu0
    %v873 = vadd.f32 %v195, %v872
    %v874 = vpop.f32.mrb[0].mxu0
    %v875 = vadd.f32 %v191, %v874
    %v876 = vpop.f32.mrb[0].mxu0
    %v877 = vadd.f32 %v195, %v876
    %878 = vmatprep.mubr.bf16.mxu0 0
    %879 = vmatmul.mubr.bf16.gmra.mrb[0].mxu0 %v248
    %v880 = vpop.f32.mrb[0].mxu0
    %v881 = vadd.f32 %v191, %v880
    %v882 = vpop.f32.mrb[0].mxu0
    %v883 = vadd.f32 %v195, %v882
    %v884 = vpop.f32.mrb[0].mxu0
    %v885 = vadd.f32 %v191, %v884
    %v886 = vpop.f32.mrb[0].mxu0
    %v887 = vadd.f32 %v195, %v886
    %888 = vmatprep.mubr.bf16.mxu0 0
    %889 = vmatmul.mubr.bf16.gmra.mrb[0].mxu0 %v249
    %v890 = vpop.f32.mrb[0].mxu0
    %v891 = vadd.f32 %v191, %v890
    %v892 = vpop.f32.mrb[0].mxu0
    %v893 = vadd.f32 %v195, %v892
    %v894 = vpop.f32.mrb[0].mxu0
    %v895 = vadd.f32 %v191, %v894
    %v896 = vpop.f32.mrb[0].mxu0
    %v897 = vadd.f32 %v195, %v896
    %898 = vmatprep.mubr.bf16.mxu0 0
    %899 = vmatmul.mubr.bf16.gmra.mrb[0].mxu0 %v250
    %v900 = vpop.f32.mrb[0].mxu0
    %v901 = vadd.f32 %v191, %v900
    %v902 = vpop.f32.mrb[0].mxu0
    %v903 = vadd.f32 %v195, %v902
    %v904 = vpop.f32.mrb[0].mxu0
    %v905 = vadd.f32 %v191, %v904
    %v906 = vpop.f32.mrb[0].mxu0
    %v907 = vadd.f32 %v195, %v906
    %908 = vmatprep.mubr.bf16.mxu0 0
    %909 = vmatmul.mubr.bf16.gmra.mrb[0].mxu0 %v251
    %v910 = vpop.f32.mrb[0].mxu0
    %v911 = vadd.f32 %v191, %v910
    %v912 = vpop.f32.mrb[0].mxu0
    %v913 = vadd.f32 %v195, %v912
    %v914 = vpop.f32.mrb[0].mxu0
    %v915 = vadd.f32 %v191, %v914
    %v916 = vpop.f32.mrb[0].mxu0
    %v917 = vadd.f32 %v195, %v916
    %918 = vdwg.mxu0
    %919 = vmatprep.subr.bf16.mxu0 %v459
    %920 = vmatpush1.bf16.msra.mxu0 %v458
    %921 = vmatprep.subr.bf16.mxu0 %v467
    %922 = vmatpush1.bf16.msra.mxu0 %v466
    %923 = vmatprep.subr.bf16.mxu0 %v475
    %924 = vmatpush1.bf16.msra.mxu0 %v474
    %925 = vmatprep.subr.bf16.mxu0 %v483
    %926 = vmatpush1.bf16.msra.mxu0 %v482
    %927 = vmatprep.subr.bf16.mxu0 %v491
    %928 = vmatpush1.bf16.msra.mxu0 %v490
    %929 = vmatprep.subr.bf16.mxu0 %v499
    %930 = vmatpush1.bf16.msra.mxu0 %v498
    %931 = vmatprep.subr.bf16.mxu0 %v507
    %932 = vmatpush1.bf16.msra.mxu0 %v506
    %933 = vmatprep.subr.bf16.mxu0 %v515
    %934 = vmatpush1.bf16.msra.mxu0 %v514
    %935 = vmatprep.subr.bf16.mxu0 0
    %936 = vmatpush1.bf16.msra.mxu0 0
    %937 = vmatprep.subr.bf16.mxu0 0
    %938 = vmatpush1.bf16.msra.mxu0 0
    %939 = vmatprep.subr.bf16.mxu0 0
    %940 = vmatpush1.bf16.msra.mxu0 0
    %941 = vmatprep.subr.bf16.mxu0 0
    %942 = vmatpush1.bf16.msra.mxu0 0
    %943 = vmatprep.subr.bf16.mxu0 0
    %944 = vmatpush1.bf16.msra.mxu0 0
    %945 = vmatprep.subr.bf16.mxu0 0
    %946 = vmatpush1.bf16.msra.mxu0 0
    %947 = vmatprep.subr.bf16.mxu0 0
    %948 = vmatpush1.bf16.msra.mxu0 0
    %949 = vmatprep.subr.bf16.mxu0 0
    %950 = vmatpush1.bf16.msra.mxu0 0
    %951 = vmatprep.mubr.bf16.mxu0 0
    %952 = vmatmul.mubr.bf16.gmra.mrb[0].mxu0 %v244
    %v953 = vpop.f32.mrb[0].mxu0
    %v954 = vadd.f32 %v199, %v953
    %v955 = vpop.f32.mrb[0].mxu0
    %v956 = vadd.f32 %v203, %v955
    %v957 = vpop.f32.mrb[0].mxu0
    %v958 = vadd.f32 %v199, %v957
    %v959 = vpop.f32.mrb[0].mxu0
    %v960 = vadd.f32 %v203, %v959
    %961 = vmatprep.mubr.bf16.mxu0 0
    %962 = vmatmul.mubr.bf16.gmra.mrb[0].mxu0 %v245
    %v963 = vpop.f32.mrb[0].mxu0
    %v964 = vadd.f32 %v199, %v963
    %v965 = vpop.f32.mrb[0].mxu0
    %v966 = vadd.f32 %v203, %v965
    %v967 = vpop.f32.mrb[0].mxu0
    %v968 = vadd.f32 %v199, %v967
    %v969 = vpop.f32.mrb[0].mxu0
    %v970 = vadd.f32 %v203, %v969
    %971 = vmatprep.mubr.bf16.mxu0 0
    %972 = vmatmul.mubr.bf16.gmra.mrb[0].mxu0 %v246
    %v973 = vpop.f32.mrb[0].mxu0
    %v974 = vadd.f32 %v199, %v973
    %v975 = vpop.f32.mrb[0].mxu0
    %v976 = vadd.f32 %v203, %v975
    %v977 = vpop.f32.mrb[0].mxu0
    %v978 = vadd.f32 %v199, %v977
    %v979 = vpop.f32.mrb[0].mxu0
    %v980 = vadd.f32 %v203, %v979
    %981 = vmatprep.mubr.bf16.mxu0 0
    %982 = vmatmul.mubr.bf16.gmra.mrb[0].mxu0 %v247
    %v983 = vpop.f32.mrb[0].mxu0
    %v984 = vadd.f32 %v199, %v983
    %v985 = vpop.f32.mrb[0].mxu0
    %v986 = vadd.f32 %v203, %v985
    %v987 = vpop.f32.mrb[0].mxu0
    %v988 = vadd.f32 %v199, %v987
    %v989 = vpop.f32.mrb[0].mxu0
    %v990 = vadd.f32 %v203, %v989
    %991 = vmatprep.mubr.bf16.mxu0 0
    %992 = vmatmul.mubr.bf16.gmra.mrb[0].mxu0 %v248
    %v993 = vpop.f32.mrb[0].mxu0
    %v994 = vadd.f32 %v199, %v993
    %v995 = vpop.f32.mrb[0].mxu0
    %v996 = vadd.f32 %v203, %v995
    %v997 = vpop.f32.mrb[0].mxu0
    %v998 = vadd.f32 %v199, %v997
    %v999 = vpop.f32.mrb[0].mxu0
    %v1000 = vadd.f32 %v203, %v999
    %1001 = vmatprep.mubr.bf16.mxu0 0
    %1002 = vmatmul.mubr.bf16.gmra.mrb[0].mxu0 %v249
    %v1003 = vpop.f32.mrb[0].mxu0
    %v1004 = vadd.f32 %v199, %v1003
    %v1005 = vpop.f32.mrb[0].mxu0
    %v1006 = vadd.f32 %v203, %v1005
    %v1007 = vpop.f32.mrb[0].mxu0
    %v1008 = vadd.f32 %v199, %v1007
    %v1009 = vpop.f32.mrb[0].mxu0
    %v1010 = vadd.f32 %v203, %v1009
    %1011 = vmatprep.mubr.bf16.mxu0 0
    %1012 = vmatmul.mubr.bf16.gmra.mrb[0].mxu0 %v250
    %v1013 = vpop.f32.mrb[0].mxu0
    %v1014 = vadd.f32 %v199, %v1013
    %v1015 = vpop.f32.mrb[0].mxu0
    %v1016 = vadd.f32 %v203, %v1015
    %v1017 = vpop.f32.mrb[0].mxu0
    %v1018 = vadd.f32 %v199, %v1017
    %v1019 = vpop.f32.mrb[0].mxu0
    %v1020 = vadd.f32 %v203, %v1019
    %1021 = vmatprep.mubr.bf16.mxu0 0
    %1022 = vmatmul.mubr.bf16.gmra.mrb[0].mxu0 %v251
    %v1023 = vpop.f32.mrb[0].mxu0
    %v1024 = vadd.f32 %v199, %v1023
    %v1025 = vpop.f32.mrb[0].mxu0
    %v1026 = vadd.f32 %v203, %v1025
    %v1027 = vpop.f32.mrb[0].mxu0
    %v1028 = vadd.f32 %v199, %v1027
    %v1029 = vpop.f32.mrb[0].mxu0
    %v1030 = vadd.f32 %v203, %v1029
    %1031 = vdwg.mxu0
    %v1032 = vmul.f32 %v615, 0.2
    %v1033 = vmul.f32 %v617, 0.2
    %v1034 = vmul.f32 %v728, 0.2
    %v1035 = vmul.f32 %v730, 0.2
    %v1036 = vmul.f32 %v841, 0.2
    %v1037 = vmul.f32 %v843, 0.2
    %v1038 = vmul.f32 %v954, 0.2
    %v1039 = vmul.f32 %v956, 0.2
    %v1040 = vmul.f32 %v619, 0.2
    %v1041 = vmul.f32 %v621, 0.2
    %v1042 = vmul.f32 %v732, 0.2
    %v1043 = vmul.f32 %v734, 0.2
    %v1044 = vmul.f32 %v845, 0.2
    %v1045 = vmul.f32 %v847, 0.2
    %v1046 = vmul.f32 %v958, 0.2
    %v1047 = vmul.f32 %v960, 0.2
    %v1048 = vmul.f32 %v625, 0.2
    %v1049 = vmul.f32 %v627, 0.2
    %v1050 = vmul.f32 %v738, 0.2
    %v1051 = vmul.f32 %v740, 0.2
    %v1052 = vmul.f32 %v851, 0.2
    %v1053 = vmul.f32 %v853, 0.2
    %v1054 = vmul.f32 %v964, 0.2
    %v1055 = vmul.f32 %v966, 0.2
    %v1056 = vmul.f32 %v629, 0.2
    %v1057 = vmul.f32 %v631, 0.2
    %v1058 = vmul.f32 %v742, 0.2
    %v1059 = vmul.f32 %v744, 0.2
    %v1060 = vmul.f32 %v855, 0.2
    %v1061 = vmul.f32 %v857, 0.2
    %v1062 = vmul.f32 %v968, 0.2
    %v1063 = vmul.f32 %v970, 0.2
    %v1064 = vmul.f32 %v635, 0.2
    %v1065 = vmul.f32 %v637, 0.2
    %v1066 = vmul.f32 %v748, 0.2
    %v1067 = vmul.f32 %v750, 0.2
    %v1068 = vmul.f32 %v861, 0.2
    %v1069 = vmul.f32 %v863, 0.2
    %v1070 = vmul.f32 %v974, 0.2
    %v1071 = vmul.f32 %v976, 0.2
    %v1072 = vmul.f32 %v639, 0.2
    %v1073 = vmul.f32 %v641, 0.2
    %v1074 = vmul.f32 %v752, 0.2
    %v1075 = vmul.f32 %v754, 0.2
    %v1076 = vmul.f32 %v865, 0.2
    %v1077 = vmul.f32 %v867, 0.2
    %v1078 = vmul.f32 %v978, 0.2
    %v1079 = vmul.f32 %v980, 0.2
    %v1080 = vmul.f32 %v645, 0.2
    %v1081 = vmul.f32 %v647, 0.2
    %v1082 = vmul.f32 %v758, 0.2
    %v1083 = vmul.f32 %v760, 0.2
    %v1084 = vmul.f32 %v871, 0.2
    %v1085 = vmul.f32 %v873, 0.2
    %v1086 = vmul.f32 %v984, 0.2
    %v1087 = vmul.f32 %v986, 0.2
    %v1088 = vmul.f32 %v649, 0.2
    %v1089 = vmul.f32 %v651, 0.2
    %v1090 = vmul.f32 %v762, 0.2
    %v1091 = vmul.f32 %v764, 0.2
    %v1092 = vmul.f32 %v875, 0.2
    %v1093 = vmul.f32 %v877, 0.2
    %v1094 = vmul.f32 %v988, 0.2
    %v1095 = vmul.f32 %v990, 0.2
    %v1096 = vmul.f32 %v655, 0.2
    %v1097 = vmul.f32 %v657, 0.2
    %v1098 = vmul.f32 %v768, 0.2
    %v1099 = vmul.f32 %v770, 0.2
    %v1100 = vmul.f32 %v881, 0.2
    %v1101 = vmul.f32 %v883, 0.2
    %v1102 = vmul.f32 %v994, 0.2
    %v1103 = vmul.f32 %v996, 0.2
    %v1104 = vmul.f32 %v659, 0.2
    %v1105 = vmul.f32 %v661, 0.2
    %v1106 = vmul.f32 %v772, 0.2
    %v1107 = vmul.f32 %v774, 0.2
    %v1108 = vmul.f32 %v885, 0.2
    %v1109 = vmul.f32 %v887, 0.2
    %v1110 = vmul.f32 %v998, 0.2
    %v1111 = vmul.f32 %v1000, 0.2
    %v1112 = vmul.f32 %v665, 0.2
    %v1113 = vmul.f32 %v667, 0.2
    %v1114 = vmul.f32 %v778, 0.2
    %v1115 = vmul.f32 %v780, 0.2
    %v1116 = vmul.f32 %v891, 0.2
    %v1117 = vmul.f32 %v893, 0.2
    %v1118 = vmul.f32 %v1004, 0.2
    %v1119 = vmul.f32 %v1006, 0.2
    %v1120 = vmul.f32 %v669, 0.2
    %v1121 = vmul.f32 %v671, 0.2
    %v1122 = vmul.f32 %v782, 0.2
    %v1123 = vmul.f32 %v784, 0.2
    %v1124 = vmul.f32 %v895, 0.2
    %v1125 = vmul.f32 %v897, 0.2
    %v1126 = vmul.f32 %v1008, 0.2
    %v1127 = vmul.f32 %v1010, 0.2
    %v1128 = vmul.f32 %v675, 0.2
    %v1129 = vmul.f32 %v677, 0.2
    %v1130 = vmul.f32 %v788, 0.2
    %v1131 = vmul.f32 %v790, 0.2
    %v1132 = vmul.f32 %v901, 0.2
    %v1133 = vmul.f32 %v903, 0.2
    %v1134 = vmul.f32 %v1014, 0.2
    %v1135 = vmul.f32 %v1016, 0.2
    %v1136 = vmul.f32 %v679, 0.2
    %v1137 = vmul.f32 %v681, 0.2
    %v1138 = vmul.f32 %v792, 0.2
    %v1139 = vmul.f32 %v794, 0.2
    %v1140 = vmul.f32 %v905, 0.2
    %v1141 = vmul.f32 %v907, 0.2
    %v1142 = vmul.f32 %v1018, 0.2
    %v1143 = vmul.f32 %v1020, 0.2
    %v1144 = vmul.f32 %v685, 0.2
    %v1145 = vmul.f32 %v687, 0.2
    %v1146 = vmul.f32 %v798, 0.2
    %v1147 = vmul.f32 %v800, 0.2
    %v1148 = vmul.f32 %v911, 0.2
    %v1149 = vmul.f32 %v913, 0.2
    %v1150 = vmul.f32 %v1024, 0.2
    %v1151 = vmul.f32 %v1026, 0.2
    %v1152 = vmul.f32 %v689, 0.2
    %v1153 = vmul.f32 %v691, 0.2
    %v1154 = vmul.f32 %v802, 0.2
    %v1155 = vmul.f32 %v804, 0.2
    %v1156 = vmul.f32 %v915, 0.2
    %v1157 = vmul.f32 %v917, 0.2
    %v1158 = vmul.f32 %v1028, 0.2
    %v1159 = vmul.f32 %v1030, 0.2
    %v1160 = vmax.f32 %v615, %v1032
    %v1161 = vmax.f32 %v617, %v1033
    %v1162 = vmax.f32 %v728, %v1034
    %v1163 = vmax.f32 %v730, %v1035
    %v1164 = vmax.f32 %v841, %v1036
    %v1165 = vmax.f32 %v843, %v1037
    %v1166 = vmax.f32 %v954, %v1038
    %v1167 = vmax.f32 %v956, %v1039
    %v1168 = vmax.f32 %v619, %v1040
    %v1169 = vmax.f32 %v621, %v1041
    %v1170 = vmax.f32 %v732, %v1042
    %v1171 = vmax.f32 %v734, %v1043
    %v1172 = vmax.f32 %v845, %v1044
    %v1173 = vmax.f32 %v847, %v1045
    %v1174 = vmax.f32 %v958, %v1046
    %v1175 = vmax.f32 %v960, %v1047
    %v1176 = vmax.f32 %v625, %v1048
    %v1177 = vmax.f32 %v627, %v1049
    %v1178 = vmax.f32 %v738, %v1050
    %v1179 = vmax.f32 %v740, %v1051
    %v1180 = vmax.f32 %v851, %v1052
    %v1181 = vmax.f32 %v853, %v1053
    %v1182 = vmax.f32 %v964, %v1054
    %v1183 = vmax.f32 %v966, %v1055
    %v1184 = vmax.f32 %v629, %v1056
    %v1185 = vmax.f32 %v631, %v1057
    %v1186 = vmax.f32 %v742, %v1058
    %v1187 = vmax.f32 %v744, %v1059
    %v1188 = vmax.f32 %v855, %v1060
    %v1189 = vmax.f32 %v857, %v1061
    %v1190 = vmax.f32 %v968, %v1062
    %v1191 = vmax.f32 %v970, %v1063
    %v1192 = vmax.f32 %v635, %v1064
    %v1193 = vmax.f32 %v637, %v1065
    %v1194 = vmax.f32 %v748, %v1066
    %v1195 = vmax.f32 %v750, %v1067
    %v1196 = vmax.f32 %v861, %v1068
    %v1197 = vmax.f32 %v863, %v1069
    %v1198 = vmax.f32 %v974, %v1070
    %v1199 = vmax.f32 %v976, %v1071
    %v1200 = vmax.f32 %v639, %v1072
    %v1201 = vmax.f32 %v641, %v1073
    %v1202 = vmax.f32 %v752, %v1074
    %v1203 = vmax.f32 %v754, %v1075
    %v1204 = vmax.f32 %v865, %v1076
    %v1205 = vmax.f32 %v867, %v1077
    %v1206 = vmax.f32 %v978, %v1078
    %v1207 = vmax.f32 %v980, %v1079
    %v1208 = vmax.f32 %v645, %v1080
    %v1209 = vmax.f32 %v647, %v1081
    %v1210 = vmax.f32 %v758, %v1082
    %v1211 = vmax.f32 %v760, %v1083
    %v1212 = vmax.f32 %v871, %v1084
    %v1213 = vmax.f32 %v873, %v1085
    %v1214 = vmax.f32 %v984, %v1086
    %v1215 = vmax.f32 %v986, %v1087
    %v1216 = vmax.f32 %v649, %v1088
    %v1217 = vmax.f32 %v651, %v1089
    %v1218 = vmax.f32 %v762, %v1090
    %v1219 = vmax.f32 %v764, %v1091
    %v1220 = vmax.f32 %v875, %v1092
    %v1221 = vmax.f32 %v877, %v1093
    %v1222 = vmax.f32 %v988, %v1094
    %v1223 = vmax.f32 %v990, %v1095
    %v1224 = vmax.f32 %v655, %v1096
    %v1225 = vmax.f32 %v657, %v1097
    %v1226 = vmax.f32 %v768, %v1098
    %v1227 = vmax.f32 %v770, %v1099
    %v1228 = vmax.f32 %v881, %v1100
    %v1229 = vmax.f32 %v883, %v1101
    %v1230 = vmax.f32 %v994, %v1102
    %v1231 = vmax.f32 %v996, %v1103
    %v1232 = vmax.f32 %v659, %v1104
    %v1233 = vmax.f32 %v661, %v1105
    %v1234 = vmax.f32 %v772, %v1106
    %v1235 = vmax.f32 %v774, %v1107
    %v1236 = vmax.f32 %v885, %v1108
    %v1237 = vmax.f32 %v887, %v1109
    %v1238 = vmax.f32 %v998, %v1110
    %v1239 = vmax.f32 %v1000, %v1111
    %v1240 = vmax.f32 %v665, %v1112
    %v1241 = vmax.f32 %v667, %v1113
    %v1242 = vmax.f32 %v778, %v1114
    %v1243 = vmax.f32 %v780, %v1115
    %v1244 = vmax.f32 %v891, %v1116
    %v1245 = vmax.f32 %v893, %v1117
    %v1246 = vmax.f32 %v1004, %v1118
    %v1247 = vmax.f32 %v1006, %v1119
    %v1248 = vmax.f32 %v669, %v1120
    %v1249 = vmax.f32 %v671, %v1121
    %v1250 = vmax.f32 %v782, %v1122
    %v1251 = vmax.f32 %v784, %v1123
    %v1252 = vmax.f32 %v895, %v1124
    %v1253 = vmax.f32 %v897, %v1125
    %v1254 = vmax.f32 %v1008, %v1126
    %v1255 = vmax.f32 %v1010, %v1127
    %v1256 = vmax.f32 %v675, %v1128
    %v1257 = vmax.f32 %v677, %v1129
    %v1258 = vmax.f32 %v788, %v1130
    %v1259 = vmax.f32 %v790, %v1131
    %v1260 = vmax.f32 %v901, %v1132
    %v1261 = vmax.f32 %v903, %v1133
    %v1262 = vmax.f32 %v1014, %v1134
    %v1263 = vmax.f32 %v1016, %v1135
    %v1264 = vmax.f32 %v679, %v1136
    %v1265 = vmax.f32 %v681, %v1137
    %v1266 = vmax.f32 %v792, %v1138
    %v1267 = vmax.f32 %v794, %v1139
    %v1268 = vmax.f32 %v905, %v1140
    %v1269 = vmax.f32 %v907, %v1141
    %v1270 = vmax.f32 %v1018, %v1142
    %v1271 = vmax.f32 %v1020, %v1143
    %v1272 = vmax.f32 %v685, %v1144
    %v1273 = vmax.f32 %v687, %v1145
    %v1274 = vmax.f32 %v798, %v1146
    %v1275 = vmax.f32 %v800, %v1147
    %v1276 = vmax.f32 %v911, %v1148
    %v1277 = vmax.f32 %v913, %v1149
    %v1278 = vmax.f32 %v1024, %v1150
    %v1279 = vmax.f32 %v1026, %v1151
    %v1280 = vmax.f32 %v689, %v1152
    %v1281 = vmax.f32 %v691, %v1153
    %v1282 = vmax.f32 %v802, %v1154
    %v1283 = vmax.f32 %v804, %v1155
    %v1284 = vmax.f32 %v915, %v1156
    %v1285 = vmax.f32 %v917, %v1157
    %v1286 = vmax.f32 %v1028, %v1158
    %v1287 = vmax.f32 %v1030, %v1159
    %v1288 = vpack.c.bf16 %v1168, %v1160
    %v1289 = vpack.c.bf16 %v1169, %v1161
    %v1290 = vpack.c.bf16 %v1170, %v1162
    %v1291 = vpack.c.bf16 %v1171, %v1163
    %v1292 = vpack.c.bf16 %v1172, %v1164
    %v1293 = vpack.c.bf16 %v1173, %v1165
    %v1294 = vpack.c.bf16 %v1174, %v1166
    %v1295 = vpack.c.bf16 %v1175, %v1167
    %v1296 = vpack.c.bf16 %v1184, %v1176
    %v1297 = vpack.c.bf16 %v1185, %v1177
    %v1298 = vpack.c.bf16 %v1186, %v1178
    %v1299 = vpack.c.bf16 %v1187, %v1179
    %v1300 = vpack.c.bf16 %v1188, %v1180
    %v1301 = vpack.c.bf16 %v1189, %v1181
    %v1302 = vpack.c.bf16 %v1190, %v1182
    %v1303 = vpack.c.bf16 %v1191, %v1183
    %v1304 = vpack.c.bf16 %v1200, %v1192
    %v1305 = vpack.c.bf16 %v1201, %v1193
    %v1306 = vpack.c.bf16 %v1202, %v1194
    %v1307 = vpack.c.bf16 %v1203, %v1195
    %v1308 = vpack.c.bf16 %v1204, %v1196
    %v1309 = vpack.c.bf16 %v1205, %v1197
    %v1310 = vpack.c.bf16 %v1206, %v1198
    %v1311 = vpack.c.bf16 %v1207, %v1199
    %v1312 = vpack.c.bf16 %v1216, %v1208
    %v1313 = vpack.c.bf16 %v1217, %v1209
    %v1314 = vpack.c.bf16 %v1218, %v1210
    %v1315 = vpack.c.bf16 %v1219, %v1211
    %v1316 = vpack.c.bf16 %v1220, %v1212
    %v1317 = vpack.c.bf16 %v1221, %v1213
    %v1318 = vpack.c.bf16 %v1222, %v1214
    %v1319 = vpack.c.bf16 %v1223, %v1215
    %v1320 = vpack.c.bf16 %v1232, %v1224
    %v1321 = vpack.c.bf16 %v1233, %v1225
    %v1322 = vpack.c.bf16 %v1234, %v1226
    %v1323 = vpack.c.bf16 %v1235, %v1227
    %v1324 = vpack.c.bf16 %v1236, %v1228
    %v1325 = vpack.c.bf16 %v1237, %v1229
    %v1326 = vpack.c.bf16 %v1238, %v1230
    %v1327 = vpack.c.bf16 %v1239, %v1231
    %v1328 = vpack.c.bf16 %v1248, %v1240
    %v1329 = vpack.c.bf16 %v1249, %v1241
    %v1330 = vpack.c.bf16 %v1250, %v1242
    %v1331 = vpack.c.bf16 %v1251, %v1243
    %v1332 = vpack.c.bf16 %v1252, %v1244
    %v1333 = vpack.c.bf16 %v1253, %v1245
    %v1334 = vpack.c.bf16 %v1254, %v1246
    %v1335 = vpack.c.bf16 %v1255, %v1247
    %v1336 = vpack.c.bf16 %v1264, %v1256
    %v1337 = vpack.c.bf16 %v1265, %v1257
    %v1338 = vpack.c.bf16 %v1266, %v1258
    %v1339 = vpack.c.bf16 %v1267, %v1259
    %v1340 = vpack.c.bf16 %v1268, %v1260
    %v1341 = vpack.c.bf16 %v1269, %v1261
    %v1342 = vpack.c.bf16 %v1270, %v1262
    %v1343 = vpack.c.bf16 %v1271, %v1263
    %v1344 = vpack.c.bf16 %v1280, %v1272
    %v1345 = vpack.c.bf16 %v1281, %v1273
    %v1346 = vpack.c.bf16 %v1282, %v1274
    %v1347 = vpack.c.bf16 %v1283, %v1275
    %v1348 = vpack.c.bf16 %v1284, %v1276
    %v1349 = vpack.c.bf16 %v1285, %v1277
    %v1350 = vpack.c.bf16 %v1286, %v1278
    %v1351 = vpack.c.bf16 %v1287, %v1279
    %v1352 = vld [vmem:[#allocation8] sm:$0xff]
    %v1353 = vld [vmem:[#allocation8 + $0x8] sm:$0xff]
    %v1354 = vld [vmem:[#allocation8 + $0x10] sm:$0xff]
    %v1355 = vld [vmem:[#allocation8 + $0x18] sm:$0xff]
    %v1356 = vld [vmem:[#allocation8 + $0x20] sm:$0xff]
    %v1357 = vld [vmem:[#allocation8 + $0x28] sm:$0xff]
    %v1358 = vld [vmem:[#allocation8 + $0x30] sm:$0xff]
    %v1359 = vld [vmem:[#allocation8 + $0x38] sm:$0xff]
    %v1360 = vld [vmem:[#allocation8 + $0x40] sm:$0xff]
    %v1361 = vld [vmem:[#allocation8 + $0x48] sm:$0xff]
    %v1362 = vld [vmem:[#allocation8 + $0x50] sm:$0xff]
    %v1363 = vld [vmem:[#allocation8 + $0x58] sm:$0xff]
    %v1364 = vld [vmem:[#allocation8 + $0x60] sm:$0xff]
    %v1365 = vld [vmem:[#allocation8 + $0x68] sm:$0xff]
    %v1366 = vld [vmem:[#allocation8 + $0x70] sm:$0xff]
    %v1367 = vld [vmem:[#allocation8 + $0x78] sm:$0xff]
    %v1368 = vld [vmem:[#allocation8 + $0x80] sm:$0xff]
    %v1369 = vld [vmem:[#allocation8 + $0x88] sm:$0xff]
    %v1370 = vld [vmem:[#allocation8 + $0x90] sm:$0xff]
    %v1371 = vld [vmem:[#allocation8 + $0x98] sm:$0xff]
    %v1372 = vld [vmem:[#allocation8 + $0xa0] sm:$0xff]
    %v1373 = vld [vmem:[#allocation8 + $0xa8] sm:$0xff]
    %v1374 = vld [vmem:[#allocation8 + $0xb0] sm:$0xff]
    %v1375 = vld [vmem:[#allocation8 + $0xb8] sm:$0xff]
    %v1376 = vld [vmem:[#allocation8 + $0xc0] sm:$0xff]
    %v1377 = vld [vmem:[#allocation8 + $0xc8] sm:$0xff]
    %v1378 = vld [vmem:[#allocation8 + $0xd0] sm:$0xff]
    %v1379 = vld [vmem:[#allocation8 + $0xd8] sm:$0xff]
    %v1380 = vld [vmem:[#allocation8 + $0xe0] sm:$0xff]
    %v1381 = vld [vmem:[#allocation8 + $0xe8] sm:$0xff]
    %v1382 = vld [vmem:[#allocation8 + $0xf0] sm:$0xff]
    %v1383 = vld [vmem:[#allocation8 + $0xf8] sm:$0xff]
    %v1384 = vld [vmem:[#allocation8 + $0x100] sm:$0xff]
    %v1385 = vld [vmem:[#allocation8 + $0x108] sm:$0xff]
    %v1386 = vld [vmem:[#allocation8 + $0x110] sm:$0xff]
    %v1387 = vld [vmem:[#allocation8 + $0x118] sm:$0xff]
    %v1388 = vld [vmem:[#allocation8 + $0x120] sm:$0xff]
    %v1389 = vld [vmem:[#allocation8 + $0x128] sm:$0xff]
    %v1390 = vld [vmem:[#allocation8 + $0x130] sm:$0xff]
    %v1391 = vld [vmem:[#allocation8 + $0x138] sm:$0xff]
    %v1392 = vld [vmem:[#allocation8 + $0x140] sm:$0xff]
    %v1393 = vld [vmem:[#allocation8 + $0x148] sm:$0xff]
    %v1394 = vld [vmem:[#allocation8 + $0x150] sm:$0xff]
    %v1395 = vld [vmem:[#allocation8 + $0x158] sm:$0xff]
    %v1396 = vld [vmem:[#allocation8 + $0x160] sm:$0xff]
    %v1397 = vld [vmem:[#allocation8 + $0x168] sm:$0xff]
    %v1398 = vld [vmem:[#allocation8 + $0x170] sm:$0xff]
    %v1399 = vld [vmem:[#allocation8 + $0x178] sm:$0xff]
    %v1400 = vld [vmem:[#allocation8 + $0x180] sm:$0xff]
    %v1401 = vld [vmem:[#allocation8 + $0x188] sm:$0xff]
    %v1402 = vld [vmem:[#allocation8 + $0x190] sm:$0xff]
    %v1403 = vld [vmem:[#allocation8 + $0x198] sm:$0xff]
    %v1404 = vld [vmem:[#allocation8 + $0x1a0] sm:$0xff]
    %v1405 = vld [vmem:[#allocation8 + $0x1a8] sm:$0xff]
    %v1406 = vld [vmem:[#allocation8 + $0x1b0] sm:$0xff]
    %v1407 = vld [vmem:[#allocation8 + $0x1b8] sm:$0xff]
    %v1408 = vld [vmem:[#allocation8 + $0x1c0] sm:$0xff]
    %v1409 = vld [vmem:[#allocation8 + $0x1c8] sm:$0xff]
    %v1410 = vld [vmem:[#allocation8 + $0x1d0] sm:$0xff]
    %v1411 = vld [vmem:[#allocation8 + $0x1d8] sm:$0xff]
    %v1412 = vld [vmem:[#allocation8 + $0x1e0] sm:$0xff]
    %v1413 = vld [vmem:[#allocation8 + $0x1e8] sm:$0xff]
    %v1414 = vld [vmem:[#allocation8 + $0x1f0] sm:$0xff]
    %v1415 = vld [vmem:[#allocation8 + $0x1f8] sm:$0xff]
    %v1416 = vld [vmem:[#allocation8 + $0x200] sm:$0xff]
    %v1417 = vld [vmem:[#allocation8 + $0x208] sm:$0xff]
    %v1418 = vld [vmem:[#allocation8 + $0x210] sm:$0xff]
    %v1419 = vld [vmem:[#allocation8 + $0x218] sm:$0xff]
    %v1420 = vld [vmem:[#allocation8 + $0x220] sm:$0xff]
    %v1421 = vld [vmem:[#allocation8 + $0x228] sm:$0xff]
    %v1422 = vld [vmem:[#allocation8 + $0x230] sm:$0xff]
    %v1423 = vld [vmem:[#allocation8 + $0x238] sm:$0xff]
    %v1424 = vld [vmem:[#allocation8 + $0x240] sm:$0xff]
    %v1425 = vld [vmem:[#allocation8 + $0x248] sm:$0xff]
    %v1426 = vld [vmem:[#allocation8 + $0x250] sm:$0xff]
    %v1427 = vld [vmem:[#allocation8 + $0x258] sm:$0xff]
    %v1428 = vld [vmem:[#allocation8 + $0x260] sm:$0xff]
    %v1429 = vld [vmem:[#allocation8 + $0x268] sm:$0xff]
    %v1430 = vld [vmem:[#allocation8 + $0x270] sm:$0xff]
    %v1431 = vld [vmem:[#allocation8 + $0x278] sm:$0xff]
    %v1432 = vld [vmem:[#allocation8 + $0x280] sm:$0xff]
    %v1433 = vld [vmem:[#allocation8 + $0x288] sm:$0xff]
    %v1434 = vld [vmem:[#allocation8 + $0x290] sm:$0xff]
    %v1435 = vld [vmem:[#allocation8 + $0x298] sm:$0xff]
    %v1436 = vld [vmem:[#allocation8 + $0x2a0] sm:$0xff]
    %v1437 = vld [vmem:[#allocation8 + $0x2a8] sm:$0xff]
    %v1438 = vld [vmem:[#allocation8 + $0x2b0] sm:$0xff]
    %v1439 = vld [vmem:[#allocation8 + $0x2b8] sm:$0xff]
    %v1440 = vld [vmem:[#allocation8 + $0x2c0] sm:$0xff]
    %v1441 = vld [vmem:[#allocation8 + $0x2c8] sm:$0xff]
    %v1442 = vld [vmem:[#allocation8 + $0x2d0] sm:$0xff]
    %v1443 = vld [vmem:[#allocation8 + $0x2d8] sm:$0xff]
    %v1444 = vld [vmem:[#allocation8 + $0x2e0] sm:$0xff]
    %v1445 = vld [vmem:[#allocation8 + $0x2e8] sm:$0xff]
    %v1446 = vld [vmem:[#allocation8 + $0x2f0] sm:$0xff]
    %v1447 = vld [vmem:[#allocation8 + $0x2f8] sm:$0xff]
    %v1448 = vld [vmem:[#allocation8 + $0x300] sm:$0xff]
    %v1449 = vld [vmem:[#allocation8 + $0x308] sm:$0xff]
    %v1450 = vld [vmem:[#allocation8 + $0x310] sm:$0xff]
    %v1451 = vld [vmem:[#allocation8 + $0x318] sm:$0xff]
    %v1452 = vld [vmem:[#allocation8 + $0x320] sm:$0xff]
    %v1453 = vld [vmem:[#allocation8 + $0x328] sm:$0xff]
    %v1454 = vld [vmem:[#allocation8 + $0x330] sm:$0xff]
    %v1455 = vld [vmem:[#allocation8 + $0x338] sm:$0xff]
    %v1456 = vld [vmem:[#allocation8 + $0x340] sm:$0xff]
    %v1457 = vld [vmem:[#allocation8 + $0x348] sm:$0xff]
    %v1458 = vld [vmem:[#allocation8 + $0x350] sm:$0xff]
    %v1459 = vld [vmem:[#allocation8 + $0x358] sm:$0xff]
    %v1460 = vld [vmem:[#allocation8 + $0x360] sm:$0xff]
    %v1461 = vld [vmem:[#allocation8 + $0x368] sm:$0xff]
    %v1462 = vld [vmem:[#allocation8 + $0x370] sm:$0xff]
    %v1463 = vld [vmem:[#allocation8 + $0x378] sm:$0xff]
    %v1464 = vld [vmem:[#allocation8 + $0x380] sm:$0xff]
    %v1465 = vld [vmem:[#allocation8 + $0x388] sm:$0xff]
    %v1466 = vld [vmem:[#allocation8 + $0x390] sm:$0xff]
    %v1467 = vld [vmem:[#allocation8 + $0x398] sm:$0xff]
    %v1468 = vld [vmem:[#allocation8 + $0x3a0] sm:$0xff]
    %v1469 = vld [vmem:[#allocation8 + $0x3a8] sm:$0xff]
    %v1470 = vld [vmem:[#allocation8 + $0x3b0] sm:$0xff]
    %v1471 = vld [vmem:[#allocation8 + $0x3b8] sm:$0xff]
    %v1472 = vld [vmem:[#allocation8 + $0x3c0] sm:$0xff]
    %v1473 = vld [vmem:[#allocation8 + $0x3c8] sm:$0xff]
    %v1474 = vld [vmem:[#allocation8 + $0x3d0] sm:$0xff]
    %v1475 = vld [vmem:[#allocation8 + $0x3d8] sm:$0xff]
    %v1476 = vld [vmem:[#allocation8 + $0x3e0] sm:$0xff]
    %v1477 = vld [vmem:[#allocation8 + $0x3e8] sm:$0xff]
    %v1478 = vld [vmem:[#allocation8 + $0x3f0] sm:$0xff]
    %v1479 = vld [vmem:[#allocation8 + $0x3f8] sm:$0xff]
    %v1480 = vld [vmem:[#allocation8 + $0x400] sm:$0xff]
    %v1481 = vld [vmem:[#allocation8 + $0x408] sm:$0xff]
    %v1482 = vld [vmem:[#allocation8 + $0x410] sm:$0xff]
    %v1483 = vld [vmem:[#allocation8 + $0x418] sm:$0xff]
    %v1484 = vld [vmem:[#allocation8 + $0x420] sm:$0xff]
    %v1485 = vld [vmem:[#allocation8 + $0x428] sm:$0xff]
    %v1486 = vld [vmem:[#allocation8 + $0x430] sm:$0xff]
    %v1487 = vld [vmem:[#allocation8 + $0x438] sm:$0xff]
    %v1488 = vld [vmem:[#allocation8 + $0x440] sm:$0xff]
    %v1489 = vld [vmem:[#allocation8 + $0x448] sm:$0xff]
    %v1490 = vld [vmem:[#allocation8 + $0x450] sm:$0xff]
    %v1491 = vld [vmem:[#allocation8 + $0x458] sm:$0xff]
    %v1492 = vld [vmem:[#allocation8 + $0x460] sm:$0xff]
    %v1493 = vld [vmem:[#allocation8 + $0x468] sm:$0xff]
    %v1494 = vld [vmem:[#allocation8 + $0x470] sm:$0xff]
    %v1495 = vld [vmem:[#allocation8 + $0x478] sm:$0xff]
    %v1496 = vld [vmem:[#allocation8 + $0x480] sm:$0xff]
    %v1497 = vld [vmem:[#allocation8 + $0x488] sm:$0xff]
    %v1498 = vld [vmem:[#allocation8 + $0x490] sm:$0xff]
    %v1499 = vld [vmem:[#allocation8 + $0x498] sm:$0xff]
    %v1500 = vld [vmem:[#allocation8 + $0x4a0] sm:$0xff]
    %v1501 = vld [vmem:[#allocation8 + $0x4a8] sm:$0xff]
    %v1502 = vld [vmem:[#allocation8 + $0x4b0] sm:$0xff]
    %v1503 = vld [vmem:[#allocation8 + $0x4b8] sm:$0xff]
    %v1504 = vld [vmem:[#allocation8 + $0x4c0] sm:$0xff]
    %v1505 = vld [vmem:[#allocation8 + $0x4c8] sm:$0xff]
    %v1506 = vld [vmem:[#allocation8 + $0x4d0] sm:$0xff]
    %v1507 = vld [vmem:[#allocation8 + $0x4d8] sm:$0xff]
    %v1508 = vld [vmem:[#allocation8 + $0x4e0] sm:$0xff]
    %v1509 = vld [vmem:[#allocation8 + $0x4e8] sm:$0xff]
    %v1510 = vld [vmem:[#allocation8 + $0x4f0] sm:$0xff]
    %v1511 = vld [vmem:[#allocation8 + $0x4f8] sm:$0xff]
    %v1512 = vld [vmem:[#allocation8 + $0x500] sm:$0xff]
    %v1513 = vld [vmem:[#allocation8 + $0x508] sm:$0xff]
    %v1514 = vld [vmem:[#allocation8 + $0x510] sm:$0xff]
    %v1515 = vld [vmem:[#allocation8 + $0x518] sm:$0xff]
    %v1516 = vld [vmem:[#allocation8 + $0x520] sm:$0xff]
    %v1517 = vld [vmem:[#allocation8 + $0x528] sm:$0xff]
    %v1518 = vld [vmem:[#allocation8 + $0x530] sm:$0xff]
    %v1519 = vld [vmem:[#allocation8 + $0x538] sm:$0xff]
    %v1520 = vld [vmem:[#allocation8 + $0x540] sm:$0xff]
    %v1521 = vld [vmem:[#allocation8 + $0x548] sm:$0xff]
    %v1522 = vld [vmem:[#allocation8 + $0x550] sm:$0xff]
    %v1523 = vld [vmem:[#allocation8 + $0x558] sm:$0xff]
    %v1524 = vld [vmem:[#allocation8 + $0x560] sm:$0xff]
    %v1525 = vld [vmem:[#allocation8 + $0x568] sm:$0xff]
    %v1526 = vld [vmem:[#allocation8 + $0x570] sm:$0xff]
    %v1527 = vld [vmem:[#allocation8 + $0x578] sm:$0xff]
    %v1528 = vld [vmem:[#allocation8 + $0x580] sm:$0xff]
    %v1529 = vld [vmem:[#allocation8 + $0x588] sm:$0xff]
    %v1530 = vld [vmem:[#allocation8 + $0x590] sm:$0xff]
    %v1531 = vld [vmem:[#allocation8 + $0x598] sm:$0xff]
    %v1532 = vld [vmem:[#allocation8 + $0x5a0] sm:$0xff]
    %v1533 = vld [vmem:[#allocation8 + $0x5a8] sm:$0xff]
    %v1534 = vld [vmem:[#allocation8 + $0x5b0] sm:$0xff]
    %v1535 = vld [vmem:[#allocation8 + $0x5b8] sm:$0xff]
    %v1536 = vld [vmem:[#allocation8 + $0x5c0] sm:$0xff]
    %v1537 = vld [vmem:[#allocation8 + $0x5c8] sm:$0xff]
    %v1538 = vld [vmem:[#allocation8 + $0x5d0] sm:$0xff]
    %v1539 = vld [vmem:[#allocation8 + $0x5d8] sm:$0xff]
    %v1540 = vld [vmem:[#allocation8 + $0x5e0] sm:$0xff]
    %v1541 = vld [vmem:[#allocation8 + $0x5e8] sm:$0xff]
    %v1542 = vld [vmem:[#allocation8 + $0x5f0] sm:$0xff]
    %v1543 = vld [vmem:[#allocation8 + $0x5f8] sm:$0xff]
    %v1544 = vld [vmem:[#allocation8 + $0x600] sm:$0xff]
    %v1545 = vld [vmem:[#allocation8 + $0x608] sm:$0xff]
    %v1546 = vld [vmem:[#allocation8 + $0x610] sm:$0xff]
    %v1547 = vld [vmem:[#allocation8 + $0x618] sm:$0xff]
    %v1548 = vld [vmem:[#allocation8 + $0x620] sm:$0xff]
    %v1549 = vld [vmem:[#allocation8 + $0x628] sm:$0xff]
    %v1550 = vld [vmem:[#allocation8 + $0x630] sm:$0xff]
    %v1551 = vld [vmem:[#allocation8 + $0x638] sm:$0xff]
    %v1552 = vld [vmem:[#allocation8 + $0x640] sm:$0xff]
    %v1553 = vld [vmem:[#allocation8 + $0x648] sm:$0xff]
    %v1554 = vld [vmem:[#allocation8 + $0x650] sm:$0xff]
    %v1555 = vld [vmem:[#allocation8 + $0x658] sm:$0xff]
    %v1556 = vld [vmem:[#allocation8 + $0x660] sm:$0xff]
    %v1557 = vld [vmem:[#allocation8 + $0x668] sm:$0xff]
    %v1558 = vld [vmem:[#allocation8 + $0x670] sm:$0xff]
    %v1559 = vld [vmem:[#allocation8 + $0x678] sm:$0xff]
    %v1560 = vld [vmem:[#allocation8 + $0x680] sm:$0xff]
    %v1561 = vld [vmem:[#allocation8 + $0x688] sm:$0xff]
    %v1562 = vld [vmem:[#allocation8 + $0x690] sm:$0xff]
    %v1563 = vld [vmem:[#allocation8 + $0x698] sm:$0xff]
    %v1564 = vld [vmem:[#allocation8 + $0x6a0] sm:$0xff]
    %v1565 = vld [vmem:[#allocation8 + $0x6a8] sm:$0xff]
    %v1566 = vld [vmem:[#allocation8 + $0x6b0] sm:$0xff]
    %v1567 = vld [vmem:[#allocation8 + $0x6b8] sm:$0xff]
    %v1568 = vld [vmem:[#allocation8 + $0x6c0] sm:$0xff]
    %v1569 = vld [vmem:[#allocation8 + $0x6c8] sm:$0xff]
    %v1570 = vld [vmem:[#allocation8 + $0x6d0] sm:$0xff]
    %v1571 = vld [vmem:[#allocation8 + $0x6d8] sm:$0xff]
    %v1572 = vld [vmem:[#allocation8 + $0x6e0] sm:$0xff]
    %v1573 = vld [vmem:[#allocation8 + $0x6e8] sm:$0xff]
    %v1574 = vld [vmem:[#allocation8 + $0x6f0] sm:$0xff]
    %v1575 = vld [vmem:[#allocation8 + $0x6f8] sm:$0xff]
    %v1576 = vld [vmem:[#allocation8 + $0x700] sm:$0xff]
    %v1577 = vld [vmem:[#allocation8 + $0x708] sm:$0xff]
    %v1578 = vld [vmem:[#allocation8 + $0x710] sm:$0xff]
    %v1579 = vld [vmem:[#allocation8 + $0x718] sm:$0xff]
    %v1580 = vld [vmem:[#allocation8 + $0x720] sm:$0xff]
    %v1581 = vld [vmem:[#allocation8 + $0x728] sm:$0xff]
    %v1582 = vld [vmem:[#allocation8 + $0x730] sm:$0xff]
    %v1583 = vld [vmem:[#allocation8 + $0x738] sm:$0xff]
    %v1584 = vld [vmem:[#allocation8 + $0x740] sm:$0xff]
    %v1585 = vld [vmem:[#allocation8 + $0x748] sm:$0xff]
    %v1586 = vld [vmem:[#allocation8 + $0x750] sm:$0xff]
    %v1587 = vld [vmem:[#allocation8 + $0x758] sm:$0xff]
    %v1588 = vld [vmem:[#allocation8 + $0x760] sm:$0xff]
    %v1589 = vld [vmem:[#allocation8 + $0x768] sm:$0xff]
    %v1590 = vld [vmem:[#allocation8 + $0x770] sm:$0xff]
    %v1591 = vld [vmem:[#allocation8 + $0x778] sm:$0xff]
    %v1592 = vld [vmem:[#allocation8 + $0x780] sm:$0xff]
    %v1593 = vld [vmem:[#allocation8 + $0x788] sm:$0xff]
    %v1594 = vld [vmem:[#allocation8 + $0x790] sm:$0xff]
    %v1595 = vld [vmem:[#allocation8 + $0x798] sm:$0xff]
    %v1596 = vld [vmem:[#allocation8 + $0x7a0] sm:$0xff]
    %v1597 = vld [vmem:[#allocation8 + $0x7a8] sm:$0xff]
    %v1598 = vld [vmem:[#allocation8 + $0x7b0] sm:$0xff]
    %v1599 = vld [vmem:[#allocation8 + $0x7b8] sm:$0xff]
    %v1600 = vld [vmem:[#allocation8 + $0x7c0] sm:$0xff]
    %v1601 = vld [vmem:[#allocation8 + $0x7c8] sm:$0xff]
    %v1602 = vld [vmem:[#allocation8 + $0x7d0] sm:$0xff]
    %v1603 = vld [vmem:[#allocation8 + $0x7d8] sm:$0xff]
    %v1604 = vld [vmem:[#allocation8 + $0x7e0] sm:$0xff]
    %v1605 = vld [vmem:[#allocation8 + $0x7e8] sm:$0xff]
    %v1606 = vld [vmem:[#allocation8 + $0x7f0] sm:$0xff]
    %v1607 = vld [vmem:[#allocation8 + $0x7f8] sm:$0xff]
    %v1608 = vld [vmem:[%s4] sm:$0xf]
    %v1610 = vlaneseq
    %v1611 = vshrl.u32 %v1610, 7
    %v1612 = vsub.s32 0, %v1611
    %v1613 = vrot.slane %v1608, %v1612
    %v1614 = vlaneseq
    %v1615 = vshrl.u32 %v1614, 7
    %v1616 = vsub.s32 1, %v1615
    %v1617 = vrot.slane %v1608, %v1616
    %v1618 = vlaneseq
    %v1619 = vshrl.u32 %v1618, 7
    %v1620 = vsub.s32 2, %v1619
    %v1621 = vrot.slane %v1608, %v1620
    %v1622 = vlaneseq
    %v1623 = vshrl.u32 %v1622, 7
    %v1624 = vsub.s32 3, %v1623
    %v1625 = vrot.slane %v1608, %v1624
    %v1886 = vunpack.c.l.b16 %v1352
    %v1887 = vunpack.c.h.b16 %v1352
    %v1888 = vunpack.c.l.b16 %v1353
    %v1889 = vunpack.c.h.b16 %v1353
    %v1890 = vunpack.c.l.b16 %v1354
    %v1891 = vunpack.c.h.b16 %v1354
    %v1892 = vunpack.c.l.b16 %v1355
    %v1893 = vunpack.c.h.b16 %v1355
    %v1894 = vunpack.c.l.b16 %v1356
    %v1895 = vunpack.c.h.b16 %v1356
    %v1896 = vunpack.c.l.b16 %v1357
    %v1897 = vunpack.c.h.b16 %v1357
    %v1898 = vunpack.c.l.b16 %v1358
    %v1899 = vunpack.c.h.b16 %v1358
    %v1900 = vunpack.c.l.b16 %v1359
    %v1901 = vunpack.c.h.b16 %v1359
    %v1902 = vunpack.c.l.b16 %v1360
    %v1903 = vunpack.c.h.b16 %v1360
    %v1904 = vunpack.c.l.b16 %v1361
    %v1905 = vunpack.c.h.b16 %v1361
    %v1906 = vunpack.c.l.b16 %v1362
    %v1907 = vunpack.c.h.b16 %v1362
    %v1908 = vunpack.c.l.b16 %v1363
    %v1909 = vunpack.c.h.b16 %v1363
    %v1910 = vunpack.c.l.b16 %v1364
    %v1911 = vunpack.c.h.b16 %v1364
    %v1912 = vunpack.c.l.b16 %v1365
    %v1913 = vunpack.c.h.b16 %v1365
    %v1914 = vunpack.c.l.b16 %v1366
    %v1915 = vunpack.c.h.b16 %v1366
    %v1916 = vunpack.c.l.b16 %v1367
    %v1917 = vunpack.c.h.b16 %v1367
    %v1918 = vunpack.c.l.b16 %v1368
    %v1919 = vunpack.c.h.b16 %v1368
    %v1920 = vunpack.c.l.b16 %v1369
    %v1921 = vunpack.c.h.b16 %v1369
    %v1922 = vunpack.c.l.b16 %v1370
    %v1923 = vunpack.c.h.b16 %v1370
    %v1924 = vunpack.c.l.b16 %v1371
    %v1925 = vunpack.c.h.b16 %v1371
    %v1926 = vunpack.c.l.b16 %v1372
    %v1927 = vunpack.c.h.b16 %v1372
    %v1928 = vunpack.c.l.b16 %v1373
    %v1929 = vunpack.c.h.b16 %v1373
    %v1930 = vunpack.c.l.b16 %v1374
    %v1931 = vunpack.c.h.b16 %v1374
    %v1932 = vunpack.c.l.b16 %v1375
    %v1933 = vunpack.c.h.b16 %v1375
    %v1934 = vunpack.c.l.b16 %v1376
    %v1935 = vunpack.c.h.b16 %v1376
    %v1936 = vunpack.c.l.b16 %v1377
    %v1937 = vunpack.c.h.b16 %v1377
    %v1938 = vunpack.c.l.b16 %v1378
    %v1939 = vunpack.c.h.b16 %v1378
    %v1940 = vunpack.c.l.b16 %v1379
    %v1941 = vunpack.c.h.b16 %v1379
    %v1942 = vunpack.c.l.b16 %v1380
    %v1943 = vunpack.c.h.b16 %v1380
    %v1944 = vunpack.c.l.b16 %v1381
    %v1945 = vunpack.c.h.b16 %v1381
    %v1946 = vunpack.c.l.b16 %v1382
    %v1947 = vunpack.c.h.b16 %v1382
    %v1948 = vunpack.c.l.b16 %v1383
    %v1949 = vunpack.c.h.b16 %v1383
    %v1950 = vunpack.c.l.b16 %v1384
    %v1951 = vunpack.c.h.b16 %v1384
    %v1952 = vunpack.c.l.b16 %v1385
    %v1953 = vunpack.c.h.b16 %v1385
    %v1954 = vunpack.c.l.b16 %v1386
    %v1955 = vunpack.c.h.b16 %v1386
    %v1956 = vunpack.c.l.b16 %v1387
    %v1957 = vunpack.c.h.b16 %v1387
    %v1958 = vunpack.c.l.b16 %v1388
    %v1959 = vunpack.c.h.b16 %v1388
    %v1960 = vunpack.c.l.b16 %v1389
    %v1961 = vunpack.c.h.b16 %v1389
    %v1962 = vunpack.c.l.b16 %v1390
    %v1963 = vunpack.c.h.b16 %v1390
    %v1964 = vunpack.c.l.b16 %v1391
    %v1965 = vunpack.c.h.b16 %v1391
    %v1966 = vunpack.c.l.b16 %v1392
    %v1967 = vunpack.c.h.b16 %v1392
    %v1968 = vunpack.c.l.b16 %v1393
    %v1969 = vunpack.c.h.b16 %v1393
    %v1970 = vunpack.c.l.b16 %v1394
    %v1971 = vunpack.c.h.b16 %v1394
    %v1972 = vunpack.c.l.b16 %v1395
    %v1973 = vunpack.c.h.b16 %v1395
    %v1974 = vunpack.c.l.b16 %v1396
    %v1975 = vunpack.c.h.b16 %v1396
    %v1976 = vunpack.c.l.b16 %v1397
    %v1977 = vunpack.c.h.b16 %v1397
    %v1978 = vunpack.c.l.b16 %v1398
    %v1979 = vunpack.c.h.b16 %v1398
    %v1980 = vunpack.c.l.b16 %v1399
    %v1981 = vunpack.c.h.b16 %v1399
    %v1982 = vunpack.c.l.b16 %v1400
    %v1983 = vunpack.c.h.b16 %v1400
    %v1984 = vunpack.c.l.b16 %v1401
    %v1985 = vunpack.c.h.b16 %v1401
    %v1986 = vunpack.c.l.b16 %v1402
    %v1987 = vunpack.c.h.b16 %v1402
    %v1988 = vunpack.c.l.b16 %v1403
    %v1989 = vunpack.c.h.b16 %v1403
    %v1990 = vunpack.c.l.b16 %v1404
    %v1991 = vunpack.c.h.b16 %v1404
    %v1992 = vunpack.c.l.b16 %v1405
    %v1993 = vunpack.c.h.b16 %v1405
    %v1994 = vunpack.c.l.b16 %v1406
    %v1995 = vunpack.c.h.b16 %v1406
    %v1996 = vunpack.c.l.b16 %v1407
    %v1997 = vunpack.c.h.b16 %v1407
    %v1998 = vunpack.c.l.b16 %v1408
    %v1999 = vunpack.c.h.b16 %v1408
    %v2000 = vunpack.c.l.b16 %v1409
    %v2001 = vunpack.c.h.b16 %v1409
    %v2002 = vunpack.c.l.b16 %v1410
    %v2003 = vunpack.c.h.b16 %v1410
    %v2004 = vunpack.c.l.b16 %v1411
    %v2005 = vunpack.c.h.b16 %v1411
    %v2006 = vunpack.c.l.b16 %v1412
    %v2007 = vunpack.c.h.b16 %v1412
    %v2008 = vunpack.c.l.b16 %v1413
    %v2009 = vunpack.c.h.b16 %v1413
    %v2010 = vunpack.c.l.b16 %v1414
    %v2011 = vunpack.c.h.b16 %v1414
    %v2012 = vunpack.c.l.b16 %v1415
    %v2013 = vunpack.c.h.b16 %v1415
    %v2014 = vunpack.c.l.b16 %v1416
    %v2015 = vunpack.c.h.b16 %v1416
    %v2016 = vunpack.c.l.b16 %v1417
    %v2017 = vunpack.c.h.b16 %v1417
    %v2018 = vunpack.c.l.b16 %v1418
    %v2019 = vunpack.c.h.b16 %v1418
    %v2020 = vunpack.c.l.b16 %v1419
    %v2021 = vunpack.c.h.b16 %v1419
    %v2022 = vunpack.c.l.b16 %v1420
    %v2023 = vunpack.c.h.b16 %v1420
    %v2024 = vunpack.c.l.b16 %v1421
    %v2025 = vunpack.c.h.b16 %v1421
    %v2026 = vunpack.c.l.b16 %v1422
    %v2027 = vunpack.c.h.b16 %v1422
    %v2028 = vunpack.c.l.b16 %v1423
    %v2029 = vunpack.c.h.b16 %v1423
    %v2030 = vunpack.c.l.b16 %v1424
    %v2031 = vunpack.c.h.b16 %v1424
    %v2032 = vunpack.c.l.b16 %v1425
    %v2033 = vunpack.c.h.b16 %v1425
    %v2034 = vunpack.c.l.b16 %v1426
    %v2035 = vunpack.c.h.b16 %v1426
    %v2036 = vunpack.c.l.b16 %v1427
    %v2037 = vunpack.c.h.b16 %v1427
    %v2038 = vunpack.c.l.b16 %v1428
    %v2039 = vunpack.c.h.b16 %v1428
    %v2040 = vunpack.c.l.b16 %v1429
    %v2041 = vunpack.c.h.b16 %v1429
    %v2042 = vunpack.c.l.b16 %v1430
    %v2043 = vunpack.c.h.b16 %v1430
    %v2044 = vunpack.c.l.b16 %v1431
    %v2045 = vunpack.c.h.b16 %v1431
    %v2046 = vunpack.c.l.b16 %v1432
    %v2047 = vunpack.c.h.b16 %v1432
    %v2048 = vunpack.c.l.b16 %v1433
    %v2049 = vunpack.c.h.b16 %v1433
    %v2050 = vunpack.c.l.b16 %v1434
    %v2051 = vunpack.c.h.b16 %v1434
    %v2052 = vunpack.c.l.b16 %v1435
    %v2053 = vunpack.c.h.b16 %v1435
    %v2054 = vunpack.c.l.b16 %v1436
    %v2055 = vunpack.c.h.b16 %v1436
    %v2056 = vunpack.c.l.b16 %v1437
    %v2057 = vunpack.c.h.b16 %v1437
    %v2058 = vunpack.c.l.b16 %v1438
    %v2059 = vunpack.c.h.b16 %v1438
    %v2060 = vunpack.c.l.b16 %v1439
    %v2061 = vunpack.c.h.b16 %v1439
    %v2062 = vunpack.c.l.b16 %v1440
    %v2063 = vunpack.c.h.b16 %v1440
    %v2064 = vunpack.c.l.b16 %v1441
    %v2065 = vunpack.c.h.b16 %v1441
    %v2066 = vunpack.c.l.b16 %v1442
    %v2067 = vunpack.c.h.b16 %v1442
    %v2068 = vunpack.c.l.b16 %v1443
    %v2069 = vunpack.c.h.b16 %v1443
    %v2070 = vunpack.c.l.b16 %v1444
    %v2071 = vunpack.c.h.b16 %v1444
    %v2072 = vunpack.c.l.b16 %v1445
    %v2073 = vunpack.c.h.b16 %v1445
    %v2074 = vunpack.c.l.b16 %v1446
    %v2075 = vunpack.c.h.b16 %v1446
    %v2076 = vunpack.c.l.b16 %v1447
    %v2077 = vunpack.c.h.b16 %v1447
    %v2078 = vunpack.c.l.b16 %v1448
    %v2079 = vunpack.c.h.b16 %v1448
    %v2080 = vunpack.c.l.b16 %v1449
    %v2081 = vunpack.c.h.b16 %v1449
    %v2082 = vunpack.c.l.b16 %v1450
    %v2083 = vunpack.c.h.b16 %v1450
    %v2084 = vunpack.c.l.b16 %v1451
    %v2085 = vunpack.c.h.b16 %v1451
    %v2086 = vunpack.c.l.b16 %v1452
    %v2087 = vunpack.c.h.b16 %v1452
    %v2088 = vunpack.c.l.b16 %v1453
    %v2089 = vunpack.c.h.b16 %v1453
    %v2090 = vunpack.c.l.b16 %v1454
    %v2091 = vunpack.c.h.b16 %v1454
    %v2092 = vunpack.c.l.b16 %v1455
    %v2093 = vunpack.c.h.b16 %v1455
    %v2094 = vunpack.c.l.b16 %v1456
    %v2095 = vunpack.c.h.b16 %v1456
    %v2096 = vunpack.c.l.b16 %v1457
    %v2097 = vunpack.c.h.b16 %v1457
    %v2098 = vunpack.c.l.b16 %v1458
    %v2099 = vunpack.c.h.b16 %v1458
    %v2100 = vunpack.c.l.b16 %v1459
    %v2101 = vunpack.c.h.b16 %v1459
    %v2102 = vunpack.c.l.b16 %v1460
    %v2103 = vunpack.c.h.b16 %v1460
    %v2104 = vunpack.c.l.b16 %v1461
    %v2105 = vunpack.c.h.b16 %v1461
    %v2106 = vunpack.c.l.b16 %v1462
    %v2107 = vunpack.c.h.b16 %v1462
    %v2108 = vunpack.c.l.b16 %v1463
    %v2109 = vunpack.c.h.b16 %v1463
    %v2110 = vunpack.c.l.b16 %v1464
    %v2111 = vunpack.c.h.b16 %v1464
    %v2112 = vunpack.c.l.b16 %v1465
    %v2113 = vunpack.c.h.b16 %v1465
    %v2114 = vunpack.c.l.b16 %v1466
    %v2115 = vunpack.c.h.b16 %v1466
    %v2116 = vunpack.c.l.b16 %v1467
    %v2117 = vunpack.c.h.b16 %v1467
    %v2118 = vunpack.c.l.b16 %v1468
    %v2119 = vunpack.c.h.b16 %v1468
    %v2120 = vunpack.c.l.b16 %v1469
    %v2121 = vunpack.c.h.b16 %v1469
    %v2122 = vunpack.c.l.b16 %v1470
    %v2123 = vunpack.c.h.b16 %v1470
    %v2124 = vunpack.c.l.b16 %v1471
    %v2125 = vunpack.c.h.b16 %v1471
    %v2126 = vunpack.c.l.b16 %v1472
    %v2127 = vunpack.c.h.b16 %v1472
    %v2128 = vunpack.c.l.b16 %v1473
    %v2129 = vunpack.c.h.b16 %v1473
    %v2130 = vunpack.c.l.b16 %v1474
    %v2131 = vunpack.c.h.b16 %v1474
    %v2132 = vunpack.c.l.b16 %v1475
    %v2133 = vunpack.c.h.b16 %v1475
    %v2134 = vunpack.c.l.b16 %v1476
    %v2135 = vunpack.c.h.b16 %v1476
    %v2136 = vunpack.c.l.b16 %v1477
    %v2137 = vunpack.c.h.b16 %v1477
    %v2138 = vunpack.c.l.b16 %v1478
    %v2139 = vunpack.c.h.b16 %v1478
    %v2140 = vunpack.c.l.b16 %v1479
    %v2141 = vunpack.c.h.b16 %v1479
    %v2142 = vunpack.c.l.b16 %v1480
    %v2143 = vunpack.c.h.b16 %v1480
    %v2144 = vunpack.c.l.b16 %v1481
    %v2145 = vunpack.c.h.b16 %v1481
    %v2146 = vunpack.c.l.b16 %v1482
    %v2147 = vunpack.c.h.b16 %v1482
    %v2148 = vunpack.c.l.b16 %v1483
    %v2149 = vunpack.c.h.b16 %v1483
    %v2150 = vunpack.c.l.b16 %v1484
    %v2151 = vunpack.c.h.b16 %v1484
    %v2152 = vunpack.c.l.b16 %v1485
    %v2153 = vunpack.c.h.b16 %v1485
    %v2154 = vunpack.c.l.b16 %v1486
    %v2155 = vunpack.c.h.b16 %v1486
    %v2156 = vunpack.c.l.b16 %v1487
    %v2157 = vunpack.c.h.b16 %v1487
    %v2158 = vunpack.c.l.b16 %v1488
    %v2159 = vunpack.c.h.b16 %v1488
    %v2160 = vunpack.c.l.b16 %v1489
    %v2161 = vunpack.c.h.b16 %v1489
    %v2162 = vunpack.c.l.b16 %v1490
    %v2163 = vunpack.c.h.b16 %v1490
    %v2164 = vunpack.c.l.b16 %v1491
    %v2165 = vunpack.c.h.b16 %v1491
    %v2166 = vunpack.c.l.b16 %v1492
    %v2167 = vunpack.c.h.b16 %v1492
    %v2168 = vunpack.c.l.b16 %v1493
    %v2169 = vunpack.c.h.b16 %v1493
    %v2170 = vunpack.c.l.b16 %v1494
    %v2171 = vunpack.c.h.b16 %v1494
    %v2172 = vunpack.c.l.b16 %v1495
    %v2173 = vunpack.c.h.b16 %v1495
    %v2174 = vunpack.c.l.b16 %v1496
    %v2175 = vunpack.c.h.b16 %v1496
    %v2176 = vunpack.c.l.b16 %v1497
    %v2177 = vunpack.c.h.b16 %v1497
    %v2178 = vunpack.c.l.b16 %v1498
    %v2179 = vunpack.c.h.b16 %v1498
    %v2180 = vunpack.c.l.b16 %v1499
    %v2181 = vunpack.c.h.b16 %v1499
    %v2182 = vunpack.c.l.b16 %v1500
    %v2183 = vunpack.c.h.b16 %v1500
    %v2184 = vunpack.c.l.b16 %v1501
    %v2185 = vunpack.c.h.b16 %v1501
    %v2186 = vunpack.c.l.b16 %v1502
    %v2187 = vunpack.c.h.b16 %v1502
    %v2188 = vunpack.c.l.b16 %v1503
    %v2189 = vunpack.c.h.b16 %v1503
    %v2190 = vunpack.c.l.b16 %v1504
    %v2191 = vunpack.c.h.b16 %v1504
    %v2192 = vunpack.c.l.b16 %v1505
    %v2193 = vunpack.c.h.b16 %v1505
    %v2194 = vunpack.c.l.b16 %v1506
    %v2195 = vunpack.c.h.b16 %v1506
    %v2196 = vunpack.c.l.b16 %v1507
    %v2197 = vunpack.c.h.b16 %v1507
    %v2198 = vunpack.c.l.b16 %v1508
    %v2199 = vunpack.c.h.b16 %v1508
    %v2200 = vunpack.c.l.b16 %v1509
    %v2201 = vunpack.c.h.b16 %v1509
    %v2202 = vunpack.c.l.b16 %v1510
    %v2203 = vunpack.c.h.b16 %v1510
    %v2204 = vunpack.c.l.b16 %v1511
    %v2205 = vunpack.c.h.b16 %v1511
    %v2206 = vunpack.c.l.b16 %v1512
    %v2207 = vunpack.c.h.b16 %v1512
    %v2208 = vunpack.c.l.b16 %v1513
    %v2209 = vunpack.c.h.b16 %v1513
    %v2210 = vunpack.c.l.b16 %v1514
    %v2211 = vunpack.c.h.b16 %v1514
    %v2212 = vunpack.c.l.b16 %v1515
    %v2213 = vunpack.c.h.b16 %v1515
    %v2214 = vunpack.c.l.b16 %v1516
    %v2215 = vunpack.c.h.b16 %v1516
    %v2216 = vunpack.c.l.b16 %v1517
    %v2217 = vunpack.c.h.b16 %v1517
    %v2218 = vunpack.c.l.b16 %v1518
    %v2219 = vunpack.c.h.b16 %v1518
    %v2220 = vunpack.c.l.b16 %v1519
    %v2221 = vunpack.c.h.b16 %v1519
    %v2222 = vunpack.c.l.b16 %v1520
    %v2223 = vunpack.c.h.b16 %v1520
    %v2224 = vunpack.c.l.b16 %v1521
    %v2225 = vunpack.c.h.b16 %v1521
    %v2226 = vunpack.c.l.b16 %v1522
    %v2227 = vunpack.c.h.b16 %v1522
    %v2228 = vunpack.c.l.b16 %v1523
    %v2229 = vunpack.c.h.b16 %v1523
    %v2230 = vunpack.c.l.b16 %v1524
    %v2231 = vunpack.c.h.b16 %v1524
    %v2232 = vunpack.c.l.b16 %v1525
    %v2233 = vunpack.c.h.b16 %v1525
    %v2234 = vunpack.c.l.b16 %v1526
    %v2235 = vunpack.c.h.b16 %v1526
    %v2236 = vunpack.c.l.b16 %v1527
    %v2237 = vunpack.c.h.b16 %v1527
    %v2238 = vunpack.c.l.b16 %v1528
    %v2239 = vunpack.c.h.b16 %v1528
    %v2240 = vunpack.c.l.b16 %v1529
    %v2241 = vunpack.c.h.b16 %v1529
    %v2242 = vunpack.c.l.b16 %v1530
    %v2243 = vunpack.c.h.b16 %v1530
    %v2244 = vunpack.c.l.b16 %v1531
    %v2245 = vunpack.c.h.b16 %v1531
    %v2246 = vunpack.c.l.b16 %v1532
    %v2247 = vunpack.c.h.b16 %v1532
    %v2248 = vunpack.c.l.b16 %v1533
    %v2249 = vunpack.c.h.b16 %v1533
    %v2250 = vunpack.c.l.b16 %v1534
    %v2251 = vunpack.c.h.b16 %v1534
    %v2252 = vunpack.c.l.b16 %v1535
    %v2253 = vunpack.c.h.b16 %v1535
    %v2254 = vunpack.c.l.b16 %v1536
    %v2255 = vunpack.c.h.b16 %v1536
    %v2256 = vunpack.c.l.b16 %v1537
    %v2257 = vunpack.c.h.b16 %v1537
    %v2258 = vunpack.c.l.b16 %v1538
    %v2259 = vunpack.c.h.b16 %v1538
    %v2260 = vunpack.c.l.b16 %v1539
    %v2261 = vunpack.c.h.b16 %v1539
    %v2262 = vunpack.c.l.b16 %v1540
    %v2263 = vunpack.c.h.b16 %v1540
    %v2264 = vunpack.c.l.b16 %v1541
    %v2265 = vunpack.c.h.b16 %v1541
    %v2266 = vunpack.c.l.b16 %v1542
    %v2267 = vunpack.c.h.b16 %v1542
    %v2268 = vunpack.c.l.b16 %v1543
    %v2269 = vunpack.c.h.b16 %v1543
    %v2270 = vunpack.c.l.b16 %v1544
    %v2271 = vunpack.c.h.b16 %v1544
    %v2272 = vunpack.c.l.b16 %v1545
    %v2273 = vunpack.c.h.b16 %v1545
    %v2274 = vunpack.c.l.b16 %v1546
    %v2275 = vunpack.c.h.b16 %v1546
    %v2276 = vunpack.c.l.b16 %v1547
    %v2277 = vunpack.c.h.b16 %v1547
    %v2278 = vunpack.c.l.b16 %v1548
    %v2279 = vunpack.c.h.b16 %v1548
    %v2280 = vunpack.c.l.b16 %v1549
    %v2281 = vunpack.c.h.b16 %v1549
    %v2282 = vunpack.c.l.b16 %v1550
    %v2283 = vunpack.c.h.b16 %v1550
    %v2284 = vunpack.c.l.b16 %v1551
    %v2285 = vunpack.c.h.b16 %v1551
    %v2286 = vunpack.c.l.b16 %v1552
    %v2287 = vunpack.c.h.b16 %v1552
    %v2288 = vunpack.c.l.b16 %v1553
    %v2289 = vunpack.c.h.b16 %v1553
    %v2290 = vunpack.c.l.b16 %v1554
    %v2291 = vunpack.c.h.b16 %v1554
    %v2292 = vunpack.c.l.b16 %v1555
    %v2293 = vunpack.c.h.b16 %v1555
    %v2294 = vunpack.c.l.b16 %v1556
    %v2295 = vunpack.c.h.b16 %v1556
    %v2296 = vunpack.c.l.b16 %v1557
    %v2297 = vunpack.c.h.b16 %v1557
    %v2298 = vunpack.c.l.b16 %v1558
    %v2299 = vunpack.c.h.b16 %v1558
    %v2300 = vunpack.c.l.b16 %v1559
    %v2301 = vunpack.c.h.b16 %v1559
    %v2302 = vunpack.c.l.b16 %v1560
    %v2303 = vunpack.c.h.b16 %v1560
    %v2304 = vunpack.c.l.b16 %v1561
    %v2305 = vunpack.c.h.b16 %v1561
    %v2306 = vunpack.c.l.b16 %v1562
    %v2307 = vunpack.c.h.b16 %v1562
    %v2308 = vunpack.c.l.b16 %v1563
    %v2309 = vunpack.c.h.b16 %v1563
    %v2310 = vunpack.c.l.b16 %v1564
    %v2311 = vunpack.c.h.b16 %v1564
    %v2312 = vunpack.c.l.b16 %v1565
    %v2313 = vunpack.c.h.b16 %v1565
    %v2314 = vunpack.c.l.b16 %v1566
    %v2315 = vunpack.c.h.b16 %v1566
    %v2316 = vunpack.c.l.b16 %v1567
    %v2317 = vunpack.c.h.b16 %v1567
    %v2318 = vunpack.c.l.b16 %v1568
    %v2319 = vunpack.c.h.b16 %v1568
    %v2320 = vunpack.c.l.b16 %v1569
    %v2321 = vunpack.c.h.b16 %v1569
    %v2322 = vunpack.c.l.b16 %v1570
    %v2323 = vunpack.c.h.b16 %v1570
    %v2324 = vunpack.c.l.b16 %v1571
    %v2325 = vunpack.c.h.b16 %v1571
    %v2326 = vunpack.c.l.b16 %v1572
    %v2327 = vunpack.c.h.b16 %v1572
    %v2328 = vunpack.c.l.b16 %v1573
    %v2329 = vunpack.c.h.b16 %v1573
    %v2330 = vunpack.c.l.b16 %v1574
    %v2331 = vunpack.c.h.b16 %v1574
    %v2332 = vunpack.c.l.b16 %v1575
    %v2333 = vunpack.c.h.b16 %v1575
    %v2334 = vunpack.c.l.b16 %v1576
    %v2335 = vunpack.c.h.b16 %v1576
    %v2336 = vunpack.c.l.b16 %v1577
    %v2337 = vunpack.c.h.b16 %v1577
    %v2338 = vunpack.c.l.b16 %v1578
    %v2339 = vunpack.c.h.b16 %v1578
    %v2340 = vunpack.c.l.b16 %v1579
    %v2341 = vunpack.c.h.b16 %v1579
    %v2342 = vunpack.c.l.b16 %v1580
    %v2343 = vunpack.c.h.b16 %v1580
    %v2344 = vunpack.c.l.b16 %v1581
    %v2345 = vunpack.c.h.b16 %v1581
    %v2346 = vunpack.c.l.b16 %v1582
    %v2347 = vunpack.c.h.b16 %v1582
    %v2348 = vunpack.c.l.b16 %v1583
    %v2349 = vunpack.c.h.b16 %v1583
    %v2350 = vunpack.c.l.b16 %v1584
    %v2351 = vunpack.c.h.b16 %v1584
    %v2352 = vunpack.c.l.b16 %v1585
    %v2353 = vunpack.c.h.b16 %v1585
    %v2354 = vunpack.c.l.b16 %v1586
    %v2355 = vunpack.c.h.b16 %v1586
    %v2356 = vunpack.c.l.b16 %v1587
    %v2357 = vunpack.c.h.b16 %v1587
    %v2358 = vunpack.c.l.b16 %v1588
    %v2359 = vunpack.c.h.b16 %v1588
    %v2360 = vunpack.c.l.b16 %v1589
    %v2361 = vunpack.c.h.b16 %v1589
    %v2362 = vunpack.c.l.b16 %v1590
    %v2363 = vunpack.c.h.b16 %v1590
    %v2364 = vunpack.c.l.b16 %v1591
    %v2365 = vunpack.c.h.b16 %v1591
    %v2366 = vunpack.c.l.b16 %v1592
    %v2367 = vunpack.c.h.b16 %v1592
    %v2368 = vunpack.c.l.b16 %v1593
    %v2369 = vunpack.c.h.b16 %v1593
    %v2370 = vunpack.c.l.b16 %v1594
    %v2371 = vunpack.c.h.b16 %v1594
    %v2372 = vunpack.c.l.b16 %v1595
    %v2373 = vunpack.c.h.b16 %v1595
    %v2374 = vunpack.c.l.b16 %v1596
    %v2375 = vunpack.c.h.b16 %v1596
    %v2376 = vunpack.c.l.b16 %v1597
    %v2377 = vunpack.c.h.b16 %v1597
    %v2378 = vunpack.c.l.b16 %v1598
    %v2379 = vunpack.c.h.b16 %v1598
    %v2380 = vunpack.c.l.b16 %v1599
    %v2381 = vunpack.c.h.b16 %v1599
    %v2382 = vunpack.c.l.b16 %v1600
    %v2383 = vunpack.c.h.b16 %v1600
    %v2384 = vunpack.c.l.b16 %v1601
    %v2385 = vunpack.c.h.b16 %v1601
    %v2386 = vunpack.c.l.b16 %v1602
    %v2387 = vunpack.c.h.b16 %v1602
    %v2388 = vunpack.c.l.b16 %v1603
    %v2389 = vunpack.c.h.b16 %v1603
    %v2390 = vunpack.c.l.b16 %v1604
    %v2391 = vunpack.c.h.b16 %v1604
    %v2392 = vunpack.c.l.b16 %v1605
    %v2393 = vunpack.c.h.b16 %v1605
    %v2394 = vunpack.c.l.b16 %v1606
    %v2395 = vunpack.c.h.b16 %v1606
    %v2396 = vunpack.c.l.b16 %v1607
    %v2397 = vunpack.c.h.b16 %v1607
    %v2398 = vpack.c.b16 %v1890, %v1886
    %v2399 = vpack.c.b16 %v1891, %v1887
    %v2400 = vpack.c.b16 %v1892, %v1888
    %v2401 = vpack.c.b16 %v1893, %v1889
    %v2402 = vpack.c.b16 %v1898, %v1894
    %v2403 = vpack.c.b16 %v1899, %v1895
    %v2404 = vpack.c.b16 %v1900, %v1896
    %v2405 = vpack.c.b16 %v1901, %v1897
    %v2406 = vpack.c.b16 %v1906, %v1902
    %v2407 = vpack.c.b16 %v1907, %v1903
    %v2408 = vpack.c.b16 %v1908, %v1904
    %v2409 = vpack.c.b16 %v1909, %v1905
    %v2410 = vpack.c.b16 %v1914, %v1910
    %v2411 = vpack.c.b16 %v1915, %v1911
    %v2412 = vpack.c.b16 %v1916, %v1912
    %v2413 = vpack.c.b16 %v1917, %v1913
    %v2414 = vpack.c.b16 %v1922, %v1918
    %v2415 = vpack.c.b16 %v1923, %v1919
    %v2416 = vpack.c.b16 %v1924, %v1920
    %v2417 = vpack.c.b16 %v1925, %v1921
    %v2418 = vpack.c.b16 %v1930, %v1926
    %v2419 = vpack.c.b16 %v1931, %v1927
    %v2420 = vpack.c.b16 %v1932, %v1928
    %v2421 = vpack.c.b16 %v1933, %v1929
    %v2422 = vpack.c.b16 %v1938, %v1934
    %v2423 = vpack.c.b16 %v1939, %v1935
    %v2424 = vpack.c.b16 %v1940, %v1936
    %v2425 = vpack.c.b16 %v1941, %v1937
    %v2426 = vpack.c.b16 %v1946, %v1942
    %v2427 = vpack.c.b16 %v1947, %v1943
    %v2428 = vpack.c.b16 %v1948, %v1944
    %v2429 = vpack.c.b16 %v1949, %v1945
    %v2430 = vpack.c.b16 %v1954, %v1950
    %v2431 = vpack.c.b16 %v1955, %v1951
    %v2432 = vpack.c.b16 %v1956, %v1952
    %v2433 = vpack.c.b16 %v1957, %v1953
    %v2434 = vpack.c.b16 %v1962, %v1958
    %v2435 = vpack.c.b16 %v1963, %v1959
    %v2436 = vpack.c.b16 %v1964, %v1960
    %v2437 = vpack.c.b16 %v1965, %v1961
    %v2438 = vpack.c.b16 %v1970, %v1966
    %v2439 = vpack.c.b16 %v1971, %v1967
    %v2440 = vpack.c.b16 %v1972, %v1968
    %v2441 = vpack.c.b16 %v1973, %v1969
    %v2442 = vpack.c.b16 %v1978, %v1974
    %v2443 = vpack.c.b16 %v1979, %v1975
    %v2444 = vpack.c.b16 %v1980, %v1976
    %v2445 = vpack.c.b16 %v1981, %v1977
    %v2446 = vpack.c.b16 %v1986, %v1982
    %v2447 = vpack.c.b16 %v1987, %v1983
    %v2448 = vpack.c.b16 %v1988, %v1984
    %v2449 = vpack.c.b16 %v1989, %v1985
    %v2450 = vpack.c.b16 %v1994, %v1990
    %v2451 = vpack.c.b16 %v1995, %v1991
    %v2452 = vpack.c.b16 %v1996, %v1992
    %v2453 = vpack.c.b16 %v1997, %v1993
    %v2454 = vpack.c.b16 %v2002, %v1998
    %v2455 = vpack.c.b16 %v2003, %v1999
    %v2456 = vpack.c.b16 %v2004, %v2000
    %v2457 = vpack.c.b16 %v2005, %v2001
    %v2458 = vpack.c.b16 %v2010, %v2006
    %v2459 = vpack.c.b16 %v2011, %v2007
    %v2460 = vpack.c.b16 %v2012, %v2008
    %v2461 = vpack.c.b16 %v2013, %v2009
    %v2462 = vpack.c.b16 %v2018, %v2014
    %v2463 = vpack.c.b16 %v2019, %v2015
    %v2464 = vpack.c.b16 %v2020, %v2016
    %v2465 = vpack.c.b16 %v2021, %v2017
    %v2466 = vpack.c.b16 %v2026, %v2022
    %v2467 = vpack.c.b16 %v2027, %v2023
    %v2468 = vpack.c.b16 %v2028, %v2024
    %v2469 = vpack.c.b16 %v2029, %v2025
    %v2470 = vpack.c.b16 %v2034, %v2030
    %v2471 = vpack.c.b16 %v2035, %v2031
    %v2472 = vpack.c.b16 %v2036, %v2032
    %v2473 = vpack.c.b16 %v2037, %v2033
    %v2474 = vpack.c.b16 %v2042, %v2038
    %v2475 = vpack.c.b16 %v2043, %v2039
    %v2476 = vpack.c.b16 %v2044, %v2040
    %v2477 = vpack.c.b16 %v2045, %v2041
    %v2478 = vpack.c.b16 %v2050, %v2046
    %v2479 = vpack.c.b16 %v2051, %v2047
    %v2480 = vpack.c.b16 %v2052, %v2048
    %v2481 = vpack.c.b16 %v2053, %v2049
    %v2482 = vpack.c.b16 %v2058, %v2054
    %v2483 = vpack.c.b16 %v2059, %v2055
    %v2484 = vpack.c.b16 %v2060, %v2056
    %v2485 = vpack.c.b16 %v2061, %v2057
    %v2486 = vpack.c.b16 %v2066, %v2062
    %v2487 = vpack.c.b16 %v2067, %v2063
    %v2488 = vpack.c.b16 %v2068, %v2064
    %v2489 = vpack.c.b16 %v2069, %v2065
    %v2490 = vpack.c.b16 %v2074, %v2070
    %v2491 = vpack.c.b16 %v2075, %v2071
    %v2492 = vpack.c.b16 %v2076, %v2072
    %v2493 = vpack.c.b16 %v2077, %v2073
    %v2494 = vpack.c.b16 %v2082, %v2078
    %v2495 = vpack.c.b16 %v2083, %v2079
    %v2496 = vpack.c.b16 %v2084, %v2080
    %v2497 = vpack.c.b16 %v2085, %v2081
    %v2498 = vpack.c.b16 %v2090, %v2086
    %v2499 = vpack.c.b16 %v2091, %v2087
    %v2500 = vpack.c.b16 %v2092, %v2088
    %v2501 = vpack.c.b16 %v2093, %v2089
    %v2502 = vpack.c.b16 %v2098, %v2094
    %v2503 = vpack.c.b16 %v2099, %v2095
    %v2504 = vpack.c.b16 %v2100, %v2096
    %v2505 = vpack.c.b16 %v2101, %v2097
    %v2506 = vpack.c.b16 %v2106, %v2102
    %v2507 = vpack.c.b16 %v2107, %v2103
    %v2508 = vpack.c.b16 %v2108, %v2104
    %v2509 = vpack.c.b16 %v2109, %v2105
    %v2510 = vpack.c.b16 %v2114, %v2110
    %v2511 = vpack.c.b16 %v2115, %v2111
    %v2512 = vpack.c.b16 %v2116, %v2112
    %v2513 = vpack.c.b16 %v2117, %v2113
    %v2514 = vpack.c.b16 %v2122, %v2118
    %v2515 = vpack.c.b16 %v2123, %v2119
    %v2516 = vpack.c.b16 %v2124, %v2120
    %v2517 = vpack.c.b16 %v2125, %v2121
    %v2518 = vpack.c.b16 %v2130, %v2126
    %v2519 = vpack.c.b16 %v2131, %v2127
    %v2520 = vpack.c.b16 %v2132, %v2128
    %v2521 = vpack.c.b16 %v2133, %v2129
    %v2522 = vpack.c.b16 %v2138, %v2134
    %v2523 = vpack.c.b16 %v2139, %v2135
    %v2524 = vpack.c.b16 %v2140, %v2136
    %v2525 = vpack.c.b16 %v2141, %v2137
    %v2526 = vpack.c.b16 %v2146, %v2142
    %v2527 = vpack.c.b16 %v2147, %v2143
    %v2528 = vpack.c.b16 %v2148, %v2144
    %v2529 = vpack.c.b16 %v2149, %v2145
    %v2530 = vpack.c.b16 %v2154, %v2150
    %v2531 = vpack.c.b16 %v2155, %v2151
    %v2532 = vpack.c.b16 %v2156, %v2152
    %v2533 = vpack.c.b16 %v2157, %v2153
    %v2534 = vpack.c.b16 %v2162, %v2158
    %v2535 = vpack.c.b16 %v2163, %v2159
    %v2536 = vpack.c.b16 %v2164, %v2160
    %v2537 = vpack.c.b16 %v2165, %v2161
    %v2538 = vpack.c.b16 %v2170, %v2166
    %v2539 = vpack.c.b16 %v2171, %v2167
    %v2540 = vpack.c.b16 %v2172, %v2168
    %v2541 = vpack.c.b16 %v2173, %v2169
    %v2542 = vpack.c.b16 %v2178, %v2174
    %v2543 = vpack.c.b16 %v2179, %v2175
    %v2544 = vpack.c.b16 %v2180, %v2176
    %v2545 = vpack.c.b16 %v2181, %v2177
    %v2546 = vpack.c.b16 %v2186, %v2182
    %v2547 = vpack.c.b16 %v2187, %v2183
    %v2548 = vpack.c.b16 %v2188, %v2184
    %v2549 = vpack.c.b16 %v2189, %v2185
    %v2550 = vpack.c.b16 %v2194, %v2190
    %v2551 = vpack.c.b16 %v2195, %v2191
    %v2552 = vpack.c.b16 %v2196, %v2192
    %v2553 = vpack.c.b16 %v2197, %v2193
    %v2554 = vpack.c.b16 %v2202, %v2198
    %v2555 = vpack.c.b16 %v2203, %v2199
    %v2556 = vpack.c.b16 %v2204, %v2200
    %v2557 = vpack.c.b16 %v2205, %v2201
    %v2558 = vpack.c.b16 %v2210, %v2206
    %v2559 = vpack.c.b16 %v2211, %v2207
    %v2560 = vpack.c.b16 %v2212, %v2208
    %v2561 = vpack.c.b16 %v2213, %v2209
    %v2562 = vpack.c.b16 %v2218, %v2214
    %v2563 = vpack.c.b16 %v2219, %v2215
    %v2564 = vpack.c.b16 %v2220, %v2216
    %v2565 = vpack.c.b16 %v2221, %v2217
    %v2566 = vpack.c.b16 %v2226, %v2222
    %v2567 = vpack.c.b16 %v2227, %v2223
    %v2568 = vpack.c.b16 %v2228, %v2224
    %v2569 = vpack.c.b16 %v2229, %v2225
    %v2570 = vpack.c.b16 %v2234, %v2230
    %v2571 = vpack.c.b16 %v2235, %v2231
    %v2572 = vpack.c.b16 %v2236, %v2232
    %v2573 = vpack.c.b16 %v2237, %v2233
    %v2574 = vpack.c.b16 %v2242, %v2238
    %v2575 = vpack.c.b16 %v2243, %v2239
    %v2576 = vpack.c.b16 %v2244, %v2240
    %v2577 = vpack.c.b16 %v2245, %v2241
    %v2578 = vpack.c.b16 %v2250, %v2246
    %v2579 = vpack.c.b16 %v2251, %v2247
    %v2580 = vpack.c.b16 %v2252, %v2248
    %v2581 = vpack.c.b16 %v2253, %v2249
    %v2582 = vpack.c.b16 %v2258, %v2254
    %v2583 = vpack.c.b16 %v2259, %v2255
    %v2584 = vpack.c.b16 %v2260, %v2256
    %v2585 = vpack.c.b16 %v2261, %v2257
    %v2586 = vpack.c.b16 %v2266, %v2262
    %v2587 = vpack.c.b16 %v2267, %v2263
    %v2588 = vpack.c.b16 %v2268, %v2264
    %v2589 = vpack.c.b16 %v2269, %v2265
    %v2590 = vpack.c.b16 %v2274, %v2270
    %v2591 = vpack.c.b16 %v2275, %v2271
    %v2592 = vpack.c.b16 %v2276, %v2272
    %v2593 = vpack.c.b16 %v2277, %v2273
    %v2594 = vpack.c.b16 %v2282, %v2278
    %v2595 = vpack.c.b16 %v2283, %v2279
    %v2596 = vpack.c.b16 %v2284, %v2280
    %v2597 = vpack.c.b16 %v2285, %v2281
    %v2598 = vpack.c.b16 %v2290, %v2286
    %v2599 = vpack.c.b16 %v2291, %v2287
    %v2600 = vpack.c.b16 %v2292, %v2288
    %v2601 = vpack.c.b16 %v2293, %v2289
    %v2602 = vpack.c.b16 %v2298, %v2294
    %v2603 = vpack.c.b16 %v2299, %v2295
    %v2604 = vpack.c.b16 %v2300, %v2296
    %v2605 = vpack.c.b16 %v2301, %v2297
    %v2606 = vpack.c.b16 %v2306, %v2302
    %v2607 = vpack.c.b16 %v2307, %v2303
    %v2608 = vpack.c.b16 %v2308, %v2304
    %v2609 = vpack.c.b16 %v2309, %v2305
    %v2610 = vpack.c.b16 %v2314, %v2310
    %v2611 = vpack.c.b16 %v2315, %v2311
    %v2612 = vpack.c.b16 %v2316, %v2312
    %v2613 = vpack.c.b16 %v2317, %v2313
    %v2614 = vpack.c.b16 %v2322, %v2318
    %v2615 = vpack.c.b16 %v2323, %v2319
    %v2616 = vpack.c.b16 %v2324, %v2320
    %v2617 = vpack.c.b16 %v2325, %v2321
    %v2618 = vpack.c.b16 %v2330, %v2326
    %v2619 = vpack.c.b16 %v2331, %v2327
    %v2620 = vpack.c.b16 %v2332, %v2328
    %v2621 = vpack.c.b16 %v2333, %v2329
    %v2622 = vpack.c.b16 %v2338, %v2334
    %v2623 = vpack.c.b16 %v2339, %v2335
    %v2624 = vpack.c.b16 %v2340, %v2336
    %v2625 = vpack.c.b16 %v2341, %v2337
    %v2626 = vpack.c.b16 %v2346, %v2342
    %v2627 = vpack.c.b16 %v2347, %v2343
    %v2628 = vpack.c.b16 %v2348, %v2344
    %v2629 = vpack.c.b16 %v2349, %v2345
    %v2630 = vpack.c.b16 %v2354, %v2350
    %v2631 = vpack.c.b16 %v2355, %v2351
    %v2632 = vpack.c.b16 %v2356, %v2352
    %v2633 = vpack.c.b16 %v2357, %v2353
    %v2634 = vpack.c.b16 %v2362, %v2358
    %v2635 = vpack.c.b16 %v2363, %v2359
    %v2636 = vpack.c.b16 %v2364, %v2360
    %v2637 = vpack.c.b16 %v2365, %v2361
    %v2638 = vpack.c.b16 %v2370, %v2366
    %v2639 = vpack.c.b16 %v2371, %v2367
    %v2640 = vpack.c.b16 %v2372, %v2368
    %v2641 = vpack.c.b16 %v2373, %v2369
    %v2642 = vpack.c.b16 %v2378, %v2374
    %v2643 = vpack.c.b16 %v2379, %v2375
    %v2644 = vpack.c.b16 %v2380, %v2376
    %v2645 = vpack.c.b16 %v2381, %v2377
    %v2646 = vpack.c.b16 %v2386, %v2382
    %v2647 = vpack.c.b16 %v2387, %v2383
    %v2648 = vpack.c.b16 %v2388, %v2384
    %v2649 = vpack.c.b16 %v2389, %v2385
    %v2650 = vpack.c.b16 %v2394, %v2390
    %v2651 = vpack.c.b16 %v2395, %v2391
    %v2652 = vpack.c.b16 %v2396, %v2392
    %v2653 = vpack.c.b16 %v2397, %v2393
    %2910 = vmatprep.subr.bf16.mxu0 %v2399
    %2911 = vmatpush1.bf16.msra.mxu0 %v2398
    %2912 = vmatprep.subr.bf16.mxu0 %v2403
    %2913 = vmatpush1.bf16.msra.mxu0 %v2402
    %2914 = vmatprep.subr.bf16.mxu0 %v2407
    %2915 = vmatpush1.bf16.msra.mxu0 %v2406
    %2916 = vmatprep.subr.bf16.mxu0 %v2411
    %2917 = vmatpush1.bf16.msra.mxu0 %v2410
    %2918 = vmatprep.subr.bf16.mxu0 %v2415
    %2919 = vmatpush1.bf16.msra.mxu0 %v2414
    %2920 = vmatprep.subr.bf16.mxu0 %v2419
    %2921 = vmatpush1.bf16.msra.mxu0 %v2418
    %2922 = vmatprep.subr.bf16.mxu0 %v2423
    %2923 = vmatpush1.bf16.msra.mxu0 %v2422
    %2924 = vmatprep.subr.bf16.mxu0 %v2427
    %2925 = vmatpush1.bf16.msra.mxu0 %v2426
    %2926 = vmatprep.subr.bf16.mxu0 %v2431
    %2927 = vmatpush1.bf16.msra.mxu0 %v2430
    %2928 = vmatprep.subr.bf16.mxu0 %v2435
    %2929 = vmatpush1.bf16.msra.mxu0 %v2434
    %2930 = vmatprep.subr.bf16.mxu0 %v2439
    %2931 = vmatpush1.bf16.msra.mxu0 %v2438
    %2932 = vmatprep.subr.bf16.mxu0 %v2443
    %2933 = vmatpush1.bf16.msra.mxu0 %v2442
    %2934 = vmatprep.subr.bf16.mxu0 %v2447
    %2935 = vmatpush1.bf16.msra.mxu0 %v2446
    %2936 = vmatprep.subr.bf16.mxu0 %v2451
    %2937 = vmatpush1.bf16.msra.mxu0 %v2450
    %2938 = vmatprep.subr.bf16.mxu0 %v2455
    %2939 = vmatpush1.bf16.msra.mxu0 %v2454
    %2940 = vmatprep.subr.bf16.mxu0 %v2459
    %2941 = vmatpush1.bf16.msra.mxu0 %v2458
    %2942 = vmatprep.mubr.bf16.mxu0 %v1289
    %2943 = vmatmul.mubr.bf16.gmra.mrb[0].mxu0 %v1288
    %v2944 = vpop.f32.mrb[0].mxu0
    %v2945 = vadd.f32 %v1613, %v2944
    %v2946 = vpop.f32.mrb[0].mxu0
    %v2947 = vadd.f32 %v1617, %v2946
    %v2948 = vpop.f32.mrb[0].mxu0
    %v2949 = vadd.f32 %v1613, %v2948
    %v2950 = vpop.f32.mrb[0].mxu0
    %v2951 = vadd.f32 %v1617, %v2950
    %2952 = vmatprep.mubr.bf16.mxu0 %v1297
    %2953 = vmatmul.mubr.bf16.gmra.mrb[0].mxu0 %v1296
    %v2954 = vpop.f32.mrb[0].mxu0
    %v2955 = vadd.f32 %v1613, %v2954
    %v2956 = vpop.f32.mrb[0].mxu0
    %v2957 = vadd.f32 %v1617, %v2956
    %v2958 = vpop.f32.mrb[0].mxu0
    %v2959 = vadd.f32 %v1613, %v2958
    %v2960 = vpop.f32.mrb[0].mxu0
    %v2961 = vadd.f32 %v1617, %v2960
    %2962 = vmatprep.mubr.bf16.mxu0 %v1305
    %2963 = vmatmul.mubr.bf16.gmra.mrb[0].mxu0 %v1304
    %v2964 = vpop.f32.mrb[0].mxu0
    %v2965 = vadd.f32 %v1613, %v2964
    %v2966 = vpop.f32.mrb[0].mxu0
    %v2967 = vadd.f32 %v1617, %v2966
    %v2968 = vpop.f32.mrb[0].mxu0
    %v2969 = vadd.f32 %v1613, %v2968
    %v2970 = vpop.f32.mrb[0].mxu0
    %v2971 = vadd.f32 %v1617, %v2970
    %2972 = vmatprep.mubr.bf16.mxu0 %v1313
    %2973 = vmatmul.mubr.bf16.gmra.mrb[0].mxu0 %v1312
    %v2974 = vpop.f32.mrb[0].mxu0
    %v2975 = vadd.f32 %v1613, %v2974
    %v2976 = vpop.f32.mrb[0].mxu0
    %v2977 = vadd.f32 %v1617, %v2976
    %v2978 = vpop.f32.mrb[0].mxu0
    %v2979 = vadd.f32 %v1613, %v2978
    %v2980 = vpop.f32.mrb[0].mxu0
    %v2981 = vadd.f32 %v1617, %v2980
    %2982 = vmatprep.mubr.bf16.mxu0 %v1321
    %2983 = vmatmul.mubr.bf16.gmra.mrb[0].mxu0 %v1320
    %v2984 = vpop.f32.mrb[0].mxu0
    %v2985 = vadd.f32 %v1613, %v2984
    %v2986 = vpop.f32.mrb[0].mxu0
    %v2987 = vadd.f32 %v1617, %v2986
    %v2988 = vpop.f32.mrb[0].mxu0
    %v2989 = vadd.f32 %v1613, %v2988
    %v2990 = vpop.f32.mrb[0].mxu0
    %v2991 = vadd.f32 %v1617, %v2990
    %2992 = vmatprep.mubr.bf16.mxu0 %v1329
    %2993 = vmatmul.mubr.bf16.gmra.mrb[0].mxu0 %v1328
    %v2994 = vpop.f32.mrb[0].mxu0
    %v2995 = vadd.f32 %v1613, %v2994
    %v2996 = vpop.f32.mrb[0].mxu0
    %v2997 = vadd.f32 %v1617, %v2996
    %v2998 = vpop.f32.mrb[0].mxu0
    %v2999 = vadd.f32 %v1613, %v2998
    %v3000 = vpop.f32.mrb[0].mxu0
    %v3001 = vadd.f32 %v1617, %v3000
    %3002 = vmatprep.mubr.bf16.mxu0 %v1337
    %3003 = vmatmul.mubr.bf16.gmra.mrb[0].mxu0 %v1336
    %v3004 = vpop.f32.mrb[0].mxu0
    %v3005 = vadd.f32 %v1613, %v3004
    %v3006 = vpop.f32.mrb[0].mxu0
    %v3007 = vadd.f32 %v1617, %v3006
    %v3008 = vpop.f32.mrb[0].mxu0
    %v3009 = vadd.f32 %v1613, %v3008
    %v3010 = vpop.f32.mrb[0].mxu0
    %v3011 = vadd.f32 %v1617, %v3010
    %3012 = vmatprep.mubr.bf16.mxu0 %v1345
    %3013 = vmatmul.mubr.bf16.gmra.mrb[0].mxu0 %v1344
    %v3014 = vpop.f32.mrb[0].mxu0
    %v3015 = vadd.f32 %v1613, %v3014
    %v3016 = vpop.f32.mrb[0].mxu0
    %v3017 = vadd.f32 %v1617, %v3016
    %v3018 = vpop.f32.mrb[0].mxu0
    %v3019 = vadd.f32 %v1613, %v3018
    %v3020 = vpop.f32.mrb[0].mxu0
    %v3021 = vadd.f32 %v1617, %v3020
    %3022 = vdwg.mxu0
    %3023 = vmatprep.subr.bf16.mxu0 %v2463
    %3024 = vmatpush1.bf16.msra.mxu0 %v2462
    %3025 = vmatprep.subr.bf16.mxu0 %v2467
    %3026 = vmatpush1.bf16.msra.mxu0 %v2466
    %3027 = vmatprep.subr.bf16.mxu0 %v2471
    %3028 = vmatpush1.bf16.msra.mxu0 %v2470
    %3029 = vmatprep.subr.bf16.mxu0 %v2475
    %3030 = vmatpush1.bf16.msra.mxu0 %v2474
    %3031 = vmatprep.subr.bf16.mxu0 %v2479
    %3032 = vmatpush1.bf16.msra.mxu0 %v2478
    %3033 = vmatprep.subr.bf16.mxu0 %v2483
    %3034 = vmatpush1.bf16.msra.mxu0 %v2482
    %3035 = vmatprep.subr.bf16.mxu0 %v2487
    %3036 = vmatpush1.bf16.msra.mxu0 %v2486
    %3037 = vmatprep.subr.bf16.mxu0 %v2491
    %3038 = vmatpush1.bf16.msra.mxu0 %v2490
    %3039 = vmatprep.subr.bf16.mxu0 %v2495
    %3040 = vmatpush1.bf16.msra.mxu0 %v2494
    %3041 = vmatprep.subr.bf16.mxu0 %v2499
    %3042 = vmatpush1.bf16.msra.mxu0 %v2498
    %3043 = vmatprep.subr.bf16.mxu0 %v2503
    %3044 = vmatpush1.bf16.msra.mxu0 %v2502
    %3045 = vmatprep.subr.bf16.mxu0 %v2507
    %3046 = vmatpush1.bf16.msra.mxu0 %v2506
    %3047 = vmatprep.subr.bf16.mxu0 %v2511
    %3048 = vmatpush1.bf16.msra.mxu0 %v2510
    %3049 = vmatprep.subr.bf16.mxu0 %v2515
    %3050 = vmatpush1.bf16.msra.mxu0 %v2514
    %3051 = vmatprep.subr.bf16.mxu0 %v2519
    %3052 = vmatpush1.bf16.msra.mxu0 %v2518
    %3053 = vmatprep.subr.bf16.mxu0 %v2523
    %3054 = vmatpush1.bf16.msra.mxu0 %v2522
    %3055 = vmatprep.mubr.bf16.mxu0 %v1291
    %3056 = vmatmul.mubr.bf16.gmra.mrb[0].mxu0 %v1290
    %v3057 = vpop.f32.mrb[0].mxu0
    %v3058 = vadd.f32 %v2945, %v3057
    %v3059 = vpop.f32.mrb[0].mxu0
    %v3060 = vadd.f32 %v2947, %v3059
    %v3061 = vpop.f32.mrb[0].mxu0
    %v3062 = vadd.f32 %v2949, %v3061
    %v3063 = vpop.f32.mrb[0].mxu0
    %v3064 = vadd.f32 %v2951, %v3063
    %3065 = vmatprep.mubr.bf16.mxu0 %v1299
    %3066 = vmatmul.mubr.bf16.gmra.mrb[0].mxu0 %v1298
    %v3067 = vpop.f32.mrb[0].mxu0
    %v3068 = vadd.f32 %v2955, %v3067
    %v3069 = vpop.f32.mrb[0].mxu0
    %v3070 = vadd.f32 %v2957, %v3069
    %v3071 = vpop.f32.mrb[0].mxu0
    %v3072 = vadd.f32 %v2959, %v3071
    %v3073 = vpop.f32.mrb[0].mxu0
    %v3074 = vadd.f32 %v2961, %v3073
    %3075 = vmatprep.mubr.bf16.mxu0 %v1307
    %3076 = vmatmul.mubr.bf16.gmra.mrb[0].mxu0 %v1306
    %v3077 = vpop.f32.mrb[0].mxu0
    %v3078 = vadd.f32 %v2965, %v3077
    %v3079 = vpop.f32.mrb[0].mxu0
    %v3080 = vadd.f32 %v2967, %v3079
    %v3081 = vpop.f32.mrb[0].mxu0
    %v3082 = vadd.f32 %v2969, %v3081
    %v3083 = vpop.f32.mrb[0].mxu0
    %v3084 = vadd.f32 %v2971, %v3083
    %3085 = vmatprep.mubr.bf16.mxu0 %v1315
    %3086 = vmatmul.mubr.bf16.gmra.mrb[0].mxu0 %v1314
    %v3087 = vpop.f32.mrb[0].mxu0
    %v3088 = vadd.f32 %v2975, %v3087
    %v3089 = vpop.f32.mrb[0].mxu0
    %v3090 = vadd.f32 %v2977, %v3089
    %v3091 = vpop.f32.mrb[0].mxu0
    %v3092 = vadd.f32 %v2979, %v3091
    %v3093 = vpop.f32.mrb[0].mxu0
    %v3094 = vadd.f32 %v2981, %v3093
    %3095 = vmatprep.mubr.bf16.mxu0 %v1323
    %3096 = vmatmul.mubr.bf16.gmra.mrb[0].mxu0 %v1322
    %v3097 = vpop.f32.mrb[0].mxu0
    %v3098 = vadd.f32 %v2985, %v3097
    %v3099 = vpop.f32.mrb[0].mxu0
    %v3100 = vadd.f32 %v2987, %v3099
    %v3101 = vpop.f32.mrb[0].mxu0
    %v3102 = vadd.f32 %v2989, %v3101
    %v3103 = vpop.f32.mrb[0].mxu0
    %v3104 = vadd.f32 %v2991, %v3103
    %3105 = vmatprep.mubr.bf16.mxu0 %v1331
    %3106 = vmatmul.mubr.bf16.gmra.mrb[0].mxu0 %v1330
    %v3107 = vpop.f32.mrb[0].mxu0
    %v3108 = vadd.f32 %v2995, %v3107
    %v3109 = vpop.f32.mrb[0].mxu0
    %v3110 = vadd.f32 %v2997, %v3109
    %v3111 = vpop.f32.mrb[0].mxu0
    %v3112 = vadd.f32 %v2999, %v3111
    %v3113 = vpop.f32.mrb[0].mxu0
    %v3114 = vadd.f32 %v3001, %v3113
    %3115 = vmatprep.mubr.bf16.mxu0 %v1339
    %3116 = vmatmul.mubr.bf16.gmra.mrb[0].mxu0 %v1338
    %v3117 = vpop.f32.mrb[0].mxu0
    %v3118 = vadd.f32 %v3005, %v3117
    %v3119 = vpop.f32.mrb[0].mxu0
    %v3120 = vadd.f32 %v3007, %v3119
    %v3121 = vpop.f32.mrb[0].mxu0
    %v3122 = vadd.f32 %v3009, %v3121
    %v3123 = vpop.f32.mrb[0].mxu0
    %v3124 = vadd.f32 %v3011, %v3123
    %3125 = vmatprep.mubr.bf16.mxu0 %v1347
    %3126 = vmatmul.mubr.bf16.gmra.mrb[0].mxu0 %v1346
    %v3127 = vpop.f32.mrb[0].mxu0
    %v3128 = vadd.f32 %v3015, %v3127
    %v3129 = vpop.f32.mrb[0].mxu0
    %v3130 = vadd.f32 %v3017, %v3129
    %v3131 = vpop.f32.mrb[0].mxu0
    %v3132 = vadd.f32 %v3019, %v3131
    %v3133 = vpop.f32.mrb[0].mxu0
    %v3134 = vadd.f32 %v3021, %v3133
    %3135 = vdwg.mxu0
    %3136 = vmatprep.subr.bf16.mxu0 %v2527
    %3137 = vmatpush1.bf16.msra.mxu0 %v2526
    %3138 = vmatprep.subr.bf16.mxu0 %v2531
    %3139 = vmatpush1.bf16.msra.mxu0 %v2530
    %3140 = vmatprep.subr.bf16.mxu0 %v2535
    %3141 = vmatpush1.bf16.msra.mxu0 %v2534
    %3142 = vmatprep.subr.bf16.mxu0 %v2539
    %3143 = vmatpush1.bf16.msra.mxu0 %v2538
    %3144 = vmatprep.subr.bf16.mxu0 %v2543
    %3145 = vmatpush1.bf16.msra.mxu0 %v2542
    %3146 = vmatprep.subr.bf16.mxu0 %v2547
    %3147 = vmatpush1.bf16.msra.mxu0 %v2546
    %3148 = vmatprep.subr.bf16.mxu0 %v2551
    %3149 = vmatpush1.bf16.msra.mxu0 %v2550
    %3150 = vmatprep.subr.bf16.mxu0 %v2555
    %3151 = vmatpush1.bf16.msra.mxu0 %v2554
    %3152 = vmatprep.subr.bf16.mxu0 %v2559
    %3153 = vmatpush1.bf16.msra.mxu0 %v2558
    %3154 = vmatprep.subr.bf16.mxu0 %v2563
    %3155 = vmatpush1.bf16.msra.mxu0 %v2562
    %3156 = vmatprep.subr.bf16.mxu0 %v2567
    %3157 = vmatpush1.bf16.msra.mxu0 %v2566
    %3158 = vmatprep.subr.bf16.mxu0 %v2571
    %3159 = vmatpush1.bf16.msra.mxu0 %v2570
    %3160 = vmatprep.subr.bf16.mxu0 %v2575
    %3161 = vmatpush1.bf16.msra.mxu0 %v2574
    %3162 = vmatprep.subr.bf16.mxu0 %v2579
    %3163 = vmatpush1.bf16.msra.mxu0 %v2578
    %3164 = vmatprep.subr.bf16.mxu0 %v2583
    %3165 = vmatpush1.bf16.msra.mxu0 %v2582
    %3166 = vmatprep.subr.bf16.mxu0 %v2587
    %3167 = vmatpush1.bf16.msra.mxu0 %v2586
    %3168 = vmatprep.mubr.bf16.mxu0 %v1293
    %3169 = vmatmul.mubr.bf16.gmra.mrb[0].mxu0 %v1292
    %v3170 = vpop.f32.mrb[0].mxu0
    %v3171 = vadd.f32 %v3058, %v3170
    %v3172 = vpop.f32.mrb[0].mxu0
    %v3173 = vadd.f32 %v3060, %v3172
    %v3174 = vpop.f32.mrb[0].mxu0
    %v3175 = vadd.f32 %v3062, %v3174
    %v3176 = vpop.f32.mrb[0].mxu0
    %v3177 = vadd.f32 %v3064, %v3176
    %3178 = vmatprep.mubr.bf16.mxu0 %v1301
    %3179 = vmatmul.mubr.bf16.gmra.mrb[0].mxu0 %v1300
    %v3180 = vpop.f32.mrb[0].mxu0
    %v3181 = vadd.f32 %v3068, %v3180
    %v3182 = vpop.f32.mrb[0].mxu0
    %v3183 = vadd.f32 %v3070, %v3182
    %v3184 = vpop.f32.mrb[0].mxu0
    %v3185 = vadd.f32 %v3072, %v3184
    %v3186 = vpop.f32.mrb[0].mxu0
    %v3187 = vadd.f32 %v3074, %v3186
    %3188 = vmatprep.mubr.bf16.mxu0 %v1309
    %3189 = vmatmul.mubr.bf16.gmra.mrb[0].mxu0 %v1308
    %v3190 = vpop.f32.mrb[0].mxu0
    %v3191 = vadd.f32 %v3078, %v3190
    %v3192 = vpop.f32.mrb[0].mxu0
    %v3193 = vadd.f32 %v3080, %v3192
    %v3194 = vpop.f32.mrb[0].mxu0
    %v3195 = vadd.f32 %v3082, %v3194
    %v3196 = vpop.f32.mrb[0].mxu0
    %v3197 = vadd.f32 %v3084, %v3196
    %3198 = vmatprep.mubr.bf16.mxu0 %v1317
    %3199 = vmatmul.mubr.bf16.gmra.mrb[0].mxu0 %v1316
    %v3200 = vpop.f32.mrb[0].mxu0
    %v3201 = vadd.f32 %v3088, %v3200
    %v3202 = vpop.f32.mrb[0].mxu0
    %v3203 = vadd.f32 %v3090, %v3202
    %v3204 = vpop.f32.mrb[0].mxu0
    %v3205 = vadd.f32 %v3092, %v3204
    %v3206 = vpop.f32.mrb[0].mxu0
    %v3207 = vadd.f32 %v3094, %v3206
    %3208 = vmatprep.mubr.bf16.mxu0 %v1325
    %3209 = vmatmul.mubr.bf16.gmra.mrb[0].mxu0 %v1324
    %v3210 = vpop.f32.mrb[0].mxu0
    %v3211 = vadd.f32 %v3098, %v3210
    %v3212 = vpop.f32.mrb[0].mxu0
    %v3213 = vadd.f32 %v3100, %v3212
    %v3214 = vpop.f32.mrb[0].mxu0
    %v3215 = vadd.f32 %v3102, %v3214
    %v3216 = vpop.f32.mrb[0].mxu0
    %v3217 = vadd.f32 %v3104, %v3216
    %3218 = vmatprep.mubr.bf16.mxu0 %v1333
    %3219 = vmatmul.mubr.bf16.gmra.mrb[0].mxu0 %v1332
    %v3220 = vpop.f32.mrb[0].mxu0
    %v3221 = vadd.f32 %v3108, %v3220
    %v3222 = vpop.f32.mrb[0].mxu0
    %v3223 = vadd.f32 %v3110, %v3222
    %v3224 = vpop.f32.mrb[0].mxu0
    %v3225 = vadd.f32 %v3112, %v3224
    %v3226 = vpop.f32.mrb[0].mxu0
    %v3227 = vadd.f32 %v3114, %v3226
    %3228 = vmatprep.mubr.bf16.mxu0 %v1341
    %3229 = vmatmul.mubr.bf16.gmra.mrb[0].mxu0 %v1340
    %v3230 = vpop.f32.mrb[0].mxu0
    %v3231 = vadd.f32 %v3118, %v3230
    %v3232 = vpop.f32.mrb[0].mxu0
    %v3233 = vadd.f32 %v3120, %v3232
    %v3234 = vpop.f32.mrb[0].mxu0
    %v3235 = vadd.f32 %v3122, %v3234
    %v3236 = vpop.f32.mrb[0].mxu0
    %v3237 = vadd.f32 %v3124, %v3236
    %3238 = vmatprep.mubr.bf16.mxu0 %v1349
    %3239 = vmatmul.mubr.bf16.gmra.mrb[0].mxu0 %v1348
    %v3240 = vpop.f32.mrb[0].mxu0
    %v3241 = vadd.f32 %v3128, %v3240
    %v3242 = vpop.f32.mrb[0].mxu0
    %v3243 = vadd.f32 %v3130, %v3242
    %v3244 = vpop.f32.mrb[0].mxu0
    %v3245 = vadd.f32 %v3132, %v3244
    %v3246 = vpop.f32.mrb[0].mxu0
    %v3247 = vadd.f32 %v3134, %v3246
    %3248 = vdwg.mxu0
    %3249 = vmatprep.subr.bf16.mxu0 %v2591
    %3250 = vmatpush1.bf16.msra.mxu0 %v2590
    %3251 = vmatprep.subr.bf16.mxu0 %v2595
    %3252 = vmatpush1.bf16.msra.mxu0 %v2594
    %3253 = vmatprep.subr.bf16.mxu0 %v2599
    %3254 = vmatpush1.bf16.msra.mxu0 %v2598
    %3255 = vmatprep.subr.bf16.mxu0 %v2603
    %3256 = vmatpush1.bf16.msra.mxu0 %v2602
    %3257 = vmatprep.subr.bf16.mxu0 %v2607
    %3258 = vmatpush1.bf16.msra.mxu0 %v2606
    %3259 = vmatprep.subr.bf16.mxu0 %v2611
    %3260 = vmatpush1.bf16.msra.mxu0 %v2610
    %3261 = vmatprep.subr.bf16.mxu0 %v2615
    %3262 = vmatpush1.bf16.msra.mxu0 %v2614
    %3263 = vmatprep.subr.bf16.mxu0 %v2619
    %3264 = vmatpush1.bf16.msra.mxu0 %v2618
    %3265 = vmatprep.subr.bf16.mxu0 %v2623
    %3266 = vmatpush1.bf16.msra.mxu0 %v2622
    %3267 = vmatprep.subr.bf16.mxu0 %v2627
    %3268 = vmatpush1.bf16.msra.mxu0 %v2626
    %3269 = vmatprep.subr.bf16.mxu0 %v2631
    %3270 = vmatpush1.bf16.msra.mxu0 %v2630
    %3271 = vmatprep.subr.bf16.mxu0 %v2635
    %3272 = vmatpush1.bf16.msra.mxu0 %v2634
    %3273 = vmatprep.subr.bf16.mxu0 %v2639
    %3274 = vmatpush1.bf16.msra.mxu0 %v2638
    %3275 = vmatprep.subr.bf16.mxu0 %v2643
    %3276 = vmatpush1.bf16.msra.mxu0 %v2642
    %3277 = vmatprep.subr.bf16.mxu0 %v2647
    %3278 = vmatpush1.bf16.msra.mxu0 %v2646
    %3279 = vmatprep.subr.bf16.mxu0 %v2651
    %3280 = vmatpush1.bf16.msra.mxu0 %v2650
    %3281 = vmatprep.mubr.bf16.mxu0 %v1295
    %3282 = vmatmul.mubr.bf16.gmra.mrb[0].mxu0 %v1294
    %v3283 = vpop.f32.mrb[0].mxu0
    %v3284 = vadd.f32 %v3171, %v3283
    %v3285 = vpop.f32.mrb[0].mxu0
    %v3286 = vadd.f32 %v3173, %v3285
    %v3287 = vpop.f32.mrb[0].mxu0
    %v3288 = vadd.f32 %v3175, %v3287
    %v3289 = vpop.f32.mrb[0].mxu0
    %v3290 = vadd.f32 %v3177, %v3289
    %3291 = vmatprep.mubr.bf16.mxu0 %v1303
    %3292 = vmatmul.mubr.bf16.gmra.mrb[0].mxu0 %v1302
    %v3293 = vpop.f32.mrb[0].mxu0
    %v3294 = vadd.f32 %v3181, %v3293
    %v3295 = vpop.f32.mrb[0].mxu0
    %v3296 = vadd.f32 %v3183, %v3295
    %v3297 = vpop.f32.mrb[0].mxu0
    %v3298 = vadd.f32 %v3185, %v3297
    %v3299 = vpop.f32.mrb[0].mxu0
    %v3300 = vadd.f32 %v3187, %v3299
    %3301 = vmatprep.mubr.bf16.mxu0 %v1311
    %3302 = vmatmul.mubr.bf16.gmra.mrb[0].mxu0 %v1310
    %v3303 = vpop.f32.mrb[0].mxu0
    %v3304 = vadd.f32 %v3191, %v3303
    %v3305 = vpop.f32.mrb[0].mxu0
    %v3306 = vadd.f32 %v3193, %v3305
    %v3307 = vpop.f32.mrb[0].mxu0
    %v3308 = vadd.f32 %v3195, %v3307
    %v3309 = vpop.f32.mrb[0].mxu0
    %v3310 = vadd.f32 %v3197, %v3309
    %3311 = vmatprep.mubr.bf16.mxu0 %v1319
    %3312 = vmatmul.mubr.bf16.gmra.mrb[0].mxu0 %v1318
    %v3313 = vpop.f32.mrb[0].mxu0
    %v3314 = vadd.f32 %v3201, %v3313
    %v3315 = vpop.f32.mrb[0].mxu0
    %v3316 = vadd.f32 %v3203, %v3315
    %v3317 = vpop.f32.mrb[0].mxu0
    %v3318 = vadd.f32 %v3205, %v3317
    %v3319 = vpop.f32.mrb[0].mxu0
    %v3320 = vadd.f32 %v3207, %v3319
    %3321 = vmatprep.mubr.bf16.mxu0 %v1327
    %3322 = vmatmul.mubr.bf16.gmra.mrb[0].mxu0 %v1326
    %v3323 = vpop.f32.mrb[0].mxu0
    %v3324 = vadd.f32 %v3211, %v3323
    %v3325 = vpop.f32.mrb[0].mxu0
    %v3326 = vadd.f32 %v3213, %v3325
    %v3327 = vpop.f32.mrb[0].mxu0
    %v3328 = vadd.f32 %v3215, %v3327
    %v3329 = vpop.f32.mrb[0].mxu0
    %v3330 = vadd.f32 %v3217, %v3329
    %3331 = vmatprep.mubr.bf16.mxu0 %v1335
    %3332 = vmatmul.mubr.bf16.gmra.mrb[0].mxu0 %v1334
    %v3333 = vpop.f32.mrb[0].mxu0
    %v3334 = vadd.f32 %v3221, %v3333
    %v3335 = vpop.f32.mrb[0].mxu0
    %v3336 = vadd.f32 %v3223, %v3335
    %v3337 = vpop.f32.mrb[0].mxu0
    %v3338 = vadd.f32 %v3225, %v3337
    %v3339 = vpop.f32.mrb[0].mxu0
    %v3340 = vadd.f32 %v3227, %v3339
    %3341 = vmatprep.mubr.bf16.mxu0 %v1343
    %3342 = vmatmul.mubr.bf16.gmra.mrb[0].mxu0 %v1342
    %v3343 = vpop.f32.mrb[0].mxu0
    %v3344 = vadd.f32 %v3231, %v3343
    %v3345 = vpop.f32.mrb[0].mxu0
    %v3346 = vadd.f32 %v3233, %v3345
    %v3347 = vpop.f32.mrb[0].mxu0
    %v3348 = vadd.f32 %v3235, %v3347
    %v3349 = vpop.f32.mrb[0].mxu0
    %v3350 = vadd.f32 %v3237, %v3349
    %3351 = vmatprep.mubr.bf16.mxu0 %v1351
    %3352 = vmatmul.mubr.bf16.gmra.mrb[0].mxu0 %v1350
    %v3353 = vpop.f32.mrb[0].mxu0
    %v3354 = vadd.f32 %v3241, %v3353
    %v3355 = vpop.f32.mrb[0].mxu0
    %v3356 = vadd.f32 %v3243, %v3355
    %v3357 = vpop.f32.mrb[0].mxu0
    %v3358 = vadd.f32 %v3245, %v3357
    %v3359 = vpop.f32.mrb[0].mxu0
    %v3360 = vadd.f32 %v3247, %v3359
    %3361 = vdwg.mxu0
    %3362 = vmatprep.subr.bf16.mxu0 %v2401
    %3363 = vmatpush1.bf16.msra.mxu0 %v2400
    %3364 = vmatprep.subr.bf16.mxu0 %v2405
    %3365 = vmatpush1.bf16.msra.mxu0 %v2404
    %3366 = vmatprep.subr.bf16.mxu0 %v2409
    %3367 = vmatpush1.bf16.msra.mxu0 %v2408
    %3368 = vmatprep.subr.bf16.mxu0 %v2413
    %3369 = vmatpush1.bf16.msra.mxu0 %v2412
    %3370 = vmatprep.subr.bf16.mxu0 %v2417
    %3371 = vmatpush1.bf16.msra.mxu0 %v2416
    %3372 = vmatprep.subr.bf16.mxu0 %v2421
    %3373 = vmatpush1.bf16.msra.mxu0 %v2420
    %3374 = vmatprep.subr.bf16.mxu0 %v2425
    %3375 = vmatpush1.bf16.msra.mxu0 %v2424
    %3376 = vmatprep.subr.bf16.mxu0 %v2429
    %3377 = vmatpush1.bf16.msra.mxu0 %v2428
    %3378 = vmatprep.subr.bf16.mxu0 %v2433
    %3379 = vmatpush1.bf16.msra.mxu0 %v2432
    %3380 = vmatprep.subr.bf16.mxu0 %v2437
    %3381 = vmatpush1.bf16.msra.mxu0 %v2436
    %3382 = vmatprep.subr.bf16.mxu0 %v2441
    %3383 = vmatpush1.bf16.msra.mxu0 %v2440
    %3384 = vmatprep.subr.bf16.mxu0 %v2445
    %3385 = vmatpush1.bf16.msra.mxu0 %v2444
    %3386 = vmatprep.subr.bf16.mxu0 %v2449
    %3387 = vmatpush1.bf16.msra.mxu0 %v2448
    %3388 = vmatprep.subr.bf16.mxu0 %v2453
    %3389 = vmatpush1.bf16.msra.mxu0 %v2452
    %3390 = vmatprep.subr.bf16.mxu0 %v2457
    %3391 = vmatpush1.bf16.msra.mxu0 %v2456
    %3392 = vmatprep.subr.bf16.mxu0 %v2461
    %3393 = vmatpush1.bf16.msra.mxu0 %v2460
    %3394 = vmatprep.mubr.bf16.mxu0 %v1289
    %3395 = vmatmul.mubr.bf16.gmra.mrb[0].mxu0 %v1288
    %v3396 = vpop.f32.mrb[0].mxu0
    %v3397 = vadd.f32 %v1621, %v3396
    %v3398 = vpop.f32.mrb[0].mxu0
    %v3399 = vadd.f32 %v1625, %v3398
    %v3400 = vpop.f32.mrb[0].mxu0
    %v3401 = vadd.f32 %v1621, %v3400
    %v3402 = vpop.f32.mrb[0].mxu0
    %v3403 = vadd.f32 %v1625, %v3402
    %3404 = vmatprep.mubr.bf16.mxu0 %v1297
    %3405 = vmatmul.mubr.bf16.gmra.mrb[0].mxu0 %v1296
    %v3406 = vpop.f32.mrb[0].mxu0
    %v3407 = vadd.f32 %v1621, %v3406
    %v3408 = vpop.f32.mrb[0].mxu0
    %v3409 = vadd.f32 %v1625, %v3408
    %v3410 = vpop.f32.mrb[0].mxu0
    %v3411 = vadd.f32 %v1621, %v3410
    %v3412 = vpop.f32.mrb[0].mxu0
    %v3413 = vadd.f32 %v1625, %v3412
    %3414 = vmatprep.mubr.bf16.mxu0 %v1305
    %3415 = vmatmul.mubr.bf16.gmra.mrb[0].mxu0 %v1304
    %v3416 = vpop.f32.mrb[0].mxu0
    %v3417 = vadd.f32 %v1621, %v3416
    %v3418 = vpop.f32.mrb[0].mxu0
    %v3419 = vadd.f32 %v1625, %v3418
    %v3420 = vpop.f32.mrb[0].mxu0
    %v3421 = vadd.f32 %v1621, %v3420
    %v3422 = vpop.f32.mrb[0].mxu0
    %v3423 = vadd.f32 %v1625, %v3422
    %3424 = vmatprep.mubr.bf16.mxu0 %v1313
    %3425 = vmatmul.mubr.bf16.gmra.mrb[0].mxu0 %v1312
    %v3426 = vpop.f32.mrb[0].mxu0
    %v3427 = vadd.f32 %v1621, %v3426
    %v3428 = vpop.f32.mrb[0].mxu0
    %v3429 = vadd.f32 %v1625, %v3428
    %v3430 = vpop.f32.mrb[0].mxu0
    %v3431 = vadd.f32 %v1621, %v3430
    %v3432 = vpop.f32.mrb[0].mxu0
    %v3433 = vadd.f32 %v1625, %v3432
    %3434 = vmatprep.mubr.bf16.mxu0 %v1321
    %3435 = vmatmul.mubr.bf16.gmra.mrb[0].mxu0 %v1320
    %v3436 = vpop.f32.mrb[0].mxu0
    %v3437 = vadd.f32 %v1621, %v3436
    %v3438 = vpop.f32.mrb[0].mxu0
    %v3439 = vadd.f32 %v1625, %v3438
    %v3440 = vpop.f32.mrb[0].mxu0
    %v3441 = vadd.f32 %v1621, %v3440
    %v3442 = vpop.f32.mrb[0].mxu0
    %v3443 = vadd.f32 %v1625, %v3442
    %3444 = vmatprep.mubr.bf16.mxu0 %v1329
    %3445 = vmatmul.mubr.bf16.gmra.mrb[0].mxu0 %v1328
    %v3446 = vpop.f32.mrb[0].mxu0
    %v3447 = vadd.f32 %v1621, %v3446
    %v3448 = vpop.f32.mrb[0].mxu0
    %v3449 = vadd.f32 %v1625, %v3448
    %v3450 = vpop.f32.mrb[0].mxu0
    %v3451 = vadd.f32 %v1621, %v3450
    %v3452 = vpop.f32.mrb[0].mxu0
    %v3453 = vadd.f32 %v1625, %v3452
    %3454 = vmatprep.mubr.bf16.mxu0 %v1337
    %3455 = vmatmul.mubr.bf16.gmra.mrb[0].mxu0 %v1336
    %v3456 = vpop.f32.mrb[0].mxu0
    %v3457 = vadd.f32 %v1621, %v3456
    %v3458 = vpop.f32.mrb[0].mxu0
    %v3459 = vadd.f32 %v1625, %v3458
    %v3460 = vpop.f32.mrb[0].mxu0
    %v3461 = vadd.f32 %v1621, %v3460
    %v3462 = vpop.f32.mrb[0].mxu0
    %v3463 = vadd.f32 %v1625, %v3462
    %3464 = vmatprep.mubr.bf16.mxu0 %v1345
    %3465 = vmatmul.mubr.bf16.gmra.mrb[0].mxu0 %v1344
    %v3466 = vpop.f32.mrb[0].mxu0
    %v3467 = vadd.f32 %v1621, %v3466
    %v3468 = vpop.f32.mrb[0].mxu0
    %v3469 = vadd.f32 %v1625, %v3468
    %v3470 = vpop.f32.mrb[0].mxu0
    %v3471 = vadd.f32 %v1621, %v3470
    %v3472 = vpop.f32.mrb[0].mxu0
    %v3473 = vadd.f32 %v1625, %v3472
    %3474 = vdwg.mxu0
    %3475 = vmatprep.subr.bf16.mxu0 %v2465
    %3476 = vmatpush1.bf16.msra.mxu0 %v2464
    %3477 = vmatprep.subr.bf16.mxu0 %v2469
    %3478 = vmatpush1.bf16.msra.mxu0 %v2468
    %3479 = vmatprep.subr.bf16.mxu0 %v2473
    %3480 = vmatpush1.bf16.msra.mxu0 %v2472
    %3481 = vmatprep.subr.bf16.mxu0 %v2477
    %3482 = vmatpush1.bf16.msra.mxu0 %v2476
    %3483 = vmatprep.subr.bf16.mxu0 %v2481
    %3484 = vmatpush1.bf16.msra.mxu0 %v2480
    %3485 = vmatprep.subr.bf16.mxu0 %v2485
    %3486 = vmatpush1.bf16.msra.mxu0 %v2484
    %3487 = vmatprep.subr.bf16.mxu0 %v2489
    %3488 = vmatpush1.bf16.msra.mxu0 %v2488
    %3489 = vmatprep.subr.bf16.mxu0 %v2493
    %3490 = vmatpush1.bf16.msra.mxu0 %v2492
    %3491 = vmatprep.subr.bf16.mxu0 %v2497
    %3492 = vmatpush1.bf16.msra.mxu0 %v2496
    %3493 = vmatprep.subr.bf16.mxu0 %v2501
    %3494 = vmatpush1.bf16.msra.mxu0 %v2500
    %3495 = vmatprep.subr.bf16.mxu0 %v2505
    %3496 = vmatpush1.bf16.msra.mxu0 %v2504
    %3497 = vmatprep.subr.bf16.mxu0 %v2509
    %3498 = vmatpush1.bf16.msra.mxu0 %v2508
    %3499 = vmatprep.subr.bf16.mxu0 %v2513
    %3500 = vmatpush1.bf16.msra.mxu0 %v2512
    %3501 = vmatprep.subr.bf16.mxu0 %v2517
    %3502 = vmatpush1.bf16.msra.mxu0 %v2516
    %3503 = vmatprep.subr.bf16.mxu0 %v2521
    %3504 = vmatpush1.bf16.msra.mxu0 %v2520
    %3505 = vmatprep.subr.bf16.mxu0 %v2525
    %3506 = vmatpush1.bf16.msra.mxu0 %v2524
    %3507 = vmatprep.mubr.bf16.mxu0 %v1291
    %3508 = vmatmul.mubr.bf16.gmra.mrb[0].mxu0 %v1290
    %v3509 = vpop.f32.mrb[0].mxu0
    %v3510 = vadd.f32 %v3397, %v3509
    %v3511 = vpop.f32.mrb[0].mxu0
    %v3512 = vadd.f32 %v3399, %v3511
    %v3513 = vpop.f32.mrb[0].mxu0
    %v3514 = vadd.f32 %v3401, %v3513
    %v3515 = vpop.f32.mrb[0].mxu0
    %v3516 = vadd.f32 %v3403, %v3515
    %3517 = vmatprep.mubr.bf16.mxu0 %v1299
    %3518 = vmatmul.mubr.bf16.gmra.mrb[0].mxu0 %v1298
    %v3519 = vpop.f32.mrb[0].mxu0
    %v3520 = vadd.f32 %v3407, %v3519
    %v3521 = vpop.f32.mrb[0].mxu0
    %v3522 = vadd.f32 %v3409, %v3521
    %v3523 = vpop.f32.mrb[0].mxu0
    %v3524 = vadd.f32 %v3411, %v3523
    %v3525 = vpop.f32.mrb[0].mxu0
    %v3526 = vadd.f32 %v3413, %v3525
    %3527 = vmatprep.mubr.bf16.mxu0 %v1307
    %3528 = vmatmul.mubr.bf16.gmra.mrb[0].mxu0 %v1306
    %v3529 = vpop.f32.mrb[0].mxu0
    %v3530 = vadd.f32 %v3417, %v3529
    %v3531 = vpop.f32.mrb[0].mxu0
    %v3532 = vadd.f32 %v3419, %v3531
    %v3533 = vpop.f32.mrb[0].mxu0
    %v3534 = vadd.f32 %v3421, %v3533
    %v3535 = vpop.f32.mrb[0].mxu0
    %v3536 = vadd.f32 %v3423, %v3535
    %3537 = vmatprep.mubr.bf16.mxu0 %v1315
    %3538 = vmatmul.mubr.bf16.gmra.mrb[0].mxu0 %v1314
    %v3539 = vpop.f32.mrb[0].mxu0
    %v3540 = vadd.f32 %v3427, %v3539
    %v3541 = vpop.f32.mrb[0].mxu0
    %v3542 = vadd.f32 %v3429, %v3541
    %v3543 = vpop.f32.mrb[0].mxu0
    %v3544 = vadd.f32 %v3431, %v3543
    %v3545 = vpop.f32.mrb[0].mxu0
    %v3546 = vadd.f32 %v3433, %v3545
    %3547 = vmatprep.mubr.bf16.mxu0 %v1323
    %3548 = vmatmul.mubr.bf16.gmra.mrb[0].mxu0 %v1322
    %v3549 = vpop.f32.mrb[0].mxu0
    %v3550 = vadd.f32 %v3437, %v3549
    %v3551 = vpop.f32.mrb[0].mxu0
    %v3552 = vadd.f32 %v3439, %v3551
    %v3553 = vpop.f32.mrb[0].mxu0
    %v3554 = vadd.f32 %v3441, %v3553
    %v3555 = vpop.f32.mrb[0].mxu0
    %v3556 = vadd.f32 %v3443, %v3555
    %3557 = vmatprep.mubr.bf16.mxu0 %v1331
    %3558 = vmatmul.mubr.bf16.gmra.mrb[0].mxu0 %v1330
    %v3559 = vpop.f32.mrb[0].mxu0
    %v3560 = vadd.f32 %v3447, %v3559
    %v3561 = vpop.f32.mrb[0].mxu0
    %v3562 = vadd.f32 %v3449, %v3561
    %v3563 = vpop.f32.mrb[0].mxu0
    %v3564 = vadd.f32 %v3451, %v3563
    %v3565 = vpop.f32.mrb[0].mxu0
    %v3566 = vadd.f32 %v3453, %v3565
    %3567 = vmatprep.mubr.bf16.mxu0 %v1339
    %3568 = vmatmul.mubr.bf16.gmra.mrb[0].mxu0 %v1338
    %v3569 = vpop.f32.mrb[0].mxu0
    %v3570 = vadd.f32 %v3457, %v3569
    %v3571 = vpop.f32.mrb[0].mxu0
    %v3572 = vadd.f32 %v3459, %v3571
    %v3573 = vpop.f32.mrb[0].mxu0
    %v3574 = vadd.f32 %v3461, %v3573
    %v3575 = vpop.f32.mrb[0].mxu0
    %v3576 = vadd.f32 %v3463, %v3575
    %3577 = vmatprep.mubr.bf16.mxu0 %v1347
    %3578 = vmatmul.mubr.bf16.gmra.mrb[0].mxu0 %v1346
    %v3579 = vpop.f32.mrb[0].mxu0
    %v3580 = vadd.f32 %v3467, %v3579
    %v3581 = vpop.f32.mrb[0].mxu0
    %v3582 = vadd.f32 %v3469, %v3581
    %v3583 = vpop.f32.mrb[0].mxu0
    %v3584 = vadd.f32 %v3471, %v3583
    %v3585 = vpop.f32.mrb[0].mxu0
    %v3586 = vadd.f32 %v3473, %v3585
    %3587 = vdwg.mxu0
    %3588 = vmatprep.subr.bf16.mxu0 %v2529
    %3589 = vmatpush1.bf16.msra.mxu0 %v2528
    %3590 = vmatprep.subr.bf16.mxu0 %v2533
    %3591 = vmatpush1.bf16.msra.mxu0 %v2532
    %3592 = vmatprep.subr.bf16.mxu0 %v2537
    %3593 = vmatpush1.bf16.msra.mxu0 %v2536
    %3594 = vmatprep.subr.bf16.mxu0 %v2541
    %3595 = vmatpush1.bf16.msra.mxu0 %v2540
    %3596 = vmatprep.subr.bf16.mxu0 %v2545
    %3597 = vmatpush1.bf16.msra.mxu0 %v2544
    %3598 = vmatprep.subr.bf16.mxu0 %v2549
    %3599 = vmatpush1.bf16.msra.mxu0 %v2548
    %3600 = vmatprep.subr.bf16.mxu0 %v2553
    %3601 = vmatpush1.bf16.msra.mxu0 %v2552
    %3602 = vmatprep.subr.bf16.mxu0 %v2557
    %3603 = vmatpush1.bf16.msra.mxu0 %v2556
    %3604 = vmatprep.subr.bf16.mxu0 %v2561
    %3605 = vmatpush1.bf16.msra.mxu0 %v2560
    %3606 = vmatprep.subr.bf16.mxu0 %v2565
    %3607 = vmatpush1.bf16.msra.mxu0 %v2564
    %3608 = vmatprep.subr.bf16.mxu0 %v2569
    %3609 = vmatpush1.bf16.msra.mxu0 %v2568
    %3610 = vmatprep.subr.bf16.mxu0 %v2573
    %3611 = vmatpush1.bf16.msra.mxu0 %v2572
    %3612 = vmatprep.subr.bf16.mxu0 %v2577
    %3613 = vmatpush1.bf16.msra.mxu0 %v2576
    %3614 = vmatprep.subr.bf16.mxu0 %v2581
    %3615 = vmatpush1.bf16.msra.mxu0 %v2580
    %3616 = vmatprep.subr.bf16.mxu0 %v2585
    %3617 = vmatpush1.bf16.msra.mxu0 %v2584
    %3618 = vmatprep.subr.bf16.mxu0 %v2589
    %3619 = vmatpush1.bf16.msra.mxu0 %v2588
    %3620 = vmatprep.mubr.bf16.mxu0 %v1293
    %3621 = vmatmul.mubr.bf16.gmra.mrb[0].mxu0 %v1292
    %v3622 = vpop.f32.mrb[0].mxu0
    %v3623 = vadd.f32 %v3510, %v3622
    %v3624 = vpop.f32.mrb[0].mxu0
    %v3625 = vadd.f32 %v3512, %v3624
    %v3626 = vpop.f32.mrb[0].mxu0
    %v3627 = vadd.f32 %v3514, %v3626
    %v3628 = vpop.f32.mrb[0].mxu0
    %v3629 = vadd.f32 %v3516, %v3628
    %3630 = vmatprep.mubr.bf16.mxu0 %v1301
    %3631 = vmatmul.mubr.bf16.gmra.mrb[0].mxu0 %v1300
    %v3632 = vpop.f32.mrb[0].mxu0
    %v3633 = vadd.f32 %v3520, %v3632
    %v3634 = vpop.f32.mrb[0].mxu0
    %v3635 = vadd.f32 %v3522, %v3634
    %v3636 = vpop.f32.mrb[0].mxu0
    %v3637 = vadd.f32 %v3524, %v3636
    %v3638 = vpop.f32.mrb[0].mxu0
    %v3639 = vadd.f32 %v3526, %v3638
    %3640 = vmatprep.mubr.bf16.mxu0 %v1309
    %3641 = vmatmul.mubr.bf16.gmra.mrb[0].mxu0 %v1308
    %v3642 = vpop.f32.mrb[0].mxu0
    %v3643 = vadd.f32 %v3530, %v3642
    %v3644 = vpop.f32.mrb[0].mxu0
    %v3645 = vadd.f32 %v3532, %v3644
    %v3646 = vpop.f32.mrb[0].mxu0
    %v3647 = vadd.f32 %v3534, %v3646
    %v3648 = vpop.f32.mrb[0].mxu0
    %v3649 = vadd.f32 %v3536, %v3648
    %3650 = vmatprep.mubr.bf16.mxu0 %v1317
    %3651 = vmatmul.mubr.bf16.gmra.mrb[0].mxu0 %v1316
    %v3652 = vpop.f32.mrb[0].mxu0
    %v3653 = vadd.f32 %v3540, %v3652
    %v3654 = vpop.f32.mrb[0].mxu0
    %v3655 = vadd.f32 %v3542, %v3654
    %v3656 = vpop.f32.mrb[0].mxu0
    %v3657 = vadd.f32 %v3544, %v3656
    %v3658 = vpop.f32.mrb[0].mxu0
    %v3659 = vadd.f32 %v3546, %v3658
    %3660 = vmatprep.mubr.bf16.mxu0 %v1325
    %3661 = vmatmul.mubr.bf16.gmra.mrb[0].mxu0 %v1324
    %v3662 = vpop.f32.mrb[0].mxu0
    %v3663 = vadd.f32 %v3550, %v3662
    %v3664 = vpop.f32.mrb[0].mxu0
    %v3665 = vadd.f32 %v3552, %v3664
    %v3666 = vpop.f32.mrb[0].mxu0
    %v3667 = vadd.f32 %v3554, %v3666
    %v3668 = vpop.f32.mrb[0].mxu0
    %v3669 = vadd.f32 %v3556, %v3668
    %3670 = vmatprep.mubr.bf16.mxu0 %v1333
    %3671 = vmatmul.mubr.bf16.gmra.mrb[0].mxu0 %v1332
    %v3672 = vpop.f32.mrb[0].mxu0
    %v3673 = vadd.f32 %v3560, %v3672
    %v3674 = vpop.f32.mrb[0].mxu0
    %v3675 = vadd.f32 %v3562, %v3674
    %v3676 = vpop.f32.mrb[0].mxu0
    %v3677 = vadd.f32 %v3564, %v3676
    %v3678 = vpop.f32.mrb[0].mxu0
    %v3679 = vadd.f32 %v3566, %v3678
    %3680 = vmatprep.mubr.bf16.mxu0 %v1341
    %3681 = vmatmul.mubr.bf16.gmra.mrb[0].mxu0 %v1340
    %v3682 = vpop.f32.mrb[0].mxu0
    %v3683 = vadd.f32 %v3570, %v3682
    %v3684 = vpop.f32.mrb[0].mxu0
    %v3685 = vadd.f32 %v3572, %v3684
    %v3686 = vpop.f32.mrb[0].mxu0
    %v3687 = vadd.f32 %v3574, %v3686
    %v3688 = vpop.f32.mrb[0].mxu0
    %v3689 = vadd.f32 %v3576, %v3688
    %3690 = vmatprep.mubr.bf16.mxu0 %v1349
    %3691 = vmatmul.mubr.bf16.gmra.mrb[0].mxu0 %v1348
    %v3692 = vpop.f32.mrb[0].mxu0
    %v3693 = vadd.f32 %v3580, %v3692
    %v3694 = vpop.f32.mrb[0].mxu0
    %v3695 = vadd.f32 %v3582, %v3694
    %v3696 = vpop.f32.mrb[0].mxu0
    %v3697 = vadd.f32 %v3584, %v3696
    %v3698 = vpop.f32.mrb[0].mxu0
    %v3699 = vadd.f32 %v3586, %v3698
    %3700 = vdwg.mxu0
    %3701 = vmatprep.subr.bf16.mxu0 %v2593
    %3702 = vmatpush1.bf16.msra.mxu0 %v2592
    %3703 = vmatprep.subr.bf16.mxu0 %v2597
    %3704 = vmatpush1.bf16.msra.mxu0 %v2596
    %3705 = vmatprep.subr.bf16.mxu0 %v2601
    %3706 = vmatpush1.bf16.msra.mxu0 %v2600
    %3707 = vmatprep.subr.bf16.mxu0 %v2605
    %3708 = vmatpush1.bf16.msra.mxu0 %v2604
    %3709 = vmatprep.subr.bf16.mxu0 %v2609
    %3710 = vmatpush1.bf16.msra.mxu0 %v2608
    %3711 = vmatprep.subr.bf16.mxu0 %v2613
    %3712 = vmatpush1.bf16.msra.mxu0 %v2612
    %3713 = vmatprep.subr.bf16.mxu0 %v2617
    %3714 = vmatpush1.bf16.msra.mxu0 %v2616
    %3715 = vmatprep.subr.bf16.mxu0 %v2621
    %3716 = vmatpush1.bf16.msra.mxu0 %v2620
    %3717 = vmatprep.subr.bf16.mxu0 %v2625
    %3718 = vmatpush1.bf16.msra.mxu0 %v2624
    %3719 = vmatprep.subr.bf16.mxu0 %v2629
    %3720 = vmatpush1.bf16.msra.mxu0 %v2628
    %3721 = vmatprep.subr.bf16.mxu0 %v2633
    %3722 = vmatpush1.bf16.msra.mxu0 %v2632
    %3723 = vmatprep.subr.bf16.mxu0 %v2637
    %3724 = vmatpush1.bf16.msra.mxu0 %v2636
    %3725 = vmatprep.subr.bf16.mxu0 %v2641
    %3726 = vmatpush1.bf16.msra.mxu0 %v2640
    %3727 = vmatprep.subr.bf16.mxu0 %v2645
    %3728 = vmatpush1.bf16.msra.mxu0 %v2644
    %3729 = vmatprep.subr.bf16.mxu0 %v2649
    %3730 = vmatpush1.bf16.msra.mxu0 %v2648
    %3731 = vmatprep.subr.bf16.mxu0 %v2653
    %3732 = vmatpush1.bf16.msra.mxu0 %v2652
    %3733 = vmatprep.mubr.bf16.mxu0 %v1295
    %3734 = vmatmul.mubr.bf16.gmra.mrb[0].mxu0 %v1294
    %v3735 = vpop.f32.mrb[0].mxu0
    %v3736 = vadd.f32 %v3623, %v3735
    %v3737 = vpop.f32.mrb[0].mxu0
    %v3738 = vadd.f32 %v3625, %v3737
    %v3739 = vpop.f32.mrb[0].mxu0
    %v3740 = vadd.f32 %v3627, %v3739
    %v3741 = vpop.f32.mrb[0].mxu0
    %v3742 = vadd.f32 %v3629, %v3741
    %3743 = vmatprep.mubr.bf16.mxu0 %v1303
    %3744 = vmatmul.mubr.bf16.gmra.mrb[0].mxu0 %v1302
    %v3745 = vpop.f32.mrb[0].mxu0
    %v3746 = vadd.f32 %v3633, %v3745
    %v3747 = vpop.f32.mrb[0].mxu0
    %v3748 = vadd.f32 %v3635, %v3747
    %v3749 = vpop.f32.mrb[0].mxu0
    %v3750 = vadd.f32 %v3637, %v3749
    %v3751 = vpop.f32.mrb[0].mxu0
    %v3752 = vadd.f32 %v3639, %v3751
    %3753 = vmatprep.mubr.bf16.mxu0 %v1311
    %3754 = vmatmul.mubr.bf16.gmra.mrb[0].mxu0 %v1310
    %v3755 = vpop.f32.mrb[0].mxu0
    %v3756 = vadd.f32 %v3643, %v3755
    %v3757 = vpop.f32.mrb[0].mxu0
    %v3758 = vadd.f32 %v3645, %v3757
    %v3759 = vpop.f32.mrb[0].mxu0
    %v3760 = vadd.f32 %v3647, %v3759
    %v3761 = vpop.f32.mrb[0].mxu0
    %v3762 = vadd.f32 %v3649, %v3761
    %3763 = vmatprep.mubr.bf16.mxu0 %v1319
    %3764 = vmatmul.mubr.bf16.gmra.mrb[0].mxu0 %v1318
    %v3765 = vpop.f32.mrb[0].mxu0
    %v3766 = vadd.f32 %v3653, %v3765
    %v3767 = vpop.f32.mrb[0].mxu0
    %v3768 = vadd.f32 %v3655, %v3767
    %v3769 = vpop.f32.mrb[0].mxu0
    %v3770 = vadd.f32 %v3657, %v3769
    %v3771 = vpop.f32.mrb[0].mxu0
    %v3772 = vadd.f32 %v3659, %v3771
    %3773 = vmatprep.mubr.bf16.mxu0 %v1327
    %3774 = vmatmul.mubr.bf16.gmra.mrb[0].mxu0 %v1326
    %v3775 = vpop.f32.mrb[0].mxu0
    %v3776 = vadd.f32 %v3663, %v3775
    %v3777 = vpop.f32.mrb[0].mxu0
    %v3778 = vadd.f32 %v3665, %v3777
    %v3779 = vpop.f32.mrb[0].mxu0
    %v3780 = vadd.f32 %v3667, %v3779
    %v3781 = vpop.f32.mrb[0].mxu0
    %v3782 = vadd.f32 %v3669, %v3781
    %3783 = vmatprep.mubr.bf16.mxu0 %v1335
    %3784 = vmatmul.mubr.bf16.gmra.mrb[0].mxu0 %v1334
    %v3785 = vpop.f32.mrb[0].mxu0
    %v3786 = vadd.f32 %v3673, %v3785
    %v3787 = vpop.f32.mrb[0].mxu0
    %v3788 = vadd.f32 %v3675, %v3787
    %v3789 = vpop.f32.mrb[0].mxu0
    %v3790 = vadd.f32 %v3677, %v3789
    %v3791 = vpop.f32.mrb[0].mxu0
    %v3792 = vadd.f32 %v3679, %v3791
    %3793 = vmatprep.mubr.bf16.mxu0 %v1343
    %3794 = vmatmul.mubr.bf16.gmra.mrb[0].mxu0 %v1342
    %v3795 = vpop.f32.mrb[0].mxu0
    %v3796 = vadd.f32 %v3683, %v3795
    %v3797 = vpop.f32.mrb[0].mxu0
    %v3798 = vadd.f32 %v3685, %v3797
    %v3799 = vpop.f32.mrb[0].mxu0
    %v3800 = vadd.f32 %v3687, %v3799
    %v3801 = vpop.f32.mrb[0].mxu0
    %v3802 = vadd.f32 %v3689, %v3801
    %3803 = vmatprep.mubr.bf16.mxu0 %v1351
    %3804 = vmatmul.mubr.bf16.gmra.mrb[0].mxu0 %v1350
    %v3805 = vpop.f32.mrb[0].mxu0
    %v3806 = vadd.f32 %v3693, %v3805
    %v3807 = vpop.f32.mrb[0].mxu0
    %v3808 = vadd.f32 %v3695, %v3807
    %v3809 = vpop.f32.mrb[0].mxu0
    %v3810 = vadd.f32 %v3697, %v3809
    %v3811 = vpop.f32.mrb[0].mxu0
    %v3812 = vadd.f32 %v3699, %v3811
    %3813 = vdwg.mxu0
    %v3814 = vmul.f32 %v3284, 0.2
    %v3815 = vmul.f32 %v3286, 0.2
    %v3816 = vmul.f32 %v3736, 0.2
    %v3817 = vmul.f32 %v3738, 0.2
    %v3818 = vmul.f32 %v3288, 0.2
    %v3819 = vmul.f32 %v3290, 0.2
    %v3820 = vmul.f32 %v3740, 0.2
    %v3821 = vmul.f32 %v3742, 0.2
    %v3822 = vmul.f32 %v3294, 0.2
    %v3823 = vmul.f32 %v3296, 0.2
    %v3824 = vmul.f32 %v3746, 0.2
    %v3825 = vmul.f32 %v3748, 0.2
    %v3826 = vmul.f32 %v3298, 0.2
    %v3827 = vmul.f32 %v3300, 0.2
    %v3828 = vmul.f32 %v3750, 0.2
    %v3829 = vmul.f32 %v3752, 0.2
    %v3830 = vmul.f32 %v3304, 0.2
    %v3831 = vmul.f32 %v3306, 0.2
    %v3832 = vmul.f32 %v3756, 0.2
    %v3833 = vmul.f32 %v3758, 0.2
    %v3834 = vmul.f32 %v3308, 0.2
    %v3835 = vmul.f32 %v3310, 0.2
    %v3836 = vmul.f32 %v3760, 0.2
    %v3837 = vmul.f32 %v3762, 0.2
    %v3838 = vmul.f32 %v3314, 0.2
    %v3839 = vmul.f32 %v3316, 0.2
    %v3840 = vmul.f32 %v3766, 0.2
    %v3841 = vmul.f32 %v3768, 0.2
    %v3842 = vmul.f32 %v3318, 0.2
    %v3843 = vmul.f32 %v3320, 0.2
    %v3844 = vmul.f32 %v3770, 0.2
    %v3845 = vmul.f32 %v3772, 0.2
    %v3846 = vmul.f32 %v3324, 0.2
    %v3847 = vmul.f32 %v3326, 0.2
    %v3848 = vmul.f32 %v3776, 0.2
    %v3849 = vmul.f32 %v3778, 0.2
    %v3850 = vmul.f32 %v3328, 0.2
    %v3851 = vmul.f32 %v3330, 0.2
    %v3852 = vmul.f32 %v3780, 0.2
    %v3853 = vmul.f32 %v3782, 0.2
    %v3854 = vmul.f32 %v3334, 0.2
    %v3855 = vmul.f32 %v3336, 0.2
    %v3856 = vmul.f32 %v3786, 0.2
    %v3857 = vmul.f32 %v3788, 0.2
    %v3858 = vmul.f32 %v3338, 0.2
    %v3859 = vmul.f32 %v3340, 0.2
    %v3860 = vmul.f32 %v3790, 0.2
    %v3861 = vmul.f32 %v3792, 0.2
    %v3862 = vmul.f32 %v3344, 0.2
    %v3863 = vmul.f32 %v3346, 0.2
    %v3864 = vmul.f32 %v3796, 0.2
    %v3865 = vmul.f32 %v3798, 0.2
    %v3866 = vmul.f32 %v3348, 0.2
    %v3867 = vmul.f32 %v3350, 0.2
    %v3868 = vmul.f32 %v3800, 0.2
    %v3869 = vmul.f32 %v3802, 0.2
    %v3870 = vmul.f32 %v3354, 0.2
    %v3871 = vmul.f32 %v3356, 0.2
    %v3872 = vmul.f32 %v3806, 0.2
    %v3873 = vmul.f32 %v3808, 0.2
    %v3874 = vmul.f32 %v3358, 0.2
    %v3875 = vmul.f32 %v3360, 0.2
    %v3876 = vmul.f32 %v3810, 0.2
    %v3877 = vmul.f32 %v3812, 0.2
    %v3878 = vmax.f32 %v3284, %v3814
    %v3879 = vmax.f32 %v3286, %v3815
    %v3880 = vmax.f32 %v3736, %v3816
    %v3881 = vmax.f32 %v3738, %v3817
    %v3882 = vmax.f32 %v3288, %v3818
    %v3883 = vmax.f32 %v3290, %v3819
    %v3884 = vmax.f32 %v3740, %v3820
    %v3885 = vmax.f32 %v3742, %v3821
    %v3886 = vmax.f32 %v3294, %v3822
    %v3887 = vmax.f32 %v3296, %v3823
    %v3888 = vmax.f32 %v3746, %v3824
    %v3889 = vmax.f32 %v3748, %v3825
    %v3890 = vmax.f32 %v3298, %v3826
    %v3891 = vmax.f32 %v3300, %v3827
    %v3892 = vmax.f32 %v3750, %v3828
    %v3893 = vmax.f32 %v3752, %v3829
    %v3894 = vmax.f32 %v3304, %v3830
    %v3895 = vmax.f32 %v3306, %v3831
    %v3896 = vmax.f32 %v3756, %v3832
    %v3897 = vmax.f32 %v3758, %v3833
    %v3898 = vmax.f32 %v3308, %v3834
    %v3899 = vmax.f32 %v3310, %v3835
    %v3900 = vmax.f32 %v3760, %v3836
    %v3901 = vmax.f32 %v3762, %v3837
    %v3902 = vmax.f32 %v3314, %v3838
    %v3903 = vmax.f32 %v3316, %v3839
    %v3904 = vmax.f32 %v3766, %v3840
    %v3905 = vmax.f32 %v3768, %v3841
    %v3906 = vmax.f32 %v3318, %v3842
    %v3907 = vmax.f32 %v3320, %v3843
    %v3908 = vmax.f32 %v3770, %v3844
    %v3909 = vmax.f32 %v3772, %v3845
    %v3910 = vmax.f32 %v3324, %v3846
    %v3911 = vmax.f32 %v3326, %v3847
    %v3912 = vmax.f32 %v3776, %v3848
    %v3913 = vmax.f32 %v3778, %v3849
    %v3914 = vmax.f32 %v3328, %v3850
    %v3915 = vmax.f32 %v3330, %v3851
    %v3916 = vmax.f32 %v3780, %v3852
    %v3917 = vmax.f32 %v3782, %v3853
    %v3918 = vmax.f32 %v3334, %v3854
    %v3919 = vmax.f32 %v3336, %v3855
    %v3920 = vmax.f32 %v3786, %v3856
    %v3921 = vmax.f32 %v3788, %v3857
    %v3922 = vmax.f32 %v3338, %v3858
    %v3923 = vmax.f32 %v3340, %v3859
    %v3924 = vmax.f32 %v3790, %v3860
    %v3925 = vmax.f32 %v3792, %v3861
    %v3926 = vmax.f32 %v3344, %v3862
    %v3927 = vmax.f32 %v3346, %v3863
    %v3928 = vmax.f32 %v3796, %v3864
    %v3929 = vmax.f32 %v3798, %v3865
    %v3930 = vmax.f32 %v3348, %v3866
    %v3931 = vmax.f32 %v3350, %v3867
    %v3932 = vmax.f32 %v3800, %v3868
    %v3933 = vmax.f32 %v3802, %v3869
    %v3934 = vmax.f32 %v3354, %v3870
    %v3935 = vmax.f32 %v3356, %v3871
    %v3936 = vmax.f32 %v3806, %v3872
    %v3937 = vmax.f32 %v3808, %v3873
    %v3938 = vmax.f32 %v3358, %v3874
    %v3939 = vmax.f32 %v3360, %v3875
    %v3940 = vmax.f32 %v3810, %v3876
    %v3941 = vmax.f32 %v3812, %v3877
    %v3942 = vpack.c.bf16 %v3882, %v3878
    %v3943 = vpack.c.bf16 %v3883, %v3879
    %v3944 = vpack.c.bf16 %v3884, %v3880
    %v3945 = vpack.c.bf16 %v3885, %v3881
    %v3946 = vpack.c.bf16 %v3890, %v3886
    %v3947 = vpack.c.bf16 %v3891, %v3887
    %v3948 = vpack.c.bf16 %v3892, %v3888
    %v3949 = vpack.c.bf16 %v3893, %v3889
    %v3950 = vpack.c.bf16 %v3898, %v3894
    %v3951 = vpack.c.bf16 %v3899, %v3895
    %v3952 = vpack.c.bf16 %v3900, %v3896
    %v3953 = vpack.c.bf16 %v3901, %v3897
    %v3954 = vpack.c.bf16 %v3906, %v3902
    %v3955 = vpack.c.bf16 %v3907, %v3903
    %v3956 = vpack.c.bf16 %v3908, %v3904
    %v3957 = vpack.c.bf16 %v3909, %v3905
    %v3958 = vpack.c.bf16 %v3914, %v3910
    %v3959 = vpack.c.bf16 %v3915, %v3911
    %v3960 = vpack.c.bf16 %v3916, %v3912
    %v3961 = vpack.c.bf16 %v3917, %v3913
    %v3962 = vpack.c.bf16 %v3922, %v3918
    %v3963 = vpack.c.bf16 %v3923, %v3919
    %v3964 = vpack.c.bf16 %v3924, %v3920
    %v3965 = vpack.c.bf16 %v3925, %v3921
    %v3966 = vpack.c.bf16 %v3930, %v3926
    %v3967 = vpack.c.bf16 %v3931, %v3927
    %v3968 = vpack.c.bf16 %v3932, %v3928
    %v3969 = vpack.c.bf16 %v3933, %v3929
    %v3970 = vpack.c.bf16 %v3938, %v3934
    %v3971 = vpack.c.bf16 %v3939, %v3935
    %v3972 = vpack.c.bf16 %v3940, %v3936
    %v3973 = vpack.c.bf16 %v3941, %v3937
    %v3974 = vld [vmem:[#allocation9] sm:$0xff]
    %v3975 = vld [vmem:[#allocation9 + $0x8] sm:$0xff]
    %v3976 = vld [vmem:[#allocation9 + $0x10] sm:$0xff]
    %v3977 = vld [vmem:[#allocation9 + $0x18] sm:$0xff]
    %v3978 = vld [vmem:[#allocation9 + $0x20] sm:$0xff]
    %v3979 = vld [vmem:[#allocation9 + $0x28] sm:$0xff]
    %v3980 = vld [vmem:[#allocation9 + $0x30] sm:$0xff]
    %v3981 = vld [vmem:[#allocation9 + $0x38] sm:$0xff]
    %v3982 = vld [vmem:[#allocation9 + $0x40] sm:$0xff]
    %v3983 = vld [vmem:[#allocation9 + $0x48] sm:$0xff]
    %v3984 = vld [vmem:[#allocation9 + $0x50] sm:$0xff]
    %v3985 = vld [vmem:[#allocation9 + $0x58] sm:$0xff]
    %v3986 = vld [vmem:[#allocation9 + $0x60] sm:$0xff]
    %v3987 = vld [vmem:[#allocation9 + $0x68] sm:$0xff]
    %v3988 = vld [vmem:[#allocation9 + $0x70] sm:$0xff]
    %v3989 = vld [vmem:[#allocation9 + $0x78] sm:$0xff]
    %v3990 = vld [vmem:[#allocation9 + $0x80] sm:$0xff]
    %v3991 = vld [vmem:[#allocation9 + $0x88] sm:$0xff]
    %v3992 = vld [vmem:[#allocation9 + $0x90] sm:$0xff]
    %v3993 = vld [vmem:[#allocation9 + $0x98] sm:$0xff]
    %v3994 = vld [vmem:[#allocation9 + $0xa0] sm:$0xff]
    %v3995 = vld [vmem:[#allocation9 + $0xa8] sm:$0xff]
    %v3996 = vld [vmem:[#allocation9 + $0xb0] sm:$0xff]
    %v3997 = vld [vmem:[#allocation9 + $0xb8] sm:$0xff]
    %v3998 = vld [vmem:[#allocation9 + $0xc0] sm:$0xff]
    %v3999 = vld [vmem:[#allocation9 + $0xc8] sm:$0xff]
    %v4000 = vld [vmem:[#allocation9 + $0xd0] sm:$0xff]
    %v4001 = vld [vmem:[#allocation9 + $0xd8] sm:$0xff]
    %v4002 = vld [vmem:[#allocation9 + $0xe0] sm:$0xff]
    %v4003 = vld [vmem:[#allocation9 + $0xe8] sm:$0xff]
    %v4004 = vld [vmem:[#allocation9 + $0xf0] sm:$0xff]
    %v4005 = vld [vmem:[#allocation9 + $0xf8] sm:$0xff]
    %v4006 = vld [vmem:[#allocation9 + $0x100] sm:$0xff]
    %v4007 = vld [vmem:[#allocation9 + $0x108] sm:$0xff]
    %v4008 = vld [vmem:[#allocation9 + $0x110] sm:$0xff]
    %v4009 = vld [vmem:[#allocation9 + $0x118] sm:$0xff]
    %v4010 = vld [vmem:[#allocation9 + $0x120] sm:$0xff]
    %v4011 = vld [vmem:[#allocation9 + $0x128] sm:$0xff]
    %v4012 = vld [vmem:[#allocation9 + $0x130] sm:$0xff]
    %v4013 = vld [vmem:[#allocation9 + $0x138] sm:$0xff]
    %v4014 = vld [vmem:[#allocation9 + $0x140] sm:$0xff]
    %v4015 = vld [vmem:[#allocation9 + $0x148] sm:$0xff]
    %v4016 = vld [vmem:[#allocation9 + $0x150] sm:$0xff]
    %v4017 = vld [vmem:[#allocation9 + $0x158] sm:$0xff]
    %v4018 = vld [vmem:[#allocation9 + $0x160] sm:$0xff]
    %v4019 = vld [vmem:[#allocation9 + $0x168] sm:$0xff]
    %v4020 = vld [vmem:[#allocation9 + $0x170] sm:$0xff]
    %v4021 = vld [vmem:[#allocation9 + $0x178] sm:$0xff]
    %v4022 = vld [vmem:[#allocation9 + $0x180] sm:$0xff]
    %v4023 = vld [vmem:[#allocation9 + $0x188] sm:$0xff]
    %v4024 = vld [vmem:[#allocation9 + $0x190] sm:$0xff]
    %v4025 = vld [vmem:[#allocation9 + $0x198] sm:$0xff]
    %v4026 = vld [vmem:[#allocation9 + $0x1a0] sm:$0xff]
    %v4027 = vld [vmem:[#allocation9 + $0x1a8] sm:$0xff]
    %v4028 = vld [vmem:[#allocation9 + $0x1b0] sm:$0xff]
    %v4029 = vld [vmem:[#allocation9 + $0x1b8] sm:$0xff]
    %v4030 = vld [vmem:[#allocation9 + $0x1c0] sm:$0xff]
    %v4031 = vld [vmem:[#allocation9 + $0x1c8] sm:$0xff]
    %v4032 = vld [vmem:[#allocation9 + $0x1d0] sm:$0xff]
    %v4033 = vld [vmem:[#allocation9 + $0x1d8] sm:$0xff]
    %v4034 = vld [vmem:[#allocation9 + $0x1e0] sm:$0xff]
    %v4035 = vld [vmem:[#allocation9 + $0x1e8] sm:$0xff]
    %v4036 = vld [vmem:[#allocation9 + $0x1f0] sm:$0xff]
    %v4037 = vld [vmem:[#allocation9 + $0x1f8] sm:$0xff]
    %v4038 = vld [vmem:[%s6] sm:$0x3]
    %v4040 = vlaneseq
    %v4041 = vshrl.u32 %v4040, 7
    %v4042 = vsub.s32 0, %v4041
    %v4043 = vrot.slane %v4038, %v4042
    %v4044 = vlaneseq
    %v4045 = vshrl.u32 %v4044, 7
    %v4046 = vsub.s32 1, %v4045
    %v4047 = vrot.slane %v4038, %v4046
    %v4114 = vunpack.c.l.b16 %v3974
    %v4115 = vunpack.c.h.b16 %v3974
    %v4116 = vunpack.c.l.b16 %v3975
    %v4117 = vunpack.c.h.b16 %v3975
    %v4118 = vunpack.c.l.b16 %v3976
    %v4119 = vunpack.c.h.b16 %v3976
    %v4120 = vunpack.c.l.b16 %v3977
    %v4121 = vunpack.c.h.b16 %v3977
    %v4122 = vunpack.c.l.b16 %v3978
    %v4123 = vunpack.c.h.b16 %v3978
    %v4124 = vunpack.c.l.b16 %v3979
    %v4125 = vunpack.c.h.b16 %v3979
    %v4126 = vunpack.c.l.b16 %v3980
    %v4127 = vunpack.c.h.b16 %v3980
    %v4128 = vunpack.c.l.b16 %v3981
    %v4129 = vunpack.c.h.b16 %v3981
    %v4130 = vunpack.c.l.b16 %v3982
    %v4131 = vunpack.c.h.b16 %v3982
    %v4132 = vunpack.c.l.b16 %v3983
    %v4133 = vunpack.c.h.b16 %v3983
    %v4134 = vunpack.c.l.b16 %v3984
    %v4135 = vunpack.c.h.b16 %v3984
    %v4136 = vunpack.c.l.b16 %v3985
    %v4137 = vunpack.c.h.b16 %v3985
    %v4138 = vunpack.c.l.b16 %v3986
    %v4139 = vunpack.c.h.b16 %v3986
    %v4140 = vunpack.c.l.b16 %v3987
    %v4141 = vunpack.c.h.b16 %v3987
    %v4142 = vunpack.c.l.b16 %v3988
    %v4143 = vunpack.c.h.b16 %v3988
    %v4144 = vunpack.c.l.b16 %v3989
    %v4145 = vunpack.c.h.b16 %v3989
    %v4146 = vunpack.c.l.b16 %v3990
    %v4147 = vunpack.c.h.b16 %v3990
    %v4148 = vunpack.c.l.b16 %v3991
    %v4149 = vunpack.c.h.b16 %v3991
    %v4150 = vunpack.c.l.b16 %v3992
    %v4151 = vunpack.c.h.b16 %v3992
    %v4152 = vunpack.c.l.b16 %v3993
    %v4153 = vunpack.c.h.b16 %v3993
    %v4154 = vunpack.c.l.b16 %v3994
    %v4155 = vunpack.c.h.b16 %v3994
    %v4156 = vunpack.c.l.b16 %v3995
    %v4157 = vunpack.c.h.b16 %v3995
    %v4158 = vunpack.c.l.b16 %v3996
    %v4159 = vunpack.c.h.b16 %v3996
    %v4160 = vunpack.c.l.b16 %v3997
    %v4161 = vunpack.c.h.b16 %v3997
    %v4162 = vunpack.c.l.b16 %v3998
    %v4163 = vunpack.c.h.b16 %v3998
    %v4164 = vunpack.c.l.b16 %v3999
    %v4165 = vunpack.c.h.b16 %v3999
    %v4166 = vunpack.c.l.b16 %v4000
    %v4167 = vunpack.c.h.b16 %v4000
    %v4168 = vunpack.c.l.b16 %v4001
    %v4169 = vunpack.c.h.b16 %v4001
    %v4170 = vunpack.c.l.b16 %v4002
    %v4171 = vunpack.c.h.b16 %v4002
    %v4172 = vunpack.c.l.b16 %v4003
    %v4173 = vunpack.c.h.b16 %v4003
    %v4174 = vunpack.c.l.b16 %v4004
    %v4175 = vunpack.c.h.b16 %v4004
    %v4176 = vunpack.c.l.b16 %v4005
    %v4177 = vunpack.c.h.b16 %v4005
    %v4178 = vunpack.c.l.b16 %v4006
    %v4179 = vunpack.c.h.b16 %v4006
    %v4180 = vunpack.c.l.b16 %v4007
    %v4181 = vunpack.c.h.b16 %v4007
    %v4182 = vunpack.c.l.b16 %v4008
    %v4183 = vunpack.c.h.b16 %v4008
    %v4184 = vunpack.c.l.b16 %v4009
    %v4185 = vunpack.c.h.b16 %v4009
    %v4186 = vunpack.c.l.b16 %v4010
    %v4187 = vunpack.c.h.b16 %v4010
    %v4188 = vunpack.c.l.b16 %v4011
    %v4189 = vunpack.c.h.b16 %v4011
    %v4190 = vunpack.c.l.b16 %v4012
    %v4191 = vunpack.c.h.b16 %v4012
    %v4192 = vunpack.c.l.b16 %v4013
    %v4193 = vunpack.c.h.b16 %v4013
    %v4194 = vunpack.c.l.b16 %v4014
    %v4195 = vunpack.c.h.b16 %v4014
    %v4196 = vunpack.c.l.b16 %v4015
    %v4197 = vunpack.c.h.b16 %v4015
    %v4198 = vunpack.c.l.b16 %v4016
    %v4199 = vunpack.c.h.b16 %v4016
    %v4200 = vunpack.c.l.b16 %v4017
    %v4201 = vunpack.c.h.b16 %v4017
    %v4202 = vunpack.c.l.b16 %v4018
    %v4203 = vunpack.c.h.b16 %v4018
    %v4204 = vunpack.c.l.b16 %v4019
    %v4205 = vunpack.c.h.b16 %v4019
    %v4206 = vunpack.c.l.b16 %v4020
    %v4207 = vunpack.c.h.b16 %v4020
    %v4208 = vunpack.c.l.b16 %v4021
    %v4209 = vunpack.c.h.b16 %v4021
    %v4210 = vunpack.c.l.b16 %v4022
    %v4211 = vunpack.c.h.b16 %v4022
    %v4212 = vunpack.c.l.b16 %v4023
    %v4213 = vunpack.c.h.b16 %v4023
    %v4214 = vunpack.c.l.b16 %v4024
    %v4215 = vunpack.c.h.b16 %v4024
    %v4216 = vunpack.c.l.b16 %v4025
    %v4217 = vunpack.c.h.b16 %v4025
    %v4218 = vunpack.c.l.b16 %v4026
    %v4219 = vunpack.c.h.b16 %v4026
    %v4220 = vunpack.c.l.b16 %v4027
    %v4221 = vunpack.c.h.b16 %v4027
    %v4222 = vunpack.c.l.b16 %v4028
    %v4223 = vunpack.c.h.b16 %v4028
    %v4224 = vunpack.c.l.b16 %v4029
    %v4225 = vunpack.c.h.b16 %v4029
    %v4226 = vunpack.c.l.b16 %v4030
    %v4227 = vunpack.c.h.b16 %v4030
    %v4228 = vunpack.c.l.b16 %v4031
    %v4229 = vunpack.c.h.b16 %v4031
    %v4230 = vunpack.c.l.b16 %v4032
    %v4231 = vunpack.c.h.b16 %v4032
    %v4232 = vunpack.c.l.b16 %v4033
    %v4233 = vunpack.c.h.b16 %v4033
    %v4234 = vunpack.c.l.b16 %v4034
    %v4235 = vunpack.c.h.b16 %v4034
    %v4236 = vunpack.c.l.b16 %v4035
    %v4237 = vunpack.c.h.b16 %v4035
    %v4238 = vunpack.c.l.b16 %v4036
    %v4239 = vunpack.c.h.b16 %v4036
    %v4240 = vunpack.c.l.b16 %v4037
    %v4241 = vunpack.c.h.b16 %v4037
    %v4242 = vpack.c.b16 %v4116, %v4114
    %v4243 = vpack.c.b16 %v4117, %v4115
    %v4244 = vpack.c.b16 %v4120, %v4118
    %v4245 = vpack.c.b16 %v4121, %v4119
    %v4246 = vpack.c.b16 %v4124, %v4122
    %v4247 = vpack.c.b16 %v4125, %v4123
    %v4248 = vpack.c.b16 %v4128, %v4126
    %v4249 = vpack.c.b16 %v4129, %v4127
    %v4250 = vpack.c.b16 %v4132, %v4130
    %v4251 = vpack.c.b16 %v4133, %v4131
    %v4252 = vpack.c.b16 %v4136, %v4134
    %v4253 = vpack.c.b16 %v4137, %v4135
    %v4254 = vpack.c.b16 %v4140, %v4138
    %v4255 = vpack.c.b16 %v4141, %v4139
    %v4256 = vpack.c.b16 %v4144, %v4142
    %v4257 = vpack.c.b16 %v4145, %v4143
    %v4258 = vpack.c.b16 %v4148, %v4146
    %v4259 = vpack.c.b16 %v4149, %v4147
    %v4260 = vpack.c.b16 %v4152, %v4150
    %v4261 = vpack.c.b16 %v4153, %v4151
    %v4262 = vpack.c.b16 %v4156, %v4154
    %v4263 = vpack.c.b16 %v4157, %v4155
    %v4264 = vpack.c.b16 %v4160, %v4158
    %v4265 = vpack.c.b16 %v4161, %v4159
    %v4266 = vpack.c.b16 %v4164, %v4162
    %v4267 = vpack.c.b16 %v4165, %v4163
    %v4268 = vpack.c.b16 %v4168, %v4166
    %v4269 = vpack.c.b16 %v4169, %v4167
    %v4270 = vpack.c.b16 %v4172, %v4170
    %v4271 = vpack.c.b16 %v4173, %v4171
    %v4272 = vpack.c.b16 %v4176, %v4174
    %v4273 = vpack.c.b16 %v4177, %v4175
    %v4274 = vpack.c.b16 %v4180, %v4178
    %v4275 = vpack.c.b16 %v4181, %v4179
    %v4276 = vpack.c.b16 %v4184, %v4182
    %v4277 = vpack.c.b16 %v4185, %v4183
    %v4278 = vpack.c.b16 %v4188, %v4186
    %v4279 = vpack.c.b16 %v4189, %v4187
    %v4280 = vpack.c.b16 %v4192, %v4190
    %v4281 = vpack.c.b16 %v4193, %v4191
    %v4282 = vpack.c.b16 %v4196, %v4194
    %v4283 = vpack.c.b16 %v4197, %v4195
    %v4284 = vpack.c.b16 %v4200, %v4198
    %v4285 = vpack.c.b16 %v4201, %v4199
    %v4286 = vpack.c.b16 %v4204, %v4202
    %v4287 = vpack.c.b16 %v4205, %v4203
    %v4288 = vpack.c.b16 %v4208, %v4206
    %v4289 = vpack.c.b16 %v4209, %v4207
    %v4290 = vpack.c.b16 %v4212, %v4210
    %v4291 = vpack.c.b16 %v4213, %v4211
    %v4292 = vpack.c.b16 %v4216, %v4214
    %v4293 = vpack.c.b16 %v4217, %v4215
    %v4294 = vpack.c.b16 %v4220, %v4218
    %v4295 = vpack.c.b16 %v4221, %v4219
    %v4296 = vpack.c.b16 %v4224, %v4222
    %v4297 = vpack.c.b16 %v4225, %v4223
    %v4298 = vpack.c.b16 %v4228, %v4226
    %v4299 = vpack.c.b16 %v4229, %v4227
    %v4300 = vpack.c.b16 %v4232, %v4230
    %v4301 = vpack.c.b16 %v4233, %v4231
    %v4302 = vpack.c.b16 %v4236, %v4234
    %v4303 = vpack.c.b16 %v4237, %v4235
    %v4304 = vpack.c.b16 %v4240, %v4238
    %v4305 = vpack.c.b16 %v4241, %v4239
    %4370 = vmatprep.subr.bf16.mxu0 %v4243
    %4371 = vmatpush1.bf16.msra.mxu0 %v4242
    %4372 = vmatprep.subr.bf16.mxu0 %v4245
    %4373 = vmatpush1.bf16.msra.mxu0 %v4244
    %4374 = vmatprep.subr.bf16.mxu0 %v4247
    %4375 = vmatpush1.bf16.msra.mxu0 %v4246
    %4376 = vmatprep.subr.bf16.mxu0 %v4249
    %4377 = vmatpush1.bf16.msra.mxu0 %v4248
    %4378 = vmatprep.subr.bf16.mxu0 %v4251
    %4379 = vmatpush1.bf16.msra.mxu0 %v4250
    %4380 = vmatprep.subr.bf16.mxu0 %v4253
    %4381 = vmatpush1.bf16.msra.mxu0 %v4252
    %4382 = vmatprep.subr.bf16.mxu0 %v4255
    %4383 = vmatpush1.bf16.msra.mxu0 %v4254
    %4384 = vmatprep.subr.bf16.mxu0 %v4257
    %4385 = vmatpush1.bf16.msra.mxu0 %v4256
    %4386 = vmatprep.subr.bf16.mxu0 %v4259
    %4387 = vmatpush1.bf16.msra.mxu0 %v4258
    %4388 = vmatprep.subr.bf16.mxu0 %v4261
    %4389 = vmatpush1.bf16.msra.mxu0 %v4260
    %4390 = vmatprep.subr.bf16.mxu0 %v4263
    %4391 = vmatpush1.bf16.msra.mxu0 %v4262
    %4392 = vmatprep.subr.bf16.mxu0 %v4265
    %4393 = vmatpush1.bf16.msra.mxu0 %v4264
    %4394 = vmatprep.subr.bf16.mxu0 %v4267
    %4395 = vmatpush1.bf16.msra.mxu0 %v4266
    %4396 = vmatprep.subr.bf16.mxu0 %v4269
    %4397 = vmatpush1.bf16.msra.mxu0 %v4268
    %4398 = vmatprep.subr.bf16.mxu0 %v4271
    %4399 = vmatpush1.bf16.msra.mxu0 %v4270
    %4400 = vmatprep.subr.bf16.mxu0 %v4273
    %4401 = vmatpush1.bf16.msra.mxu0 %v4272
    %4402 = vmatprep.mubr.bf16.mxu0 %v3943
    %4403 = vmatmul.mubr.bf16.gmra.mrb[0].mxu0 %v3942
    %v4404 = vpop.f32.mrb[0].mxu0
    %v4405 = vadd.f32 %v4043, %v4404
    %v4406 = vpop.f32.mrb[0].mxu0
    %v4407 = vadd.f32 %v4047, %v4406
    %v4408 = vpop.f32.mrb[0].mxu0
    %v4409 = vadd.f32 %v4043, %v4408
    %v4410 = vpop.f32.mrb[0].mxu0
    %v4411 = vadd.f32 %v4047, %v4410
    %4412 = vmatprep.mubr.bf16.mxu0 %v3947
    %4413 = vmatmul.mubr.bf16.gmra.mrb[0].mxu0 %v3946
    %v4414 = vpop.f32.mrb[0].mxu0
    %v4415 = vadd.f32 %v4043, %v4414
    %v4416 = vpop.f32.mrb[0].mxu0
    %v4417 = vadd.f32 %v4047, %v4416
    %v4418 = vpop.f32.mrb[0].mxu0
    %v4419 = vadd.f32 %v4043, %v4418
    %v4420 = vpop.f32.mrb[0].mxu0
    %v4421 = vadd.f32 %v4047, %v4420
    %4422 = vmatprep.mubr.bf16.mxu0 %v3951
    %4423 = vmatmul.mubr.bf16.gmra.mrb[0].mxu0 %v3950
    %v4424 = vpop.f32.mrb[0].mxu0
    %v4425 = vadd.f32 %v4043, %v4424
    %v4426 = vpop.f32.mrb[0].mxu0
    %v4427 = vadd.f32 %v4047, %v4426
    %v4428 = vpop.f32.mrb[0].mxu0
    %v4429 = vadd.f32 %v4043, %v4428
    %v4430 = vpop.f32.mrb[0].mxu0
    %v4431 = vadd.f32 %v4047, %v4430
    %4432 = vmatprep.mubr.bf16.mxu0 %v3955
    %4433 = vmatmul.mubr.bf16.gmra.mrb[0].mxu0 %v3954
    %v4434 = vpop.f32.mrb[0].mxu0
    %v4435 = vadd.f32 %v4043, %v4434
    %v4436 = vpop.f32.mrb[0].mxu0
    %v4437 = vadd.f32 %v4047, %v4436
    %v4438 = vpop.f32.mrb[0].mxu0
    %v4439 = vadd.f32 %v4043, %v4438
    %v4440 = vpop.f32.mrb[0].mxu0
    %v4441 = vadd.f32 %v4047, %v4440
    %4442 = vmatprep.mubr.bf16.mxu0 %v3959
    %4443 = vmatmul.mubr.bf16.gmra.mrb[0].mxu0 %v3958
    %v4444 = vpop.f32.mrb[0].mxu0
    %v4445 = vadd.f32 %v4043, %v4444
    %v4446 = vpop.f32.mrb[0].mxu0
    %v4447 = vadd.f32 %v4047, %v4446
    %v4448 = vpop.f32.mrb[0].mxu0
    %v4449 = vadd.f32 %v4043, %v4448
    %v4450 = vpop.f32.mrb[0].mxu0
    %v4451 = vadd.f32 %v4047, %v4450
    %4452 = vmatprep.mubr.bf16.mxu0 %v3963
    %4453 = vmatmul.mubr.bf16.gmra.mrb[0].mxu0 %v3962
    %v4454 = vpop.f32.mrb[0].mxu0
    %v4455 = vadd.f32 %v4043, %v4454
    %v4456 = vpop.f32.mrb[0].mxu0
    %v4457 = vadd.f32 %v4047, %v4456
    %v4458 = vpop.f32.mrb[0].mxu0
    %v4459 = vadd.f32 %v4043, %v4458
    %v4460 = vpop.f32.mrb[0].mxu0
    %v4461 = vadd.f32 %v4047, %v4460
    %4462 = vmatprep.mubr.bf16.mxu0 %v3967
    %4463 = vmatmul.mubr.bf16.gmra.mrb[0].mxu0 %v3966
    %v4464 = vpop.f32.mrb[0].mxu0
    %v4465 = vadd.f32 %v4043, %v4464
    %v4466 = vpop.f32.mrb[0].mxu0
    %v4467 = vadd.f32 %v4047, %v4466
    %v4468 = vpop.f32.mrb[0].mxu0
    %v4469 = vadd.f32 %v4043, %v4468
    %v4470 = vpop.f32.mrb[0].mxu0
    %v4471 = vadd.f32 %v4047, %v4470
    %4472 = vmatprep.mubr.bf16.mxu0 %v3971
    %4473 = vmatmul.mubr.bf16.gmra.mrb[0].mxu0 %v3970
    %v4474 = vpop.f32.mrb[0].mxu0
    %v4475 = vadd.f32 %v4043, %v4474
    %v4476 = vpop.f32.mrb[0].mxu0
    %v4477 = vadd.f32 %v4047, %v4476
    %v4478 = vpop.f32.mrb[0].mxu0
    %v4479 = vadd.f32 %v4043, %v4478
    %v4480 = vpop.f32.mrb[0].mxu0
    %v4481 = vadd.f32 %v4047, %v4480
    %4482 = vdwg.mxu0
    %4483 = vmatprep.subr.bf16.mxu0 %v4275
    %4484 = vmatpush1.bf16.msra.mxu0 %v4274
    %4485 = vmatprep.subr.bf16.mxu0 %v4277
    %4486 = vmatpush1.bf16.msra.mxu0 %v4276
    %4487 = vmatprep.subr.bf16.mxu0 %v4279
    %4488 = vmatpush1.bf16.msra.mxu0 %v4278
    %4489 = vmatprep.subr.bf16.mxu0 %v4281
    %4490 = vmatpush1.bf16.msra.mxu0 %v4280
    %4491 = vmatprep.subr.bf16.mxu0 %v4283
    %4492 = vmatpush1.bf16.msra.mxu0 %v4282
    %4493 = vmatprep.subr.bf16.mxu0 %v4285
    %4494 = vmatpush1.bf16.msra.mxu0 %v4284
    %4495 = vmatprep.subr.bf16.mxu0 %v4287
    %4496 = vmatpush1.bf16.msra.mxu0 %v4286
    %4497 = vmatprep.subr.bf16.mxu0 %v4289
    %4498 = vmatpush1.bf16.msra.mxu0 %v4288
    %4499 = vmatprep.subr.bf16.mxu0 %v4291
    %4500 = vmatpush1.bf16.msra.mxu0 %v4290
    %4501 = vmatprep.subr.bf16.mxu0 %v4293
    %4502 = vmatpush1.bf16.msra.mxu0 %v4292
    %4503 = vmatprep.subr.bf16.mxu0 %v4295
    %4504 = vmatpush1.bf16.msra.mxu0 %v4294
    %4505 = vmatprep.subr.bf16.mxu0 %v4297
    %4506 = vmatpush1.bf16.msra.mxu0 %v4296
    %4507 = vmatprep.subr.bf16.mxu0 %v4299
    %4508 = vmatpush1.bf16.msra.mxu0 %v4298
    %4509 = vmatprep.subr.bf16.mxu0 %v4301
    %4510 = vmatpush1.bf16.msra.mxu0 %v4300
    %4511 = vmatprep.subr.bf16.mxu0 %v4303
    %4512 = vmatpush1.bf16.msra.mxu0 %v4302
    %4513 = vmatprep.subr.bf16.mxu0 %v4305
    %4514 = vmatpush1.bf16.msra.mxu0 %v4304
    %4515 = vmatprep.mubr.bf16.mxu0 %v3945
    %4516 = vmatmul.mubr.bf16.gmra.mrb[0].mxu0 %v3944
    %v4517 = vpop.f32.mrb[0].mxu0
    %v4518 = vadd.f32 %v4405, %v4517
    %v4519 = vpop.f32.mrb[0].mxu0
    %v4520 = vadd.f32 %v4407, %v4519
    %v4521 = vpop.f32.mrb[0].mxu0
    %v4522 = vadd.f32 %v4409, %v4521
    %v4523 = vpop.f32.mrb[0].mxu0
    %v4524 = vadd.f32 %v4411, %v4523
    %4525 = vmatprep.mubr.bf16.mxu0 %v3949
    %4526 = vmatmul.mubr.bf16.gmra.mrb[0].mxu0 %v3948
    %v4527 = vpop.f32.mrb[0].mxu0
    %v4528 = vadd.f32 %v4415, %v4527
    %v4529 = vpop.f32.mrb[0].mxu0
    %v4530 = vadd.f32 %v4417, %v4529
    %v4531 = vpop.f32.mrb[0].mxu0
    %v4532 = vadd.f32 %v4419, %v4531
    %v4533 = vpop.f32.mrb[0].mxu0
    %v4534 = vadd.f32 %v4421, %v4533
    %4535 = vmatprep.mubr.bf16.mxu0 %v3953
    %4536 = vmatmul.mubr.bf16.gmra.mrb[0].mxu0 %v3952
    %v4537 = vpop.f32.mrb[0].mxu0
    %v4538 = vadd.f32 %v4425, %v4537
    %v4539 = vpop.f32.mrb[0].mxu0
    %v4540 = vadd.f32 %v4427, %v4539
    %v4541 = vpop.f32.mrb[0].mxu0
    %v4542 = vadd.f32 %v4429, %v4541
    %v4543 = vpop.f32.mrb[0].mxu0
    %v4544 = vadd.f32 %v4431, %v4543
    %4545 = vmatprep.mubr.bf16.mxu0 %v3957
    %4546 = vmatmul.mubr.bf16.gmra.mrb[0].mxu0 %v3956
    %v4547 = vpop.f32.mrb[0].mxu0
    %v4548 = vadd.f32 %v4435, %v4547
    %v4549 = vpop.f32.mrb[0].mxu0
    %v4550 = vadd.f32 %v4437, %v4549
    %v4551 = vpop.f32.mrb[0].mxu0
    %v4552 = vadd.f32 %v4439, %v4551
    %v4553 = vpop.f32.mrb[0].mxu0
    %v4554 = vadd.f32 %v4441, %v4553
    %4555 = vmatprep.mubr.bf16.mxu0 %v3961
    %4556 = vmatmul.mubr.bf16.gmra.mrb[0].mxu0 %v3960
    %v4557 = vpop.f32.mrb[0].mxu0
    %v4558 = vadd.f32 %v4445, %v4557
    %v4559 = vpop.f32.mrb[0].mxu0
    %v4560 = vadd.f32 %v4447, %v4559
    %v4561 = vpop.f32.mrb[0].mxu0
    %v4562 = vadd.f32 %v4449, %v4561
    %v4563 = vpop.f32.mrb[0].mxu0
    %v4564 = vadd.f32 %v4451, %v4563
    %4565 = vmatprep.mubr.bf16.mxu0 %v3965
    %4566 = vmatmul.mubr.bf16.gmra.mrb[0].mxu0 %v3964
    %v4567 = vpop.f32.mrb[0].mxu0
    %v4568 = vadd.f32 %v4455, %v4567
    %v4569 = vpop.f32.mrb[0].mxu0
    %v4570 = vadd.f32 %v4457, %v4569
    %v4571 = vpop.f32.mrb[0].mxu0
    %v4572 = vadd.f32 %v4459, %v4571
    %v4573 = vpop.f32.mrb[0].mxu0
    %v4574 = vadd.f32 %v4461, %v4573
    %4575 = vmatprep.mubr.bf16.mxu0 %v3969
    %4576 = vmatmul.mubr.bf16.gmra.mrb[0].mxu0 %v3968
    %v4577 = vpop.f32.mrb[0].mxu0
    %v4578 = vadd.f32 %v4465, %v4577
    %v4579 = vpop.f32.mrb[0].mxu0
    %v4580 = vadd.f32 %v4467, %v4579
    %v4581 = vpop.f32.mrb[0].mxu0
    %v4582 = vadd.f32 %v4469, %v4581
    %v4583 = vpop.f32.mrb[0].mxu0
    %v4584 = vadd.f32 %v4471, %v4583
    %4585 = vmatprep.mubr.bf16.mxu0 %v3973
    %4586 = vmatmul.mubr.bf16.gmra.mrb[0].mxu0 %v3972
    %v4587 = vpop.f32.mrb[0].mxu0
    %v4588 = vadd.f32 %v4475, %v4587
    %v4589 = vpop.f32.mrb[0].mxu0
    %v4590 = vadd.f32 %v4477, %v4589
    %v4591 = vpop.f32.mrb[0].mxu0
    %v4592 = vadd.f32 %v4479, %v4591
    %v4593 = vpop.f32.mrb[0].mxu0
    %v4594 = vadd.f32 %v4481, %v4593
    %4595 = vdwg.mxu0
    %v4596 = vmul.f32 %v4518, 0.2
    %v4597 = vmul.f32 %v4520, 0.2
    %v4598 = vmul.f32 %v4522, 0.2
    %v4599 = vmul.f32 %v4524, 0.2
    %v4600 = vmul.f32 %v4528, 0.2
    %v4601 = vmul.f32 %v4530, 0.2
    %v4602 = vmul.f32 %v4532, 0.2
    %v4603 = vmul.f32 %v4534, 0.2
    %v4604 = vmul.f32 %v4538, 0.2
    %v4605 = vmul.f32 %v4540, 0.2
    %v4606 = vmul.f32 %v4542, 0.2
    %v4607 = vmul.f32 %v4544, 0.2
    %v4608 = vmul.f32 %v4548, 0.2
    %v4609 = vmul.f32 %v4550, 0.2
    %v4610 = vmul.f32 %v4552, 0.2
    %v4611 = vmul.f32 %v4554, 0.2
    %v4612 = vmul.f32 %v4558, 0.2
    %v4613 = vmul.f32 %v4560, 0.2
    %v4614 = vmul.f32 %v4562, 0.2
    %v4615 = vmul.f32 %v4564, 0.2
    %v4616 = vmul.f32 %v4568, 0.2
    %v4617 = vmul.f32 %v4570, 0.2
    %v4618 = vmul.f32 %v4572, 0.2
    %v4619 = vmul.f32 %v4574, 0.2
    %v4620 = vmul.f32 %v4578, 0.2
    %v4621 = vmul.f32 %v4580, 0.2
    %v4622 = vmul.f32 %v4582, 0.2
    %v4623 = vmul.f32 %v4584, 0.2
    %v4624 = vmul.f32 %v4588, 0.2
    %v4625 = vmul.f32 %v4590, 0.2
    %v4626 = vmul.f32 %v4592, 0.2
    %v4627 = vmul.f32 %v4594, 0.2
    %v4628 = vmax.f32 %v4518, %v4596
    %v4629 = vmax.f32 %v4520, %v4597
    %v4630 = vmax.f32 %v4522, %v4598
    %v4631 = vmax.f32 %v4524, %v4599
    %v4632 = vmax.f32 %v4528, %v4600
    %v4633 = vmax.f32 %v4530, %v4601
    %v4634 = vmax.f32 %v4532, %v4602
    %v4635 = vmax.f32 %v4534, %v4603
    %v4636 = vmax.f32 %v4538, %v4604
    %v4637 = vmax.f32 %v4540, %v4605
    %v4638 = vmax.f32 %v4542, %v4606
    %v4639 = vmax.f32 %v4544, %v4607
    %v4640 = vmax.f32 %v4548, %v4608
    %v4641 = vmax.f32 %v4550, %v4609
    %v4642 = vmax.f32 %v4552, %v4610
    %v4643 = vmax.f32 %v4554, %v4611
    %v4644 = vmax.f32 %v4558, %v4612
    %v4645 = vmax.f32 %v4560, %v4613
    %v4646 = vmax.f32 %v4562, %v4614
    %v4647 = vmax.f32 %v4564, %v4615
    %v4648 = vmax.f32 %v4568, %v4616
    %v4649 = vmax.f32 %v4570, %v4617
    %v4650 = vmax.f32 %v4572, %v4618
    %v4651 = vmax.f32 %v4574, %v4619
    %v4652 = vmax.f32 %v4578, %v4620
    %v4653 = vmax.f32 %v4580, %v4621
    %v4654 = vmax.f32 %v4582, %v4622
    %v4655 = vmax.f32 %v4584, %v4623
    %v4656 = vmax.f32 %v4588, %v4624
    %v4657 = vmax.f32 %v4590, %v4625
    %v4658 = vmax.f32 %v4592, %v4626
    %v4659 = vmax.f32 %v4594, %v4627
    %v4660 = vld [vmem:[%s7] sm:$0x3]
    %v4661 = vunpack.c.l.bf16 %v4660
    %v4663 = vlaneseq
    %v4664 = vshrl.u32 %v4663, 7
    %v4665 = vsub.s32 0, %v4664
    %v4666 = vrot.slane %v4661, %v4665
    %v4667 = vlaneseq
    %v4668 = vshrl.u32 %v4667, 7
    %v4669 = vsub.s32 2, %v4668
    %v4670 = vrot.slane %v4661, %v4669
    %v4673 = vlaneseq
    %v4674 = vshrl.u32 %v4673, 7
    %v4675 = vsub.s32 0, %v4674
    %v4676 = vrot.slane %v4666, %v4675
    %v4677 = vlaneseq
    %v4678 = vshrl.u32 %v4677, 7
    %v4679 = vsub.s32 0, %v4678
    %v4680 = vrot.slane %v4670, %v4679
    %v4681 = vmul.f32 %v4628, %v4676
    %v4682 = vmul.f32 %v4629, %v4680
    %v4683 = vmul.f32 %v4630, %v4676
    %v4684 = vmul.f32 %v4631, %v4680
    %v4685 = vmul.f32 %v4632, %v4676
    %v4686 = vmul.f32 %v4633, %v4680
    %v4687 = vmul.f32 %v4634, %v4676
    %v4688 = vmul.f32 %v4635, %v4680
    %v4689 = vmul.f32 %v4636, %v4676
    %v4690 = vmul.f32 %v4637, %v4680
    %v4691 = vmul.f32 %v4638, %v4676
    %v4692 = vmul.f32 %v4639, %v4680
    %v4693 = vmul.f32 %v4640, %v4676
    %v4694 = vmul.f32 %v4641, %v4680
    %v4695 = vmul.f32 %v4642, %v4676
    %v4696 = vmul.f32 %v4643, %v4680
    %v4697 = vmul.f32 %v4644, %v4676
    %v4698 = vmul.f32 %v4645, %v4680
    %v4699 = vmul.f32 %v4646, %v4676
    %v4700 = vmul.f32 %v4647, %v4680
    %v4701 = vmul.f32 %v4648, %v4676
    %v4702 = vmul.f32 %v4649, %v4680
    %v4703 = vmul.f32 %v4650, %v4676
    %v4704 = vmul.f32 %v4651, %v4680
    %v4705 = vmul.f32 %v4652, %v4676
    %v4706 = vmul.f32 %v4653, %v4680
    %v4707 = vmul.f32 %v4654, %v4676
    %v4708 = vmul.f32 %v4655, %v4680
    %v4709 = vmul.f32 %v4656, %v4676
    %v4710 = vmul.f32 %v4657, %v4680
    %v4711 = vmul.f32 %v4658, %v4676
    %v4712 = vmul.f32 %v4659, %v4680
    %v4713 = vadd.f32 %v4681, %v4682
    %4714 = vadd.xlane.f32.xlu0 %v4713
    %v4715 = vpop.xlane.xlu0 %4714
    %v4716 = vadd.f32 %v4683, %v4684
    %4717 = vadd.xlane.f32.xlu0 %v4716
    %v4718 = vpop.xlane.xlu0 %4717
    %v4719 = vadd.f32 %v4685, %v4686
    %4720 = vadd.xlane.f32.xlu0 %v4719
    %v4721 = vpop.xlane.xlu0 %4720
    %v4722 = vadd.f32 %v4687, %v4688
    %4723 = vadd.xlane.f32.xlu0 %v4722
    %v4724 = vpop.xlane.xlu0 %4723
    %v4725 = vadd.f32 %v4689, %v4690
    %4726 = vadd.xlane.f32.xlu0 %v4725
    %v4727 = vpop.xlane.xlu0 %4726
    %v4728 = vadd.f32 %v4691, %v4692
    %4729 = vadd.xlane.f32.xlu0 %v4728
    %v4730 = vpop.xlane.xlu0 %4729
    %v4731 = vadd.f32 %v4693, %v4694
    %4732 = vadd.xlane.f32.xlu0 %v4731
    %v4733 = vpop.xlane.xlu0 %4732
    %v4734 = vadd.f32 %v4695, %v4696
    %4735 = vadd.xlane.f32.xlu0 %v4734
    %v4736 = vpop.xlane.xlu0 %4735
    %v4737 = vadd.f32 %v4697, %v4698
    %4738 = vadd.xlane.f32.xlu0 %v4737
    %v4739 = vpop.xlane.xlu0 %4738
    %v4740 = vadd.f32 %v4699, %v4700
    %4741 = vadd.xlane.f32.xlu0 %v4740
    %v4742 = vpop.xlane.xlu0 %4741
    %v4743 = vadd.f32 %v4701, %v4702
    %4744 = vadd.xlane.f32.xlu0 %v4743
    %v4745 = vpop.xlane.xlu0 %4744
    %v4746 = vadd.f32 %v4703, %v4704
    %4747 = vadd.xlane.f32.xlu0 %v4746
    %v4748 = vpop.xlane.xlu0 %4747
    %v4749 = vadd.f32 %v4705, %v4706
    %4750 = vadd.xlane.f32.xlu0 %v4749
    %v4751 = vpop.xlane.xlu0 %4750
    %v4752 = vadd.f32 %v4707, %v4708
    %4753 = vadd.xlane.f32.xlu0 %v4752
    %v4754 = vpop.xlane.xlu0 %4753
    %v4755 = vadd.f32 %v4709, %v4710
    %4756 = vadd.xlane.f32.xlu0 %v4755
    %v4757 = vpop.xlane.xlu0 %4756
    %v4758 = vadd.f32 %v4711, %v4712
    %4759 = vadd.xlane.f32.xlu0 %v4758
    %v4760 = vpop.xlane.xlu0 %4759
    %s4761 = sld [smem:[#allocation2]]
    %v4762 = vstv %s4761
    %v4763 = vadd.f32 %v4715, %v4762
    %v4764 = vadd.f32 %v4718, %v4762
    %v4765 = vadd.f32 %v4721, %v4762
    %v4766 = vadd.f32 %v4724, %v4762
    %v4767 = vadd.f32 %v4727, %v4762
    %v4768 = vadd.f32 %v4730, %v4762
    %v4769 = vadd.f32 %v4733, %v4762
    %v4770 = vadd.f32 %v4736, %v4762
    %v4771 = vadd.f32 %v4739, %v4762
    %v4772 = vadd.f32 %v4742, %v4762
    %v4773 = vadd.f32 %v4745, %v4762
    %v4774 = vadd.f32 %v4748, %v4762
    %v4775 = vadd.f32 %v4751, %v4762
    %v4776 = vadd.f32 %v4754, %v4762
    %v4777 = vadd.f32 %v4757, %v4762
    %v4778 = vadd.f32 %v4760, %v4762
    %v4779 = vxor.u32 %v4763, 2147483648
    %v4780 = vxor.u32 %v4764, 2147483648
    %v4781 = vxor.u32 %v4765, 2147483648
    %v4782 = vxor.u32 %v4766, 2147483648
    %v4783 = vxor.u32 %v4767, 2147483648
    %v4784 = vxor.u32 %v4768, 2147483648
    %v4785 = vxor.u32 %v4769, 2147483648
    %v4786 = vxor.u32 %v4770, 2147483648
    %v4787 = vxor.u32 %v4771, 2147483648
    %v4788 = vxor.u32 %v4772, 2147483648
    %v4789 = vxor.u32 %v4773, 2147483648
    %v4790 = vxor.u32 %v4774, 2147483648
    %v4791 = vxor.u32 %v4775, 2147483648
    %v4792 = vxor.u32 %v4776, 2147483648
    %v4793 = vxor.u32 %v4777, 2147483648
    %v4794 = vxor.u32 %v4778, 2147483648
    %v4795 = vmul.f32 %v4779, 1.442695
    %v4796 = vpow.pop %v4795
    %v4797 = vmul.f32 %v4780, 1.442695
    %v4798 = vpow.pop %v4797
    %v4799 = vmul.f32 %v4781, 1.442695
    %v4800 = vpow.pop %v4799
    %v4801 = vmul.f32 %v4782, 1.442695
    %v4802 = vpow.pop %v4801
    %v4803 = vmul.f32 %v4783, 1.442695
    %v4804 = vpow.pop %v4803
    %v4805 = vmul.f32 %v4784, 1.442695
    %v4806 = vpow.pop %v4805
    %v4807 = vmul.f32 %v4785, 1.442695
    %v4808 = vpow.pop %v4807
    %v4809 = vmul.f32 %v4786, 1.442695
    %v4810 = vpow.pop %v4809
    %v4811 = vmul.f32 %v4787, 1.442695
    %v4812 = vpow.pop %v4811
    %v4813 = vmul.f32 %v4788, 1.442695
    %v4814 = vpow.pop %v4813
    %v4815 = vmul.f32 %v4789, 1.442695
    %v4816 = vpow.pop %v4815
    %v4817 = vmul.f32 %v4790, 1.442695
    %v4818 = vpow.pop %v4817
    %v4819 = vmul.f32 %v4791, 1.442695
    %v4820 = vpow.pop %v4819
    %v4821 = vmul.f32 %v4792, 1.442695
    %v4822 = vpow.pop %v4821
    %v4823 = vmul.f32 %v4793, 1.442695
    %v4824 = vpow.pop %v4823
    %v4825 = vmul.f32 %v4794, 1.442695
    %v4826 = vpow.pop %v4825
    %v4827 = vadd.f32 %v4796, 1.0
    %v4828 = vadd.f32 %v4798, 1.0
    %v4829 = vadd.f32 %v4800, 1.0
    %v4830 = vadd.f32 %v4802, 1.0
    %v4831 = vadd.f32 %v4804, 1.0
    %v4832 = vadd.f32 %v4806, 1.0
    %v4833 = vadd.f32 %v4808, 1.0
    %v4834 = vadd.f32 %v4810, 1.0
    %v4835 = vadd.f32 %v4812, 1.0
    %v4836 = vadd.f32 %v4814, 1.0
    %v4837 = vadd.f32 %v4816, 1.0
    %v4838 = vadd.f32 %v4818, 1.0
    %v4839 = vadd.f32 %v4820, 1.0
    %v4840 = vadd.f32 %v4822, 1.0
    %v4841 = vadd.f32 %v4824, 1.0
    %v4842 = vadd.f32 %v4826, 1.0
    %v4843 = vrcp.pop %v4827
    %v4844 = vmul.f32 1.0, %v4843
    %v4845 = vrcp.pop %v4828
    %v4846 = vmul.f32 1.0, %v4845
    %v4847 = vrcp.pop %v4829
    %v4848 = vmul.f32 1.0, %v4847
    %v4849 = vrcp.pop %v4830
    %v4850 = vmul.f32 1.0, %v4849
    %v4851 = vrcp.pop %v4831
    %v4852 = vmul.f32 1.0, %v4851
    %v4853 = vrcp.pop %v4832
    %v4854 = vmul.f32 1.0, %v4853
    %v4855 = vrcp.pop %v4833
    %v4856 = vmul.f32 1.0, %v4855
    %v4857 = vrcp.pop %v4834
    %v4858 = vmul.f32 1.0, %v4857
    %v4859 = vrcp.pop %v4835
    %v4860 = vmul.f32 1.0, %v4859
    %v4861 = vrcp.pop %v4836
    %v4862 = vmul.f32 1.0, %v4861
    %v4863 = vrcp.pop %v4837
    %v4864 = vmul.f32 1.0, %v4863
    %v4865 = vrcp.pop %v4838
    %v4866 = vmul.f32 1.0, %v4865
    %v4867 = vrcp.pop %v4839
    %v4868 = vmul.f32 1.0, %v4867
    %v4869 = vrcp.pop %v4840
    %v4870 = vmul.f32 1.0, %v4869
    %v4871 = vrcp.pop %v4841
    %v4872 = vmul.f32 1.0, %v4871
    %v4873 = vrcp.pop %v4842
    %v4874 = vmul.f32 1.0, %v4873
    %v4891 = vlaneseq
    %v4892 = vand.u32 %v4891, 127
    %v4893 = vlaneseq
    %v4894 = vshrl.u32 %v4893, 7
    %v4895 = vsub.s32 %v4892, %v4894
    %v4896 = vrot.slane %v4844, %v4895
    %v4897 = vadd.s32 %v4892, 4294967288
    %v4898 = vlaneseq
    %v4899 = vshrl.u32 %v4898, 7
    %v4900 = vsub.s32 %v4897, %v4899
    %v4901 = vrot.slane %v4846, %v4900
    %vm4902 = vcmask 130112
    %v4903 = vsel %vm4902, %v4901, %v4896
    %v4904 = vadd.s32 %v4892, 4294967280
    %v4905 = vlaneseq
    %v4906 = vshrl.u32 %v4905, 7
    %v4907 = vsub.s32 %v4904, %v4906
    %v4908 = vrot.slane %v4848, %v4907
    %vm4909 = vcmask 195712
    %v4910 = vsel %vm4909, %v4908, %v4903
    %v4911 = vadd.s32 %v4892, 4294967272
    %v4912 = vlaneseq
    %v4913 = vshrl.u32 %v4912, 7
    %v4914 = vsub.s32 %v4911, %v4913
    %v4915 = vrot.slane %v4850, %v4914
    %vm4916 = vcmask 261312
    %v4917 = vsel %vm4916, %v4915, %v4910
    %v4918 = vadd.s32 %v4892, 4294967264
    %v4919 = vlaneseq
    %v4920 = vshrl.u32 %v4919, 7
    %v4921 = vsub.s32 %v4918, %v4920
    %v4922 = vrot.slane %v4852, %v4921
    %vm4923 = vcmask 326912
    %v4924 = vsel %vm4923, %v4922, %v4917
    %v4925 = vadd.s32 %v4892, 4294967256
    %v4926 = vlaneseq
    %v4927 = vshrl.u32 %v4926, 7
    %v4928 = vsub.s32 %v4925, %v4927
    %v4929 = vrot.slane %v4854, %v4928
    %vm4930 = vcmask 392512
    %v4931 = vsel %vm4930, %v4929, %v4924
    %v4932 = vadd.s32 %v4892, 4294967248
    %v4933 = vlaneseq
    %v4934 = vshrl.u32 %v4933, 7
    %v4935 = vsub.s32 %v4932, %v4934
    %v4936 = vrot.slane %v4856, %v4935
    %vm4937 = vcmask 458112
    %v4938 = vsel %vm4937, %v4936, %v4931
    %v4939 = vadd.s32 %v4892, 4294967240
    %v4940 = vlaneseq
    %v4941 = vshrl.u32 %v4940, 7
    %v4942 = vsub.s32 %v4939, %v4941
    %v4943 = vrot.slane %v4858, %v4942
    %vm4944 = vcmask 523712
    %v4945 = vsel %vm4944, %v4943, %v4938
    %v4946 = vadd.s32 %v4892, 4294967232
    %v4947 = vlaneseq
    %v4948 = vshrl.u32 %v4947, 7
    %v4949 = vsub.s32 %v4946, %v4948
    %v4950 = vrot.slane %v4860, %v4949
    %vm4951 = vcmask 589312
    %v4952 = vsel %vm4951, %v4950, %v4945
    %v4953 = vadd.s32 %v4892, 4294967224
    %v4954 = vlaneseq
    %v4955 = vshrl.u32 %v4954, 7
    %v4956 = vsub.s32 %v4953, %v4955
    %v4957 = vrot.slane %v4862, %v4956
    %vm4958 = vcmask 654912
    %v4959 = vsel %vm4958, %v4957, %v4952
    %v4960 = vadd.s32 %v4892, 4294967216
    %v4961 = vlaneseq
    %v4962 = vshrl.u32 %v4961, 7
    %v4963 = vsub.s32 %v4960, %v4962
    %v4964 = vrot.slane %v4864, %v4963
    %vm4965 = vcmask 720512
    %v4966 = vsel %vm4965, %v4964, %v4959
    %v4967 = vadd.s32 %v4892, 4294967208
    %v4968 = vlaneseq
    %v4969 = vshrl.u32 %v4968, 7
    %v4970 = vsub.s32 %v4967, %v4969
    %v4971 = vrot.slane %v4866, %v4970
    %vm4972 = vcmask 786112
    %v4973 = vsel %vm4972, %v4971, %v4966
    %v4974 = vadd.s32 %v4892, 4294967200
    %v4975 = vlaneseq
    %v4976 = vshrl.u32 %v4975, 7
    %v4977 = vsub.s32 %v4974, %v4976
    %v4978 = vrot.slane %v4868, %v4977
    %vm4979 = vcmask 851712
    %v4980 = vsel %vm4979, %v4978, %v4973
    %v4981 = vadd.s32 %v4892, 4294967192
    %v4982 = vlaneseq
    %v4983 = vshrl.u32 %v4982, 7
    %v4984 = vsub.s32 %v4981, %v4983
    %v4985 = vrot.slane %v4870, %v4984
    %vm4986 = vcmask 917312
    %v4987 = vsel %vm4986, %v4985, %v4980
    %v4988 = vadd.s32 %v4892, 4294967184
    %v4989 = vlaneseq
    %v4990 = vshrl.u32 %v4989, 7
    %v4991 = vsub.s32 %v4988, %v4990
    %v4992 = vrot.slane %v4872, %v4991
    %vm4993 = vcmask 982912
    %v4994 = vsel %vm4993, %v4992, %v4987
    %v4995 = vadd.s32 %v4892, 4294967176
    %v4996 = vlaneseq
    %v4997 = vshrl.u32 %v4996, 7
    %v4998 = vsub.s32 %v4995, %v4997
    %v4999 = vrot.slane %v4874, %v4998
    %vm5000 = vcmask 1048512
    %v5001 = vsel %vm5000, %v4999, %v4994
    %5003 = vst [vmem:[#allocation11] sm:$0x1] %v5001
    // Predicated region
    $region54: #{tpu_custom_call.1} parent=1 // pred_check
      _
    $region55: #{tpu_custom_call.1} parent=1 // pred_check_branch
      %5005 = sbr.rel (0) target = $region57
    $region56: #{tpu_custom_call.1} parent=1 // pred_region
      %s5007 = ssub.s32 16, 16
      %5008 = vsyncadd [#allocation5], %s5007
      %s5010 = sshll.u32 [#allocation11], 4
      %s5011 = int_to_ptr.vmem [resolvable:$true] %s5010
      %5013 = dma.vmem_to_hbm [thread:$0]  %s5011, 16, %s9, [#allocation5]
    $region57: #{tpu_custom_call.1} parent=1 // pred_fallthru
      _
    // Predicated region
    $region58: #{tpu_custom_call.1} parent=1 // pred_check
      _
    $region59: #{tpu_custom_call.1} parent=1 // pred_check_branch
      %5015 = sbr.rel (0) target = $region61
    $region60: #{tpu_custom_call.1} parent=1 // pred_region
      %5016 = dma.done [#allocation5], 16
    $region61: #{tpu_custom_call.1} parent=1 // pred_fallthru
      _
    %5017 = vsyncpa [#allocation4], 1
    %5018 = vsyncpa [#allocation7], 1
    %5019 = vsyncpa [#allocation10], 1
    %5020 = vsyncpa [#allocation5], 1

</llo_original>
